<compile_context>
chip_gen: v5e
topology: v5e:2x2
jax: 0.10.0
libtpu: 0.0.40
codegen_flags: <defaults>
</compile_context>

<pallas_src>
import math

import jax
import jax.numpy as jnp
from jax import lax
from jax.experimental import pallas as pl
from jax.experimental.pallas import tpu as pltpu


CIN_PAD = 8     # first-layer channel pad (3 -> 8): im2col K = 72 instead of 27
COUT_PAD = 32   # final-layer per-phase channel pad (3 -> 32): lane-dense output slab

_ENC_TAPS = tuple((kh, kw) for kh in range(3) for kw in range(3))   # 3x3 conv taps
_DEC_TAPS = ((0, 0), (0, 1), (1, 0), (1, 1))                        # polyphase offsets


# ------------------------------ fused Pallas kernel ---------------------------------

def _dae_kernel(x_ref, w1, b1, w2, b2, w3, b3, wd1, bd1, wd2, bd2, wd3, bd3,
                o_ref,
                patch, xp1, xp2, xp3, dp1, dp2, dp3, t1, t2, t3):
    """Whole DenoisingAutoencoder forward for one image (grid axis = batch)."""

    # Zero the spatially padded buffers; interiors are overwritten below, borders stay 0.
    for buf in (xp1, xp2, xp3, dp1, dp2, dp3):
        buf[...] = jnp.zeros_like(buf)

    # Load the (16,16,3) image into the zero-padded (18,18,8) buffer (spatial pad=1,
    # channel pad 3->8; the extra weight rows are zero so the result is unchanged).
    xp1[1:17, 1:17, 0:3] = x_ref[0]

    def conv(xpad, taps, H, W, w, b, relu):
        """One conv layer as a single im2col matmul. Returns (H*W, Cout_total) f32."""
        Cin = xpad.shape[-1]
        K = len(taps) * Cin
        for t, (dh, dw) in enumerate(taps):
            patch[0:H * W, t * Cin:(t + 1) * Cin] = (
                xpad[dh:dh + H, dw:dw + W, :].reshape(H * W, Cin))
        acc = jnp.dot(patch[0:H * W, 0:K], w[...],
                      preferred_element_type=jnp.float32) + b[...]
        return jnp.maximum(acc, 0.0) if relu else acc

    def pool_into(src, dst, Ho, Wo, r0, c0):
        """Fused 2x2/stride-2 max pool of src into dst[r0:r0+Ho, c0:c0+Wo, :]."""
        p00 = src[pl.ds(0, Ho, stride=2), pl.ds(0, Wo, stride=2), :]
        p01 = src[pl.ds(0, Ho, stride=2), pl.ds(1, Wo, stride=2), :]
        p10 = src[pl.ds(1, Ho, stride=2), pl.ds(0, Wo, stride=2), :]
        p11 = src[pl.ds(1, Ho, stride=2), pl.ds(1, Wo, stride=2), :]
        dst[r0:r0 + Ho, c0:c0 + Wo, :] = jnp.maximum(jnp.maximum(p00, p01),
                                                     jnp.maximum(p10, p11))

    def tconv_into(xpad, H, W, w, b, Cout, dst):
        """ConvTranspose(k3,s2,p1,op1)+ReLU as one matmul (K=4*Cin) producing 4
        phase-packed channel blocks, then depth-to-space into dst via strided stores.
        dst has a zero right/bottom border (it is the next layer's padded input)."""
        y = conv(xpad, _DEC_TAPS, H, W, w, b, True)           # (H*W, 4*Cout)
        for q, (pa, pb) in enumerate(_DEC_TAPS):              # (row parity, col parity)
            dst[pl.ds(pa, H, stride=2), pl.ds(pb, W, stride=2), :] = (
                y[:, q * Cout:(q + 1) * Cout].reshape(H, W, Cout))

    # ---- encoder: [Conv3x3 + ReLU + MaxPool2] x3 ----
    t1[...] = conv(xp1, _ENC_TAPS, 16, 16, w1, b1, True).reshape(16, 16, 32)
    pool_into(t1, xp2, 8, 8, 1, 1)
    t2[...] = conv(xp2, _ENC_TAPS, 8, 8, w2, b2, True).reshape(8, 8, 64)
    pool_into(t2, xp3, 4, 4, 1, 1)
    t3[...] = conv(xp3, _ENC_TAPS, 4, 4, w3, b3, True).reshape(4, 4, 128)
    pool_into(t3, dp1, 2, 2, 0, 0)

    # ---- decoder: [ConvTranspose + ReLU] x2 + final ConvTranspose ----
    tconv_into(dp1, 2, 2, wd1, bd1, 64, dp2)
    tconv_into(dp2, 4, 4, wd2, bd2, 32, dp3)
    # Final layer: keep the phase-packed (64, 4*32) lane-dense layout; depth-to-space,
    # channel slice (32 -> 3) and the NCHW transpose happen on the tiny result in XLA.
    o_ref[0] = conv(dp3, _DEC_TAPS, 8, 8, wd3, bd3, False)


# ------------------------------ parameter packing ------------------------------------

def init_params(key):
    """Deterministic synthetic parameters with the PyTorch module's shapes/init ranges,
    converted to HWIO (convs) / spatially-flipped HWIO (transposed convs)."""
    def uconv(k, cout, cin):            # nn.Conv2d weight (Cout, Cin, 3, 3)
        kw_, kb_ = jax.random.split(k)
        bound = 1.0 / math.sqrt(cin * 9)
        w = jax.random.uniform(kw_, (cout, cin, 3, 3), jnp.float32, -bound, bound)
        b = jax.random.uniform(kb_, (cout,), jnp.float32, -bound, bound)
        return w, b

    def utconv(k, cin, cout):           # nn.ConvTranspose2d weight (Cin, Cout, 3, 3)
        kw_, kb_ = jax.random.split(k)
        bound = 1.0 / math.sqrt(cin * 9)
        w = jax.random.uniform(kw_, (cin, cout, 3, 3), jnp.float32, -bound, bound)
        b = jax.random.uniform(kb_, (cout,), jnp.float32, -bound, bound)
        return w, b

    ks = jax.random.split(key, 6)
    e1w, e1b = uconv(ks[0], 32, 3)
    e2w, e2b = uconv(ks[1], 64, 32)
    e3w, e3b = uconv(ks[2], 128, 64)
    d1w, d1b = utconv(ks[3], 128, 64)
    d2w, d2b = utconv(ks[4], 64, 32)
    d3w, d3b = utconv(ks[5], 32, 3)

    def conv_hwio(w):    # (Cout, Cin, 3, 3) -> (3, 3, Cin, Cout)
        return jnp.transpose(w, (2, 3, 1, 0))

    def tconv_hwio(w):   # (Cin, Cout, 3, 3) -> spatially flipped (3, 3, Cin, Cout)
        return jnp.transpose(w[:, :, ::-1, ::-1], (2, 3, 0, 1))

    return dict(
        e1w=conv_hwio(e1w), e1b=e1b,
        e2w=conv_hwio(e2w), e2b=e2b,
        e3w=conv_hwio(e3w), e3b=e3b,
        d1w=tconv_hwio(d1w), d1b=d1b,
        d2w=tconv_hwio(d2w), d2b=d2b,
        d3w=tconv_hwio(d3w), d3b=d3b,
    )


def pack_params(p):
    """Repack HWIO / flipped-HWIO params into the fused kernel's matmul layouts."""
    def enc_w(w_hwio, cin_pad=None):
        _, _, ci, co = w_hwio.shape
        if cin_pad is not None and cin_pad != ci:
            w_hwio = jnp.pad(w_hwio, ((0, 0), (0, 0), (0, cin_pad - ci), (0, 0)))
            ci = cin_pad
        return w_hwio.reshape(9 * ci, co)          # tap-major, Cin-minor rows

    def dec_w(wf, cout_pad=None):
        # Polyphase block matrix: rows = 4 input-offset blocks (s = 2*dh+dw for
        # X[m+dh, p+dw]); cols = 4 output-phase blocks (q = 2*row_parity+col_parity).
        # Derived from the (lhs_dilation=2, pad=(1,2)) VALID-conv form of the tconv.
        ci, co = wf.shape[2], wf.shape[3]
        cp = co if cout_pad is None else cout_pad
        wb = jnp.zeros((4 * ci, 4 * cp), jnp.float32)

        def put(w, s, q, kh, kw_):
            return w.at[s * ci:(s + 1) * ci, q * cp:q * cp + co].set(wf[kh, kw_])

        wb = put(wb, 0, 0, 1, 1)                              # (even row, even col)
        wb = put(wb, 0, 1, 1, 0); wb = put(wb, 1, 1, 1, 2)    # (even row, odd col)
        wb = put(wb, 0, 2, 0, 1); wb = put(wb, 2, 2, 2, 1)    # (odd row, even col)
        wb = put(wb, 0, 3, 0, 0); wb = put(wb, 1, 3, 0, 2)    # (odd row, odd col)
        wb = put(wb, 2, 3, 2, 0); wb = put(wb, 3, 3, 2, 2)
        return wb

    def dec_b(b, cout_pad=None):
        co = b.shape[0]
        cp = co if cout_pad is None else cout_pad
        blk = jnp.zeros((cp,), jnp.float32).at[:co].set(b)
        return jnp.tile(blk, 4).reshape(1, 4 * cp)

    return (
        enc_w(p["e1w"], CIN_PAD), p["e1b"].reshape(1, -1),
        enc_w(p["e2w"]),          p["e2b"].reshape(1, -1),
        enc_w(p["e3w"]),          p["e3b"].reshape(1, -1),
        dec_w(p["d1w"]),          dec_b(p["d1b"]),
        dec_w(p["d2w"]),          dec_b(p["d2b"]),
        dec_w(p["d3w"], COUT_PAD), dec_b(p["d3b"], COUT_PAD),
    )


# ------------------------------ forward wrappers --------------------------------------

def _const_spec(a):
    nd = a.ndim
    return pl.BlockSpec(a.shape, lambda n: (0,) * nd)   # whole array, fetched once


@jax.jit
def dae_forward(x_nchw, kparams):
    """Pallas forward pass. Input/Output: NCHW float32, like the PyTorch module."""
    N = x_nchw.shape[0]
    x = jnp.transpose(x_nchw, (0, 2, 3, 1)).astype(jnp.float32)   # -> NHWC (N,16,16,3)

    scratch = [
        pltpu.VMEM((256, 576), jnp.float32),          # shared im2col patch buffer
        pltpu.VMEM((18, 18, CIN_PAD), jnp.float32),   # xp1: padded conv1 input
        pltpu.VMEM((10, 10, 32), jnp.float32),        # xp2: padded conv2 input
        pltpu.VMEM((6, 6, 64), jnp.float32),          # xp3: padded conv3 input
        pltpu.VMEM((3, 3, 128), jnp.float32),         # dp1: tconv1 input (pad right/bottom)
        pltpu.VMEM((5, 5, 64), jnp.float32),          # dp2: tconv2 input
        pltpu.VMEM((9, 9, 32), jnp.float32),          # dp3: tconv3 input
        pltpu.VMEM((16, 16, 32), jnp.float32),        # t1: pre-pool conv1 output
        pltpu.VMEM((8, 8, 64), jnp.float32),          # t2
        pltpu.VMEM((4, 4, 128), jnp.float32),         # t3
    ]

    out = pl.pallas_call(
        _dae_kernel,
        out_shape=jax.ShapeDtypeStruct((N, 64, 4 * COUT_PAD), jnp.float32),
        grid=(N,),
        in_specs=[pl.BlockSpec((1, 16, 16, 3), lambda n: (n, 0, 0, 0))]
                 + [_const_spec(a) for a in kparams],
        out_specs=pl.BlockSpec((1, 64, 4 * COUT_PAD), lambda n: (n, 0, 0)),
        scratch_shapes=scratch,
        compiler_params=pltpu.CompilerParams(
            dimension_semantics=("parallel",)),       # megacore sharding on v7x
    )(x, *kparams)

    # Depth-to-space (phase-packed -> spatial), drop channel padding, back to NCHW.
    y = out.reshape(N, 8, 8, 2, 2, COUT_PAD)          # (n, m, p, a, b, c)
    y = jnp.transpose(y, (0, 1, 3, 2, 4, 5))          # (n, m, a, p, b, c)
    y = y.reshape(N, 16, 16, COUT_PAD)[..., :3]       # rows 2m+a, cols 2p+b
    return jnp.transpose(y, (0, 3, 1, 2))             # -> NCHW


def dae_forward_ref(x_nchw, p):
    """Pure-XLA reference with identical semantics (correctness check)."""
    dn = ("NHWC", "HWIO", "NHWC")
    x = jnp.transpose(x_nchw, (0, 2, 3, 1)).astype(jnp.float32)

    def conv(x, w, b, pad, dil):
        return lax.conv_general_dilated(x, w, (1, 1), pad, lhs_dilation=dil,
                                        dimension_numbers=dn) + b

    def pool(x):
        return lax.reduce_window(x, -jnp.inf, lax.max, (1, 2, 2, 1), (1, 2, 2, 1), "VALID")

    x = jnp.maximum(conv(x, p["e1w"], p["e1b"], ((1, 1), (1, 1)), (1, 1)), 0.0); x = pool(x)
    x = jnp.maximum(conv(x, p["e2w"], p["e2b"], ((1, 1), (1, 1)), (1, 1)), 0.0); x = pool(x)
    x = jnp.maximum(conv(x, p["e3w"], p["e3b"], ((1, 1), (1, 1)), (1, 1)), 0.0); x = pool(x)
    x = jnp.maximum(conv(x, p["d1w"], p["d1b"], ((1, 2), (1, 2)), (2, 2)), 0.0)
    x = jnp.maximum(conv(x, p["d2w"], p["d2b"], ((1, 2), (1, 2)), (2, 2)), 0.0)
    x = conv(x, p["d3w"], p["d3b"], ((1, 2), (1, 2)), (2, 2))
    return jnp.transpose(x, (0, 3, 1, 2))


if __name__ == "__main__":
    key = jax.random.PRNGKey(0)
    kx, kp = jax.random.split(key)
    x = jax.random.uniform(kx, (2, 3, 16, 16), jnp.float32)   # NCHW input, 3 channels
    params = init_params(kp)
    kparams = pack_params(params)

    y = dae_forward(x, kparams)
    y = jax.block_until_ready(y)
    assert y.shape == (2, 3, 16, 16), y.shape
    assert y.dtype == jnp.float32

    y_ref = dae_forward_ref(x, params)
    err = float(jnp.max(jnp.abs(y - y_ref)))
    # Tolerance covers XLA/Mosaic's default bf16-pass f32 matmul precision plus the
    # different (im2col vs direct conv) accumulation order; exact f32 would be ~1e-5.
    assert err < 2e-2, f"max abs diff vs XLA reference: {err}"

    print("KERNEL_OK")
</pallas_src>

<mosaic_0001>
module attributes {stable_mosaic.version = 11 : i64} {
  func.func @_dae_kernel(%arg0: i32, %arg1: memref<1x16x16x3xf32, #tpu.memory_space<vmem>>, %arg2: memref<72x32xf32, #tpu.memory_space<vmem>>, %arg3: memref<1x32xf32, #tpu.memory_space<vmem>>, %arg4: memref<288x64xf32, #tpu.memory_space<vmem>>, %arg5: memref<1x64xf32, #tpu.memory_space<vmem>>, %arg6: memref<576x128xf32, #tpu.memory_space<vmem>>, %arg7: memref<1x128xf32, #tpu.memory_space<vmem>>, %arg8: memref<512x256xf32, #tpu.memory_space<vmem>>, %arg9: memref<1x256xf32, #tpu.memory_space<vmem>>, %arg10: memref<256x128xf32, #tpu.memory_space<vmem>>, %arg11: memref<1x128xf32, #tpu.memory_space<vmem>>, %arg12: memref<128x128xf32, #tpu.memory_space<vmem>>, %arg13: memref<1x128xf32, #tpu.memory_space<vmem>>, %arg14: memref<1x64x128xf32, #tpu.memory_space<vmem>>, %arg15: memref<256x576xf32, #tpu.memory_space<vmem>>, %arg16: memref<18x18x8xf32, #tpu.memory_space<vmem>>, %arg17: memref<10x10x32xf32, #tpu.memory_space<vmem>>, %arg18: memref<6x6x64xf32, #tpu.memory_space<vmem>>, %arg19: memref<3x3x128xf32, #tpu.memory_space<vmem>>, %arg20: memref<5x5x64xf32, #tpu.memory_space<vmem>>, %arg21: memref<9x9x32xf32, #tpu.memory_space<vmem>>, %arg22: memref<16x16x32xf32, #tpu.memory_space<vmem>>, %arg23: memref<8x8x64xf32, #tpu.memory_space<vmem>>, %arg24: memref<4x4x128xf32, #tpu.memory_space<vmem>>) attributes {dimension_semantics = [#tpu.dimension_semantics<parallel>], iteration_bounds = array<i64: 2>, scalar_prefetch = 0 : i64, scratch_operands = 10 : i64, tpu.core_type = #tpu.core_type<tc>, window_params = [{transform_indices = @transform_0, window_bounds = array<i64: 1, 16, 16, 3>}, {pipeline_mode = #tpu.pipeline_mode<synchronous>, transform_indices = @transform_1, window_bounds = array<i64: 72, 32>}, {pipeline_mode = #tpu.pipeline_mode<synchronous>, transform_indices = @transform_2, window_bounds = array<i64: 1, 32>}, {pipeline_mode = #tpu.pipeline_mode<synchronous>, transform_indices = @transform_3, window_bounds = array<i64: 288, 64>}, {pipeline_mode = #tpu.pipeline_mode<synchronous>, transform_indices = @transform_4, window_bounds = array<i64: 1, 64>}, {pipeline_mode = #tpu.pipeline_mode<synchronous>, transform_indices = @transform_5, window_bounds = array<i64: 576, 128>}, {pipeline_mode = #tpu.pipeline_mode<synchronous>, transform_indices = @transform_6, window_bounds = array<i64: 1, 128>}, {pipeline_mode = #tpu.pipeline_mode<synchronous>, transform_indices = @transform_7, window_bounds = array<i64: 512, 256>}, {pipeline_mode = #tpu.pipeline_mode<synchronous>, transform_indices = @transform_8, window_bounds = array<i64: 1, 256>}, {pipeline_mode = #tpu.pipeline_mode<synchronous>, transform_indices = @transform_9, window_bounds = array<i64: 256, 128>}, {pipeline_mode = #tpu.pipeline_mode<synchronous>, transform_indices = @transform_10, window_bounds = array<i64: 1, 128>}, {pipeline_mode = #tpu.pipeline_mode<synchronous>, transform_indices = @transform_11, window_bounds = array<i64: 128, 128>}, {pipeline_mode = #tpu.pipeline_mode<synchronous>, transform_indices = @transform_12, window_bounds = array<i64: 1, 128>}, {transform_indices = @transform_13, window_bounds = array<i64: 1, 64, 128>}]} {
    %cst = arith.constant 0.000000e+00 : f32
    %0 = vector.broadcast %cst : f32 to vector<18x18x8xf32>
    %c0 = arith.constant 0 : index
    %c0_0 = arith.constant 0 : index
    %c0_1 = arith.constant 0 : index
    %1 = vector.load %arg16[%c0, %c0_0, %c0_1] : memref<18x18x8xf32, #tpu.memory_space<vmem>>, vector<18x18x8xf32>
    tpu.vector_store %arg16[%c0, %c0_0, %c0_1], %0 {strides = array<i32>} : memref<18x18x8xf32, #tpu.memory_space<vmem>>, vector<18x18x8xf32>,
    %cst_2 = arith.constant 0.000000e+00 : f32
    %2 = vector.broadcast %cst_2 : f32 to vector<10x10x32xf32>
    %c0_3 = arith.constant 0 : index
    %c0_4 = arith.constant 0 : index
    %c0_5 = arith.constant 0 : index
    %3 = vector.load %arg17[%c0_3, %c0_4, %c0_5] : memref<10x10x32xf32, #tpu.memory_space<vmem>>, vector<10x10x32xf32>
    tpu.vector_store %arg17[%c0_3, %c0_4, %c0_5], %2 {strides = array<i32>} : memref<10x10x32xf32, #tpu.memory_space<vmem>>, vector<10x10x32xf32>,
    %cst_6 = arith.constant 0.000000e+00 : f32
    %4 = vector.broadcast %cst_6 : f32 to vector<6x6x64xf32>
    %c0_7 = arith.constant 0 : index
    %c0_8 = arith.constant 0 : index
    %c0_9 = arith.constant 0 : index
    %5 = vector.load %arg18[%c0_7, %c0_8, %c0_9] : memref<6x6x64xf32, #tpu.memory_space<vmem>>, vector<6x6x64xf32>
    tpu.vector_store %arg18[%c0_7, %c0_8, %c0_9], %4 {strides = array<i32>} : memref<6x6x64xf32, #tpu.memory_space<vmem>>, vector<6x6x64xf32>,
    %cst_10 = arith.constant 0.000000e+00 : f32
    %6 = vector.broadcast %cst_10 : f32 to vector<3x3x128xf32>
    %c0_11 = arith.constant 0 : index
    %c0_12 = arith.constant 0 : index
    %c0_13 = arith.constant 0 : index
    %7 = vector.load %arg19[%c0_11, %c0_12, %c0_13] : memref<3x3x128xf32, #tpu.memory_space<vmem>>, vector<3x3x128xf32>
    tpu.vector_store %arg19[%c0_11, %c0_12, %c0_13], %6 {strides = array<i32>} : memref<3x3x128xf32, #tpu.memory_space<vmem>>, vector<3x3x128xf32>,
    %cst_14 = arith.constant 0.000000e+00 : f32
    %8 = vector.broadcast %cst_14 : f32 to vector<5x5x64xf32>
    %c0_15 = arith.constant 0 : index
    %c0_16 = arith.constant 0 : index
    %c0_17 = arith.constant 0 : index
    %9 = vector.load %arg20[%c0_15, %c0_16, %c0_17] : memref<5x5x64xf32, #tpu.memory_space<vmem>>, vector<5x5x64xf32>
    tpu.vector_store %arg20[%c0_15, %c0_16, %c0_17], %8 {strides = array<i32>} : memref<5x5x64xf32, #tpu.memory_space<vmem>>, vector<5x5x64xf32>,
    %cst_18 = arith.constant 0.000000e+00 : f32
    %10 = vector.broadcast %cst_18 : f32 to vector<9x9x32xf32>
    %c0_19 = arith.constant 0 : index
    %c0_20 = arith.constant 0 : index
    %c0_21 = arith.constant 0 : index
    %11 = vector.load %arg21[%c0_19, %c0_20, %c0_21] : memref<9x9x32xf32, #tpu.memory_space<vmem>>, vector<9x9x32xf32>
    tpu.vector_store %arg21[%c0_19, %c0_20, %c0_21], %10 {strides = array<i32>} : memref<9x9x32xf32, #tpu.memory_space<vmem>>, vector<9x9x32xf32>,
    %c0_22 = arith.constant 0 : index
    %c0_23 = arith.constant 0 : index
    %c0_24 = arith.constant 0 : index
    %c0_25 = arith.constant 0 : index
    %12 = vector.load %arg1[%c0_22, %c0_23, %c0_24, %c0_25] : memref<1x16x16x3xf32, #tpu.memory_space<vmem>>, vector<1x16x16x3xf32>
    %13 = vector.shape_cast %12 : vector<1x16x16x3xf32> to vector<16x16x3xf32>
    %c1 = arith.constant 1 : index
    %c1_26 = arith.constant 1 : index
    %c0_27 = arith.constant 0 : index
    %14 = vector.load %arg16[%c1, %c1_26, %c0_27] : memref<18x18x8xf32, #tpu.memory_space<vmem>>, vector<16x16x3xf32>
    tpu.vector_store %arg16[%c1, %c1_26, %c0_27], %13 {strides = array<i32>} : memref<18x18x8xf32, #tpu.memory_space<vmem>>, vector<16x16x3xf32>,
    %c0_28 = arith.constant 0 : index
    %c0_29 = arith.constant 0 : index
    %c0_30 = arith.constant 0 : index
    %15 = vector.load %arg16[%c0_28, %c0_29, %c0_30] : memref<18x18x8xf32, #tpu.memory_space<vmem>>, vector<16x16x8xf32>
    %16 = vector.shape_cast %15 : vector<16x16x8xf32> to vector<256x8xf32>
    %c0_31 = arith.constant 0 : index
    %c0_32 = arith.constant 0 : index
    %17 = vector.load %arg15[%c0_31, %c0_32] : memref<256x576xf32, #tpu.memory_space<vmem>>, vector<256x8xf32>
    tpu.vector_store %arg15[%c0_31, %c0_32], %16 {strides = array<i32>} : memref<256x576xf32, #tpu.memory_space<vmem>>, vector<256x8xf32>,
    %c0_33 = arith.constant 0 : index
    %c1_34 = arith.constant 1 : index
    %c0_35 = arith.constant 0 : index
    %18 = vector.load %arg16[%c0_33, %c1_34, %c0_35] : memref<18x18x8xf32, #tpu.memory_space<vmem>>, vector<16x16x8xf32>
    %19 = vector.shape_cast %18 : vector<16x16x8xf32> to vector<256x8xf32>
    %c0_36 = arith.constant 0 : index
    %c8 = arith.constant 8 : index
    %20 = vector.load %arg15[%c0_36, %c8] : memref<256x576xf32, #tpu.memory_space<vmem>>, vector<256x8xf32>
    tpu.vector_store %arg15[%c0_36, %c8], %19 {strides = array<i32>} : memref<256x576xf32, #tpu.memory_space<vmem>>, vector<256x8xf32>,
    %c0_37 = arith.constant 0 : index
    %c2 = arith.constant 2 : index
    %c0_38 = arith.constant 0 : index
    %21 = vector.load %arg16[%c0_37, %c2, %c0_38] : memref<18x18x8xf32, #tpu.memory_space<vmem>>, vector<16x16x8xf32>
    %22 = vector.shape_cast %21 : vector<16x16x8xf32> to vector<256x8xf32>
    %c0_39 = arith.constant 0 : index
    %c16 = arith.constant 16 : index
    %23 = vector.load %arg15[%c0_39, %c16] : memref<256x576xf32, #tpu.memory_space<vmem>>, vector<256x8xf32>
    tpu.vector_store %arg15[%c0_39, %c16], %22 {strides = array<i32>} : memref<256x576xf32, #tpu.memory_space<vmem>>, vector<256x8xf32>,
    %c1_40 = arith.constant 1 : index
    %c0_41 = arith.constant 0 : index
    %c0_42 = arith.constant 0 : index
    %24 = vector.load %arg16[%c1_40, %c0_41, %c0_42] : memref<18x18x8xf32, #tpu.memory_space<vmem>>, vector<16x16x8xf32>
    %25 = vector.shape_cast %24 : vector<16x16x8xf32> to vector<256x8xf32>
    %c0_43 = arith.constant 0 : index
    %c24 = arith.constant 24 : index
    %26 = vector.load %arg15[%c0_43, %c24] : memref<256x576xf32, #tpu.memory_space<vmem>>, vector<256x8xf32>
    tpu.vector_store %arg15[%c0_43, %c24], %25 {strides = array<i32>} : memref<256x576xf32, #tpu.memory_space<vmem>>, vector<256x8xf32>,
    %c1_44 = arith.constant 1 : index
    %c1_45 = arith.constant 1 : index
    %c0_46 = arith.constant 0 : index
    %27 = vector.load %arg16[%c1_44, %c1_45, %c0_46] : memref<18x18x8xf32, #tpu.memory_space<vmem>>, vector<16x16x8xf32>
    %28 = vector.shape_cast %27 : vector<16x16x8xf32> to vector<256x8xf32>
    %c0_47 = arith.constant 0 : index
    %c32 = arith.constant 32 : index
    %29 = vector.load %arg15[%c0_47, %c32] : memref<256x576xf32, #tpu.memory_space<vmem>>, vector<256x8xf32>
    tpu.vector_store %arg15[%c0_47, %c32], %28 {strides = array<i32>} : memref<256x576xf32, #tpu.memory_space<vmem>>, vector<256x8xf32>,
    %c1_48 = arith.constant 1 : index
    %c2_49 = arith.constant 2 : index
    %c0_50 = arith.constant 0 : index
    %30 = vector.load %arg16[%c1_48, %c2_49, %c0_50] : memref<18x18x8xf32, #tpu.memory_space<vmem>>, vector<16x16x8xf32>
    %31 = vector.shape_cast %30 : vector<16x16x8xf32> to vector<256x8xf32>
    %c0_51 = arith.constant 0 : index
    %c40 = arith.constant 40 : index
    %32 = vector.load %arg15[%c0_51, %c40] : memref<256x576xf32, #tpu.memory_space<vmem>>, vector<256x8xf32>
    tpu.vector_store %arg15[%c0_51, %c40], %31 {strides = array<i32>} : memref<256x576xf32, #tpu.memory_space<vmem>>, vector<256x8xf32>,
    %c2_52 = arith.constant 2 : index
    %c0_53 = arith.constant 0 : index
    %c0_54 = arith.constant 0 : index
    %33 = vector.load %arg16[%c2_52, %c0_53, %c0_54] : memref<18x18x8xf32, #tpu.memory_space<vmem>>, vector<16x16x8xf32>
    %34 = vector.shape_cast %33 : vector<16x16x8xf32> to vector<256x8xf32>
    %c0_55 = arith.constant 0 : index
    %c48 = arith.constant 48 : index
    %35 = vector.load %arg15[%c0_55, %c48] : memref<256x576xf32, #tpu.memory_space<vmem>>, vector<256x8xf32>
    tpu.vector_store %arg15[%c0_55, %c48], %34 {strides = array<i32>} : memref<256x576xf32, #tpu.memory_space<vmem>>, vector<256x8xf32>,
    %c2_56 = arith.constant 2 : index
    %c1_57 = arith.constant 1 : index
    %c0_58 = arith.constant 0 : index
    %36 = vector.load %arg16[%c2_56, %c1_57, %c0_58] : memref<18x18x8xf32, #tpu.memory_space<vmem>>, vector<16x16x8xf32>
    %37 = vector.shape_cast %36 : vector<16x16x8xf32> to vector<256x8xf32>
    %c0_59 = arith.constant 0 : index
    %c56 = arith.constant 56 : index
    %38 = vector.load %arg15[%c0_59, %c56] : memref<256x576xf32, #tpu.memory_space<vmem>>, vector<256x8xf32>
    tpu.vector_store %arg15[%c0_59, %c56], %37 {strides = array<i32>} : memref<256x576xf32, #tpu.memory_space<vmem>>, vector<256x8xf32>,
    %c2_60 = arith.constant 2 : index
    %c2_61 = arith.constant 2 : index
    %c0_62 = arith.constant 0 : index
    %39 = vector.load %arg16[%c2_60, %c2_61, %c0_62] : memref<18x18x8xf32, #tpu.memory_space<vmem>>, vector<16x16x8xf32>
    %40 = vector.shape_cast %39 : vector<16x16x8xf32> to vector<256x8xf32>
    %c0_63 = arith.constant 0 : index
    %c64 = arith.constant 64 : index
    %41 = vector.load %arg15[%c0_63, %c64] : memref<256x576xf32, #tpu.memory_space<vmem>>, vector<256x8xf32>
    tpu.vector_store %arg15[%c0_63, %c64], %40 {strides = array<i32>} : memref<256x576xf32, #tpu.memory_space<vmem>>, vector<256x8xf32>,
    %c0_64 = arith.constant 0 : index
    %c0_65 = arith.constant 0 : index
    %42 = vector.load %arg15[%c0_64, %c0_65] : memref<256x576xf32, #tpu.memory_space<vmem>>, vector<256x72xf32>
    %c0_66 = arith.constant 0 : index
    %c0_67 = arith.constant 0 : index
    %43 = vector.load %arg2[%c0_66, %c0_67] : memref<72x32xf32, #tpu.memory_space<vmem>>, vector<72x32xf32>
    %cst_68 = arith.constant dense<0.000000e+00> : vector<256x32xf32>
    %44 = tpu.matmul %42, %43, %cst_68 {dimension_numbers = #tpu.dot_dimension_numbers<[1], [0], [0], [1], [0, 0, 1, 1], [], []>} : vector<256x72xf32>, vector<72x32xf32>, vector<256x32xf32> -> vector<256x32xf32>
    %c0_69 = arith.constant 0 : index
    %c0_70 = arith.constant 0 : index
    %45 = vector.load %arg3[%c0_69, %c0_70] : memref<1x32xf32, #tpu.memory_space<vmem>>, vector<1x32xf32>
    %46 = vector.broadcast %45 : vector<1x32xf32> to vector<256x32xf32>
    %47 = arith.addf %44, %46 : vector<256x32xf32>
    %cst_71 = arith.constant 0.000000e+00 : f32
    %48 = vector.broadcast %cst_71 : f32 to vector<256x32xf32>
    %49 = arith.maximumf %47, %48 : vector<256x32xf32>
    %50 = vector.shape_cast %49 : vector<256x32xf32> to vector<16x16x32xf32>
    %c0_72 = arith.constant 0 : index
    %c0_73 = arith.constant 0 : index
    %c0_74 = arith.constant 0 : index
    %51 = vector.load %arg22[%c0_72, %c0_73, %c0_74] : memref<16x16x32xf32, #tpu.memory_space<vmem>>, vector<16x16x32xf32>
    tpu.vector_store %arg22[%c0_72, %c0_73, %c0_74], %50 {strides = array<i32>} : memref<16x16x32xf32, #tpu.memory_space<vmem>>, vector<16x16x32xf32>,
    %c0_75 = arith.constant 0 : index
    %c0_76 = arith.constant 0 : index
    %c0_77 = arith.constant 0 : index
    %52 = tpu.strided_load %arg22[%c0_75, %c0_76, %c0_77] {strides = array<i32: 2, 2, 1>} : memref<16x16x32xf32, #tpu.memory_space<vmem>>, vector<8x8x32xf32>
    %c0_78 = arith.constant 0 : index
    %c1_79 = arith.constant 1 : index
    %c0_80 = arith.constant 0 : index
    %53 = tpu.strided_load %arg22[%c0_78, %c1_79, %c0_80] {strides = array<i32: 2, 2, 1>} : memref<16x16x32xf32, #tpu.memory_space<vmem>>, vector<8x8x32xf32>
    %c1_81 = arith.constant 1 : index
    %c0_82 = arith.constant 0 : index
    %c0_83 = arith.constant 0 : index
    %54 = tpu.strided_load %arg22[%c1_81, %c0_82, %c0_83] {strides = array<i32: 2, 2, 1>} : memref<16x16x32xf32, #tpu.memory_space<vmem>>, vector<8x8x32xf32>
    %c1_84 = arith.constant 1 : index
    %c1_85 = arith.constant 1 : index
    %c0_86 = arith.constant 0 : index
    %55 = tpu.strided_load %arg22[%c1_84, %c1_85, %c0_86] {strides = array<i32: 2, 2, 1>} : memref<16x16x32xf32, #tpu.memory_space<vmem>>, vector<8x8x32xf32>
    %56 = arith.maximumf %52, %53 : vector<8x8x32xf32>
    %57 = arith.maximumf %54, %55 : vector<8x8x32xf32>
    %58 = arith.maximumf %56, %57 : vector<8x8x32xf32>
    %c1_87 = arith.constant 1 : index
    %c1_88 = arith.constant 1 : index
    %c0_89 = arith.constant 0 : index
    %59 = vector.load %arg17[%c1_87, %c1_88, %c0_89] : memref<10x10x32xf32, #tpu.memory_space<vmem>>, vector<8x8x32xf32>
    tpu.vector_store %arg17[%c1_87, %c1_88, %c0_89], %58 {strides = array<i32>} : memref<10x10x32xf32, #tpu.memory_space<vmem>>, vector<8x8x32xf32>,
    %c0_90 = arith.constant 0 : index
    %c0_91 = arith.constant 0 : index
    %c0_92 = arith.constant 0 : index
    %60 = vector.load %arg17[%c0_90, %c0_91, %c0_92] : memref<10x10x32xf32, #tpu.memory_space<vmem>>, vector<8x8x32xf32>
    %61 = vector.shape_cast %60 : vector<8x8x32xf32> to vector<64x32xf32>
    %c0_93 = arith.constant 0 : index
    %c0_94 = arith.constant 0 : index
    %62 = vector.load %arg15[%c0_93, %c0_94] : memref<256x576xf32, #tpu.memory_space<vmem>>, vector<64x32xf32>
    tpu.vector_store %arg15[%c0_93, %c0_94], %61 {strides = array<i32>} : memref<256x576xf32, #tpu.memory_space<vmem>>, vector<64x32xf32>,
    %c0_95 = arith.constant 0 : index
    %c1_96 = arith.constant 1 : index
    %c0_97 = arith.constant 0 : index
    %63 = vector.load %arg17[%c0_95, %c1_96, %c0_97] : memref<10x10x32xf32, #tpu.memory_space<vmem>>, vector<8x8x32xf32>
    %64 = vector.shape_cast %63 : vector<8x8x32xf32> to vector<64x32xf32>
    %c0_98 = arith.constant 0 : index
    %c32_99 = arith.constant 32 : index
    %65 = vector.load %arg15[%c0_98, %c32_99] : memref<256x576xf32, #tpu.memory_space<vmem>>, vector<64x32xf32>
    tpu.vector_store %arg15[%c0_98, %c32_99], %64 {strides = array<i32>} : memref<256x576xf32, #tpu.memory_space<vmem>>, vector<64x32xf32>,
    %c0_100 = arith.constant 0 : index
    %c2_101 = arith.constant 2 : index
    %c0_102 = arith.constant 0 : index
    %66 = vector.load %arg17[%c0_100, %c2_101, %c0_102] : memref<10x10x32xf32, #tpu.memory_space<vmem>>, vector<8x8x32xf32>
    %67 = vector.shape_cast %66 : vector<8x8x32xf32> to vector<64x32xf32>
    %c0_103 = arith.constant 0 : index
    %c64_104 = arith.constant 64 : index
    %68 = vector.load %arg15[%c0_103, %c64_104] : memref<256x576xf32, #tpu.memory_space<vmem>>, vector<64x32xf32>
    tpu.vector_store %arg15[%c0_103, %c64_104], %67 {strides = array<i32>} : memref<256x576xf32, #tpu.memory_space<vmem>>, vector<64x32xf32>,
    %c1_105 = arith.constant 1 : index
    %c0_106 = arith.constant 0 : index
    %c0_107 = arith.constant 0 : index
    %69 = vector.load %arg17[%c1_105, %c0_106, %c0_107] : memref<10x10x32xf32, #tpu.memory_space<vmem>>, vector<8x8x32xf32>
    %70 = vector.shape_cast %69 : vector<8x8x32xf32> to vector<64x32xf32>
    %c0_108 = arith.constant 0 : index
    %c96 = arith.constant 96 : index
    %71 = vector.load %arg15[%c0_108, %c96] : memref<256x576xf32, #tpu.memory_space<vmem>>, vector<64x32xf32>
    tpu.vector_store %arg15[%c0_108, %c96], %70 {strides = array<i32>} : memref<256x576xf32, #tpu.memory_space<vmem>>, vector<64x32xf32>,
    %c1_109 = arith.constant 1 : index
    %c1_110 = arith.constant 1 : index
    %c0_111 = arith.constant 0 : index
    %72 = vector.load %arg17[%c1_109, %c1_110, %c0_111] : memref<10x10x32xf32, #tpu.memory_space<vmem>>, vector<8x8x32xf32>
    %73 = vector.shape_cast %72 : vector<8x8x32xf32> to vector<64x32xf32>
    %c0_112 = arith.constant 0 : index
    %c128 = arith.constant 128 : index
    %74 = vector.load %arg15[%c0_112, %c128] : memref<256x576xf32, #tpu.memory_space<vmem>>, vector<64x32xf32>
    tpu.vector_store %arg15[%c0_112, %c128], %73 {strides = array<i32>} : memref<256x576xf32, #tpu.memory_space<vmem>>, vector<64x32xf32>,
    %c1_113 = arith.constant 1 : index
    %c2_114 = arith.constant 2 : index
    %c0_115 = arith.constant 0 : index
    %75 = vector.load %arg17[%c1_113, %c2_114, %c0_115] : memref<10x10x32xf32, #tpu.memory_space<vmem>>, vector<8x8x32xf32>
    %76 = vector.shape_cast %75 : vector<8x8x32xf32> to vector<64x32xf32>
    %c0_116 = arith.constant 0 : index
    %c160 = arith.constant 160 : index
    %77 = vector.load %arg15[%c0_116, %c160] : memref<256x576xf32, #tpu.memory_space<vmem>>, vector<64x32xf32>
    tpu.vector_store %arg15[%c0_116, %c160], %76 {strides = array<i32>} : memref<256x576xf32, #tpu.memory_space<vmem>>, vector<64x32xf32>,
    %c2_117 = arith.constant 2 : index
    %c0_118 = arith.constant 0 : index
    %c0_119 = arith.constant 0 : index
    %78 = vector.load %arg17[%c2_117, %c0_118, %c0_119] : memref<10x10x32xf32, #tpu.memory_space<vmem>>, vector<8x8x32xf32>
    %79 = vector.shape_cast %78 : vector<8x8x32xf32> to vector<64x32xf32>
    %c0_120 = arith.constant 0 : index
    %c192 = arith.constant 192 : index
    %80 = vector.load %arg15[%c0_120, %c192] : memref<256x576xf32, #tpu.memory_space<vmem>>, vector<64x32xf32>
    tpu.vector_store %arg15[%c0_120, %c192], %79 {strides = array<i32>} : memref<256x576xf32, #tpu.memory_space<vmem>>, vector<64x32xf32>,
    %c2_121 = arith.constant 2 : index
    %c1_122 = arith.constant 1 : index
    %c0_123 = arith.constant 0 : index
    %81 = vector.load %arg17[%c2_121, %c1_122, %c0_123] : memref<10x10x32xf32, #tpu.memory_space<vmem>>, vector<8x8x32xf32>
    %82 = vector.shape_cast %81 : vector<8x8x32xf32> to vector<64x32xf32>
    %c0_124 = arith.constant 0 : index
    %c224 = arith.constant 224 : index
    %83 = vector.load %arg15[%c0_124, %c224] : memref<256x576xf32, #tpu.memory_space<vmem>>, vector<64x32xf32>
    tpu.vector_store %arg15[%c0_124, %c224], %82 {strides = array<i32>} : memref<256x576xf32, #tpu.memory_space<vmem>>, vector<64x32xf32>,
    %c2_125 = arith.constant 2 : index
    %c2_126 = arith.constant 2 : index
    %c0_127 = arith.constant 0 : index
    %84 = vector.load %arg17[%c2_125, %c2_126, %c0_127] : memref<10x10x32xf32, #tpu.memory_space<vmem>>, vector<8x8x32xf32>
    %85 = vector.shape_cast %84 : vector<8x8x32xf32> to vector<64x32xf32>
    %c0_128 = arith.constant 0 : index
    %c256 = arith.constant 256 : index
    %86 = vector.load %arg15[%c0_128, %c256] : memref<256x576xf32, #tpu.memory_space<vmem>>, vector<64x32xf32>
    tpu.vector_store %arg15[%c0_128, %c256], %85 {strides = array<i32>} : memref<256x576xf32, #tpu.memory_space<vmem>>, vector<64x32xf32>,
    %c0_129 = arith.constant 0 : index
    %c0_130 = arith.constant 0 : index
    %87 = vector.load %arg15[%c0_129, %c0_130] : memref<256x576xf32, #tpu.memory_space<vmem>>, vector<64x288xf32>
    %c0_131 = arith.constant 0 : index
    %c0_132 = arith.constant 0 : index
    %88 = vector.load %arg4[%c0_131, %c0_132] : memref<288x64xf32, #tpu.memory_space<vmem>>, vector<288x64xf32>
    %cst_133 = arith.constant dense<0.000000e+00> : vector<64x64xf32>
    %89 = tpu.matmul %87, %88, %cst_133 {dimension_numbers = #tpu.dot_dimension_numbers<[1], [0], [0], [1], [0, 0, 1, 1], [], []>} : vector<64x288xf32>, vector<288x64xf32>, vector<64x64xf32> -> vector<64x64xf32>
    %c0_134 = arith.constant 0 : index
    %c0_135 = arith.constant 0 : index
    %90 = vector.load %arg5[%c0_134, %c0_135] : memref<1x64xf32, #tpu.memory_space<vmem>>, vector<1x64xf32>
    %91 = vector.broadcast %90 : vector<1x64xf32> to vector<64x64xf32>
    %92 = arith.addf %89, %91 : vector<64x64xf32>
    %cst_136 = arith.constant 0.000000e+00 : f32
    %93 = vector.broadcast %cst_136 : f32 to vector<64x64xf32>
    %94 = arith.maximumf %92, %93 : vector<64x64xf32>
    %95 = vector.shape_cast %94 : vector<64x64xf32> to vector<8x8x64xf32>
    %c0_137 = arith.constant 0 : index
    %c0_138 = arith.constant 0 : index
    %c0_139 = arith.constant 0 : index
    %96 = vector.load %arg23[%c0_137, %c0_138, %c0_139] : memref<8x8x64xf32, #tpu.memory_space<vmem>>, vector<8x8x64xf32>
    tpu.vector_store %arg23[%c0_137, %c0_138, %c0_139], %95 {strides = array<i32>} : memref<8x8x64xf32, #tpu.memory_space<vmem>>, vector<8x8x64xf32>,
    %c0_140 = arith.constant 0 : index
    %c0_141 = arith.constant 0 : index
    %c0_142 = arith.constant 0 : index
    %97 = tpu.strided_load %arg23[%c0_140, %c0_141, %c0_142] {strides = array<i32: 2, 2, 1>} : memref<8x8x64xf32, #tpu.memory_space<vmem>>, vector<4x4x64xf32>
    %c0_143 = arith.constant 0 : index
    %c1_144 = arith.constant 1 : index
    %c0_145 = arith.constant 0 : index
    %98 = tpu.strided_load %arg23[%c0_143, %c1_144, %c0_145] {strides = array<i32: 2, 2, 1>} : memref<8x8x64xf32, #tpu.memory_space<vmem>>, vector<4x4x64xf32>
    %c1_146 = arith.constant 1 : index
    %c0_147 = arith.constant 0 : index
    %c0_148 = arith.constant 0 : index
    %99 = tpu.strided_load %arg23[%c1_146, %c0_147, %c0_148] {strides = array<i32: 2, 2, 1>} : memref<8x8x64xf32, #tpu.memory_space<vmem>>, vector<4x4x64xf32>
    %c1_149 = arith.constant 1 : index
    %c1_150 = arith.constant 1 : index
    %c0_151 = arith.constant 0 : index
    %100 = tpu.strided_load %arg23[%c1_149, %c1_150, %c0_151] {strides = array<i32: 2, 2, 1>} : memref<8x8x64xf32, #tpu.memory_space<vmem>>, vector<4x4x64xf32>
    %101 = arith.maximumf %97, %98 : vector<4x4x64xf32>
    %102 = arith.maximumf %99, %100 : vector<4x4x64xf32>
    %103 = arith.maximumf %101, %102 : vector<4x4x64xf32>
    %c1_152 = arith.constant 1 : index
    %c1_153 = arith.constant 1 : index
    %c0_154 = arith.constant 0 : index
    %104 = vector.load %arg18[%c1_152, %c1_153, %c0_154] : memref<6x6x64xf32, #tpu.memory_space<vmem>>, vector<4x4x64xf32>
    tpu.vector_store %arg18[%c1_152, %c1_153, %c0_154], %103 {strides = array<i32>} : memref<6x6x64xf32, #tpu.memory_space<vmem>>, vector<4x4x64xf32>,
    %c0_155 = arith.constant 0 : index
    %c0_156 = arith.constant 0 : index
    %c0_157 = arith.constant 0 : index
    %105 = vector.load %arg18[%c0_155, %c0_156, %c0_157] : memref<6x6x64xf32, #tpu.memory_space<vmem>>, vector<4x4x64xf32>
    %106 = vector.shape_cast %105 : vector<4x4x64xf32> to vector<16x64xf32>
    %c0_158 = arith.constant 0 : index
    %c0_159 = arith.constant 0 : index
    %107 = vector.load %arg15[%c0_158, %c0_159] : memref<256x576xf32, #tpu.memory_space<vmem>>, vector<16x64xf32>
    tpu.vector_store %arg15[%c0_158, %c0_159], %106 {strides = array<i32>} : memref<256x576xf32, #tpu.memory_space<vmem>>, vector<16x64xf32>,
    %c0_160 = arith.constant 0 : index
    %c1_161 = arith.constant 1 : index
    %c0_162 = arith.constant 0 : index
    %108 = vector.load %arg18[%c0_160, %c1_161, %c0_162] : memref<6x6x64xf32, #tpu.memory_space<vmem>>, vector<4x4x64xf32>
    %109 = vector.shape_cast %108 : vector<4x4x64xf32> to vector<16x64xf32>
    %c0_163 = arith.constant 0 : index
    %c64_164 = arith.constant 64 : index
    %110 = vector.load %arg15[%c0_163, %c64_164] : memref<256x576xf32, #tpu.memory_space<vmem>>, vector<16x64xf32>
    tpu.vector_store %arg15[%c0_163, %c64_164], %109 {strides = array<i32>} : memref<256x576xf32, #tpu.memory_space<vmem>>, vector<16x64xf32>,
    %c0_165 = arith.constant 0 : index
    %c2_166 = arith.constant 2 : index
    %c0_167 = arith.constant 0 : index
    %111 = vector.load %arg18[%c0_165, %c2_166, %c0_167] : memref<6x6x64xf32, #tpu.memory_space<vmem>>, vector<4x4x64xf32>
    %112 = vector.shape_cast %111 : vector<4x4x64xf32> to vector<16x64xf32>
    %c0_168 = arith.constant 0 : index
    %c128_169 = arith.constant 128 : index
    %113 = vector.load %arg15[%c0_168, %c128_169] : memref<256x576xf32, #tpu.memory_space<vmem>>, vector<16x64xf32>
    tpu.vector_store %arg15[%c0_168, %c128_169], %112 {strides = array<i32>} : memref<256x576xf32, #tpu.memory_space<vmem>>, vector<16x64xf32>,
    %c1_170 = arith.constant 1 : index
    %c0_171 = arith.constant 0 : index
    %c0_172 = arith.constant 0 : index
    %114 = vector.load %arg18[%c1_170, %c0_171, %c0_172] : memref<6x6x64xf32, #tpu.memory_space<vmem>>, vector<4x4x64xf32>
    %115 = vector.shape_cast %114 : vector<4x4x64xf32> to vector<16x64xf32>
    %c0_173 = arith.constant 0 : index
    %c192_174 = arith.constant 192 : index
    %116 = vector.load %arg15[%c0_173, %c192_174] : memref<256x576xf32, #tpu.memory_space<vmem>>, vector<16x64xf32>
    tpu.vector_store %arg15[%c0_173, %c192_174], %115 {strides = array<i32>} : memref<256x576xf32, #tpu.memory_space<vmem>>, vector<16x64xf32>,
    %c1_175 = arith.constant 1 : index
    %c1_176 = arith.constant 1 : index
    %c0_177 = arith.constant 0 : index
    %117 = vector.load %arg18[%c1_175, %c1_176, %c0_177] : memref<6x6x64xf32, #tpu.memory_space<vmem>>, vector<4x4x64xf32>
    %118 = vector.shape_cast %117 : vector<4x4x64xf32> to vector<16x64xf32>
    %c0_178 = arith.constant 0 : index
    %c256_179 = arith.constant 256 : index
    %119 = vector.load %arg15[%c0_178, %c256_179] : memref<256x576xf32, #tpu.memory_space<vmem>>, vector<16x64xf32>
    tpu.vector_store %arg15[%c0_178, %c256_179], %118 {strides = array<i32>} : memref<256x576xf32, #tpu.memory_space<vmem>>, vector<16x64xf32>,
    %c1_180 = arith.constant 1 : index
    %c2_181 = arith.constant 2 : index
    %c0_182 = arith.constant 0 : index
    %120 = vector.load %arg18[%c1_180, %c2_181, %c0_182] : memref<6x6x64xf32, #tpu.memory_space<vmem>>, vector<4x4x64xf32>
    %121 = vector.shape_cast %120 : vector<4x4x64xf32> to vector<16x64xf32>
    %c0_183 = arith.constant 0 : index
    %c320 = arith.constant 320 : index
    %122 = vector.load %arg15[%c0_183, %c320] : memref<256x576xf32, #tpu.memory_space<vmem>>, vector<16x64xf32>
    tpu.vector_store %arg15[%c0_183, %c320], %121 {strides = array<i32>} : memref<256x576xf32, #tpu.memory_space<vmem>>, vector<16x64xf32>,
    %c2_184 = arith.constant 2 : index
    %c0_185 = arith.constant 0 : index
    %c0_186 = arith.constant 0 : index
    %123 = vector.load %arg18[%c2_184, %c0_185, %c0_186] : memref<6x6x64xf32, #tpu.memory_space<vmem>>, vector<4x4x64xf32>
    %124 = vector.shape_cast %123 : vector<4x4x64xf32> to vector<16x64xf32>
    %c0_187 = arith.constant 0 : index
    %c384 = arith.constant 384 : index
    %125 = vector.load %arg15[%c0_187, %c384] : memref<256x576xf32, #tpu.memory_space<vmem>>, vector<16x64xf32>
    tpu.vector_store %arg15[%c0_187, %c384], %124 {strides = array<i32>} : memref<256x576xf32, #tpu.memory_space<vmem>>, vector<16x64xf32>,
    %c2_188 = arith.constant 2 : index
    %c1_189 = arith.constant 1 : index
    %c0_190 = arith.constant 0 : index
    %126 = vector.load %arg18[%c2_188, %c1_189, %c0_190] : memref<6x6x64xf32, #tpu.memory_space<vmem>>, vector<4x4x64xf32>
    %127 = vector.shape_cast %126 : vector<4x4x64xf32> to vector<16x64xf32>
    %c0_191 = arith.constant 0 : index
    %c448 = arith.constant 448 : index
    %128 = vector.load %arg15[%c0_191, %c448] : memref<256x576xf32, #tpu.memory_space<vmem>>, vector<16x64xf32>
    tpu.vector_store %arg15[%c0_191, %c448], %127 {strides = array<i32>} : memref<256x576xf32, #tpu.memory_space<vmem>>, vector<16x64xf32>,
    %c2_192 = arith.constant 2 : index
    %c2_193 = arith.constant 2 : index
    %c0_194 = arith.constant 0 : index
    %129 = vector.load %arg18[%c2_192, %c2_193, %c0_194] : memref<6x6x64xf32, #tpu.memory_space<vmem>>, vector<4x4x64xf32>
    %130 = vector.shape_cast %129 : vector<4x4x64xf32> to vector<16x64xf32>
    %c0_195 = arith.constant 0 : index
    %c512 = arith.constant 512 : index
    %131 = vector.load %arg15[%c0_195, %c512] : memref<256x576xf32, #tpu.memory_space<vmem>>, vector<16x64xf32>
    tpu.vector_store %arg15[%c0_195, %c512], %130 {strides = array<i32>} : memref<256x576xf32, #tpu.memory_space<vmem>>, vector<16x64xf32>,
    %c0_196 = arith.constant 0 : index
    %c0_197 = arith.constant 0 : index
    %132 = vector.load %arg15[%c0_196, %c0_197] : memref<256x576xf32, #tpu.memory_space<vmem>>, vector<16x576xf32>
    %c0_198 = arith.constant 0 : index
    %c0_199 = arith.constant 0 : index
    %133 = vector.load %arg6[%c0_198, %c0_199] : memref<576x128xf32, #tpu.memory_space<vmem>>, vector<576x128xf32>
    %cst_200 = arith.constant dense<0.000000e+00> : vector<16x128xf32>
    %134 = tpu.matmul %132, %133, %cst_200 {dimension_numbers = #tpu.dot_dimension_numbers<[1], [0], [0], [1], [0, 0, 1, 1], [], []>} : vector<16x576xf32>, vector<576x128xf32>, vector<16x128xf32> -> vector<16x128xf32>
    %c0_201 = arith.constant 0 : index
    %c0_202 = arith.constant 0 : index
    %135 = vector.load %arg7[%c0_201, %c0_202] : memref<1x128xf32, #tpu.memory_space<vmem>>, vector<1x128xf32>
    %136 = vector.broadcast %135 : vector<1x128xf32> to vector<16x128xf32>
    %137 = arith.addf %134, %136 : vector<16x128xf32>
    %cst_203 = arith.constant 0.000000e+00 : f32
    %138 = vector.broadcast %cst_203 : f32 to vector<16x128xf32>
    %139 = arith.maximumf %137, %138 : vector<16x128xf32>
    %140 = vector.shape_cast %139 : vector<16x128xf32> to vector<4x4x128xf32>
    %c0_204 = arith.constant 0 : index
    %c0_205 = arith.constant 0 : index
    %c0_206 = arith.constant 0 : index
    %141 = vector.load %arg24[%c0_204, %c0_205, %c0_206] : memref<4x4x128xf32, #tpu.memory_space<vmem>>, vector<4x4x128xf32>
    tpu.vector_store %arg24[%c0_204, %c0_205, %c0_206], %140 {strides = array<i32>} : memref<4x4x128xf32, #tpu.memory_space<vmem>>, vector<4x4x128xf32>,
    %c0_207 = arith.constant 0 : index
    %c0_208 = arith.constant 0 : index
    %c0_209 = arith.constant 0 : index
    %142 = tpu.strided_load %arg24[%c0_207, %c0_208, %c0_209] {strides = array<i32: 2, 2, 1>} : memref<4x4x128xf32, #tpu.memory_space<vmem>>, vector<2x2x128xf32>
    %c0_210 = arith.constant 0 : index
    %c1_211 = arith.constant 1 : index
    %c0_212 = arith.constant 0 : index
    %143 = tpu.strided_load %arg24[%c0_210, %c1_211, %c0_212] {strides = array<i32: 2, 2, 1>} : memref<4x4x128xf32, #tpu.memory_space<vmem>>, vector<2x2x128xf32>
    %c1_213 = arith.constant 1 : index
    %c0_214 = arith.constant 0 : index
    %c0_215 = arith.constant 0 : index
    %144 = tpu.strided_load %arg24[%c1_213, %c0_214, %c0_215] {strides = array<i32: 2, 2, 1>} : memref<4x4x128xf32, #tpu.memory_space<vmem>>, vector<2x2x128xf32>
    %c1_216 = arith.constant 1 : index
    %c1_217 = arith.constant 1 : index
    %c0_218 = arith.constant 0 : index
    %145 = tpu.strided_load %arg24[%c1_216, %c1_217, %c0_218] {strides = array<i32: 2, 2, 1>} : memref<4x4x128xf32, #tpu.memory_space<vmem>>, vector<2x2x128xf32>
    %146 = arith.maximumf %142, %143 : vector<2x2x128xf32>
    %147 = arith.maximumf %144, %145 : vector<2x2x128xf32>
    %148 = arith.maximumf %146, %147 : vector<2x2x128xf32>
    %c0_219 = arith.constant 0 : index
    %c0_220 = arith.constant 0 : index
    %c0_221 = arith.constant 0 : index
    %149 = vector.load %arg19[%c0_219, %c0_220, %c0_221] : memref<3x3x128xf32, #tpu.memory_space<vmem>>, vector<2x2x128xf32>
    tpu.vector_store %arg19[%c0_219, %c0_220, %c0_221], %148 {strides = array<i32>} : memref<3x3x128xf32, #tpu.memory_space<vmem>>, vector<2x2x128xf32>,
    %c0_222 = arith.constant 0 : index
    %c0_223 = arith.constant 0 : index
    %c0_224 = arith.constant 0 : index
    %150 = vector.load %arg19[%c0_222, %c0_223, %c0_224] : memref<3x3x128xf32, #tpu.memory_space<vmem>>, vector<2x2x128xf32>
    %151 = vector.shape_cast %150 : vector<2x2x128xf32> to vector<4x128xf32>
    %c0_225 = arith.constant 0 : index
    %c0_226 = arith.constant 0 : index
    %152 = vector.load %arg15[%c0_225, %c0_226] : memref<256x576xf32, #tpu.memory_space<vmem>>, vector<4x128xf32>
    tpu.vector_store %arg15[%c0_225, %c0_226], %151 {strides = array<i32>} : memref<256x576xf32, #tpu.memory_space<vmem>>, vector<4x128xf32>,
    %c0_227 = arith.constant 0 : index
    %c1_228 = arith.constant 1 : index
    %c0_229 = arith.constant 0 : index
    %153 = vector.load %arg19[%c0_227, %c1_228, %c0_229] : memref<3x3x128xf32, #tpu.memory_space<vmem>>, vector<2x2x128xf32>
    %154 = vector.shape_cast %153 : vector<2x2x128xf32> to vector<4x128xf32>
    %c0_230 = arith.constant 0 : index
    %c128_231 = arith.constant 128 : index
    %155 = vector.load %arg15[%c0_230, %c128_231] : memref<256x576xf32, #tpu.memory_space<vmem>>, vector<4x128xf32>
    tpu.vector_store %arg15[%c0_230, %c128_231], %154 {strides = array<i32>} : memref<256x576xf32, #tpu.memory_space<vmem>>, vector<4x128xf32>,
    %c1_232 = arith.constant 1 : index
    %c0_233 = arith.constant 0 : index
    %c0_234 = arith.constant 0 : index
    %156 = vector.load %arg19[%c1_232, %c0_233, %c0_234] : memref<3x3x128xf32, #tpu.memory_space<vmem>>, vector<2x2x128xf32>
    %157 = vector.shape_cast %156 : vector<2x2x128xf32> to vector<4x128xf32>
    %c0_235 = arith.constant 0 : index
    %c256_236 = arith.constant 256 : index
    %158 = vector.load %arg15[%c0_235, %c256_236] : memref<256x576xf32, #tpu.memory_space<vmem>>, vector<4x128xf32>
    tpu.vector_store %arg15[%c0_235, %c256_236], %157 {strides = array<i32>} : memref<256x576xf32, #tpu.memory_space<vmem>>, vector<4x128xf32>,
    %c1_237 = arith.constant 1 : index
    %c1_238 = arith.constant 1 : index
    %c0_239 = arith.constant 0 : index
    %159 = vector.load %arg19[%c1_237, %c1_238, %c0_239] : memref<3x3x128xf32, #tpu.memory_space<vmem>>, vector<2x2x128xf32>
    %160 = vector.shape_cast %159 : vector<2x2x128xf32> to vector<4x128xf32>
    %c0_240 = arith.constant 0 : index
    %c384_241 = arith.constant 384 : index
    %161 = vector.load %arg15[%c0_240, %c384_241] : memref<256x576xf32, #tpu.memory_space<vmem>>, vector<4x128xf32>
    tpu.vector_store %arg15[%c0_240, %c384_241], %160 {strides = array<i32>} : memref<256x576xf32, #tpu.memory_space<vmem>>, vector<4x128xf32>,
    %c0_242 = arith.constant 0 : index
    %c0_243 = arith.constant 0 : index
    %162 = vector.load %arg15[%c0_242, %c0_243] : memref<256x576xf32, #tpu.memory_space<vmem>>, vector<4x512xf32>
    %c0_244 = arith.constant 0 : index
    %c0_245 = arith.constant 0 : index
    %163 = vector.load %arg8[%c0_244, %c0_245] : memref<512x256xf32, #tpu.memory_space<vmem>>, vector<512x256xf32>
    %cst_246 = arith.constant dense<0.000000e+00> : vector<4x256xf32>
    %164 = tpu.matmul %162, %163, %cst_246 {dimension_numbers = #tpu.dot_dimension_numbers<[1], [0], [0], [1], [0, 0, 1, 1], [], []>} : vector<4x512xf32>, vector<512x256xf32>, vector<4x256xf32> -> vector<4x256xf32>
    %c0_247 = arith.constant 0 : index
    %c0_248 = arith.constant 0 : index
    %165 = vector.load %arg9[%c0_247, %c0_248] : memref<1x256xf32, #tpu.memory_space<vmem>>, vector<1x256xf32>
    %166 = vector.broadcast %165 : vector<1x256xf32> to vector<4x256xf32>
    %167 = arith.addf %164, %166 : vector<4x256xf32>
    %cst_249 = arith.constant 0.000000e+00 : f32
    %168 = vector.broadcast %cst_249 : f32 to vector<4x256xf32>
    %169 = arith.maximumf %167, %168 : vector<4x256xf32>
    %170 = vector.extract_strided_slice %169 {offsets = [0, 0], sizes = [4, 64], strides = [1, 1]} : vector<4x256xf32> to vector<4x64xf32>
    %171 = vector.shape_cast %170 : vector<4x64xf32> to vector<2x2x64xf32>
    %c0_250 = arith.constant 0 : index
    %c0_251 = arith.constant 0 : index
    %c0_252 = arith.constant 0 : index
    %172 = tpu.strided_load %arg20[%c0_250, %c0_251, %c0_252] {strides = array<i32: 2, 2, 1>} : memref<5x5x64xf32, #tpu.memory_space<vmem>>, vector<2x2x64xf32>
    tpu.strided_store %arg20[%c0_250, %c0_251, %c0_252], %171 {strides = array<i32: 2, 2, 1>} : memref<5x5x64xf32, #tpu.memory_space<vmem>>, vector<2x2x64xf32>
    %173 = vector.extract_strided_slice %169 {offsets = [0, 64], sizes = [4, 64], strides = [1, 1]} : vector<4x256xf32> to vector<4x64xf32>
    %174 = vector.shape_cast %173 : vector<4x64xf32> to vector<2x2x64xf32>
    %c0_253 = arith.constant 0 : index
    %c1_254 = arith.constant 1 : index
    %c0_255 = arith.constant 0 : index
    %175 = tpu.strided_load %arg20[%c0_253, %c1_254, %c0_255] {strides = array<i32: 2, 2, 1>} : memref<5x5x64xf32, #tpu.memory_space<vmem>>, vector<2x2x64xf32>
    tpu.strided_store %arg20[%c0_253, %c1_254, %c0_255], %174 {strides = array<i32: 2, 2, 1>} : memref<5x5x64xf32, #tpu.memory_space<vmem>>, vector<2x2x64xf32>
    %176 = vector.extract_strided_slice %169 {offsets = [0, 128], sizes = [4, 64], strides = [1, 1]} : vector<4x256xf32> to vector<4x64xf32>
    %177 = vector.shape_cast %176 : vector<4x64xf32> to vector<2x2x64xf32>
    %c1_256 = arith.constant 1 : index
    %c0_257 = arith.constant 0 : index
    %c0_258 = arith.constant 0 : index
    %178 = tpu.strided_load %arg20[%c1_256, %c0_257, %c0_258] {strides = array<i32: 2, 2, 1>} : memref<5x5x64xf32, #tpu.memory_space<vmem>>, vector<2x2x64xf32>
    tpu.strided_store %arg20[%c1_256, %c0_257, %c0_258], %177 {strides = array<i32: 2, 2, 1>} : memref<5x5x64xf32, #tpu.memory_space<vmem>>, vector<2x2x64xf32>
    %179 = vector.extract_strided_slice %169 {offsets = [0, 192], sizes = [4, 64], strides = [1, 1]} : vector<4x256xf32> to vector<4x64xf32>
    %180 = vector.shape_cast %179 : vector<4x64xf32> to vector<2x2x64xf32>
    %c1_259 = arith.constant 1 : index
    %c1_260 = arith.constant 1 : index
    %c0_261 = arith.constant 0 : index
    %181 = tpu.strided_load %arg20[%c1_259, %c1_260, %c0_261] {strides = array<i32: 2, 2, 1>} : memref<5x5x64xf32, #tpu.memory_space<vmem>>, vector<2x2x64xf32>
    tpu.strided_store %arg20[%c1_259, %c1_260, %c0_261], %180 {strides = array<i32: 2, 2, 1>} : memref<5x5x64xf32, #tpu.memory_space<vmem>>, vector<2x2x64xf32>
    %c0_262 = arith.constant 0 : index
    %c0_263 = arith.constant 0 : index
    %c0_264 = arith.constant 0 : index
    %182 = vector.load %arg20[%c0_262, %c0_263, %c0_264] : memref<5x5x64xf32, #tpu.memory_space<vmem>>, vector<4x4x64xf32>
    %183 = vector.shape_cast %182 : vector<4x4x64xf32> to vector<16x64xf32>
    %c0_265 = arith.constant 0 : index
    %c0_266 = arith.constant 0 : index
    %184 = vector.load %arg15[%c0_265, %c0_266] : memref<256x576xf32, #tpu.memory_space<vmem>>, vector<16x64xf32>
    tpu.vector_store %arg15[%c0_265, %c0_266], %183 {strides = array<i32>} : memref<256x576xf32, #tpu.memory_space<vmem>>, vector<16x64xf32>,
    %c0_267 = arith.constant 0 : index
    %c1_268 = arith.constant 1 : index
    %c0_269 = arith.constant 0 : index
    %185 = vector.load %arg20[%c0_267, %c1_268, %c0_269] : memref<5x5x64xf32, #tpu.memory_space<vmem>>, vector<4x4x64xf32>
    %186 = vector.shape_cast %185 : vector<4x4x64xf32> to vector<16x64xf32>
    %c0_270 = arith.constant 0 : index
    %c64_271 = arith.constant 64 : index
    %187 = vector.load %arg15[%c0_270, %c64_271] : memref<256x576xf32, #tpu.memory_space<vmem>>, vector<16x64xf32>
    tpu.vector_store %arg15[%c0_270, %c64_271], %186 {strides = array<i32>} : memref<256x576xf32, #tpu.memory_space<vmem>>, vector<16x64xf32>,
    %c1_272 = arith.constant 1 : index
    %c0_273 = arith.constant 0 : index
    %c0_274 = arith.constant 0 : index
    %188 = vector.load %arg20[%c1_272, %c0_273, %c0_274] : memref<5x5x64xf32, #tpu.memory_space<vmem>>, vector<4x4x64xf32>
    %189 = vector.shape_cast %188 : vector<4x4x64xf32> to vector<16x64xf32>
    %c0_275 = arith.constant 0 : index
    %c128_276 = arith.constant 128 : index
    %190 = vector.load %arg15[%c0_275, %c128_276] : memref<256x576xf32, #tpu.memory_space<vmem>>, vector<16x64xf32>
    tpu.vector_store %arg15[%c0_275, %c128_276], %189 {strides = array<i32>} : memref<256x576xf32, #tpu.memory_space<vmem>>, vector<16x64xf32>,
    %c1_277 = arith.constant 1 : index
    %c1_278 = arith.constant 1 : index
    %c0_279 = arith.constant 0 : index
    %191 = vector.load %arg20[%c1_277, %c1_278, %c0_279] : memref<5x5x64xf32, #tpu.memory_space<vmem>>, vector<4x4x64xf32>
    %192 = vector.shape_cast %191 : vector<4x4x64xf32> to vector<16x64xf32>
    %c0_280 = arith.constant 0 : index
    %c192_281 = arith.constant 192 : index
    %193 = vector.load %arg15[%c0_280, %c192_281] : memref<256x576xf32, #tpu.memory_space<vmem>>, vector<16x64xf32>
    tpu.vector_store %arg15[%c0_280, %c192_281], %192 {strides = array<i32>} : memref<256x576xf32, #tpu.memory_space<vmem>>, vector<16x64xf32>,
    %c0_282 = arith.constant 0 : index
    %c0_283 = arith.constant 0 : index
    %194 = vector.load %arg15[%c0_282, %c0_283] : memref<256x576xf32, #tpu.memory_space<vmem>>, vector<16x256xf32>
    %c0_284 = arith.constant 0 : index
    %c0_285 = arith.constant 0 : index
    %195 = vector.load %arg10[%c0_284, %c0_285] : memref<256x128xf32, #tpu.memory_space<vmem>>, vector<256x128xf32>
    %cst_286 = arith.constant dense<0.000000e+00> : vector<16x128xf32>
    %196 = tpu.matmul %194, %195, %cst_286 {dimension_numbers = #tpu.dot_dimension_numbers<[1], [0], [0], [1], [0, 0, 1, 1], [], []>} : vector<16x256xf32>, vector<256x128xf32>, vector<16x128xf32> -> vector<16x128xf32>
    %c0_287 = arith.constant 0 : index
    %c0_288 = arith.constant 0 : index
    %197 = vector.load %arg11[%c0_287, %c0_288] : memref<1x128xf32, #tpu.memory_space<vmem>>, vector<1x128xf32>
    %198 = vector.broadcast %197 : vector<1x128xf32> to vector<16x128xf32>
    %199 = arith.addf %196, %198 : vector<16x128xf32>
    %cst_289 = arith.constant 0.000000e+00 : f32
    %200 = vector.broadcast %cst_289 : f32 to vector<16x128xf32>
    %201 = arith.maximumf %199, %200 : vector<16x128xf32>
    %202 = vector.extract_strided_slice %201 {offsets = [0, 0], sizes = [16, 32], strides = [1, 1]} : vector<16x128xf32> to vector<16x32xf32>
    %203 = vector.shape_cast %202 : vector<16x32xf32> to vector<4x4x32xf32>
    %c0_290 = arith.constant 0 : index
    %c0_291 = arith.constant 0 : index
    %c0_292 = arith.constant 0 : index
    %204 = tpu.strided_load %arg21[%c0_290, %c0_291, %c0_292] {strides = array<i32: 2, 2, 1>} : memref<9x9x32xf32, #tpu.memory_space<vmem>>, vector<4x4x32xf32>
    tpu.strided_store %arg21[%c0_290, %c0_291, %c0_292], %203 {strides = array<i32: 2, 2, 1>} : memref<9x9x32xf32, #tpu.memory_space<vmem>>, vector<4x4x32xf32>
    %205 = vector.extract_strided_slice %201 {offsets = [0, 32], sizes = [16, 32], strides = [1, 1]} : vector<16x128xf32> to vector<16x32xf32>
    %206 = vector.shape_cast %205 : vector<16x32xf32> to vector<4x4x32xf32>
    %c0_293 = arith.constant 0 : index
    %c1_294 = arith.constant 1 : index
    %c0_295 = arith.constant 0 : index
    %207 = tpu.strided_load %arg21[%c0_293, %c1_294, %c0_295] {strides = array<i32: 2, 2, 1>} : memref<9x9x32xf32, #tpu.memory_space<vmem>>, vector<4x4x32xf32>
    tpu.strided_store %arg21[%c0_293, %c1_294, %c0_295], %206 {strides = array<i32: 2, 2, 1>} : memref<9x9x32xf32, #tpu.memory_space<vmem>>, vector<4x4x32xf32>
    %208 = vector.extract_strided_slice %201 {offsets = [0, 64], sizes = [16, 32], strides = [1, 1]} : vector<16x128xf32> to vector<16x32xf32>
    %209 = vector.shape_cast %208 : vector<16x32xf32> to vector<4x4x32xf32>
    %c1_296 = arith.constant 1 : index
    %c0_297 = arith.constant 0 : index
    %c0_298 = arith.constant 0 : index
    %210 = tpu.strided_load %arg21[%c1_296, %c0_297, %c0_298] {strides = array<i32: 2, 2, 1>} : memref<9x9x32xf32, #tpu.memory_space<vmem>>, vector<4x4x32xf32>
    tpu.strided_store %arg21[%c1_296, %c0_297, %c0_298], %209 {strides = array<i32: 2, 2, 1>} : memref<9x9x32xf32, #tpu.memory_space<vmem>>, vector<4x4x32xf32>
    %211 = vector.extract_strided_slice %201 {offsets = [0, 96], sizes = [16, 32], strides = [1, 1]} : vector<16x128xf32> to vector<16x32xf32>
    %212 = vector.shape_cast %211 : vector<16x32xf32> to vector<4x4x32xf32>
    %c1_299 = arith.constant 1 : index
    %c1_300 = arith.constant 1 : index
    %c0_301 = arith.constant 0 : index
    %213 = tpu.strided_load %arg21[%c1_299, %c1_300, %c0_301] {strides = array<i32: 2, 2, 1>} : memref<9x9x32xf32, #tpu.memory_space<vmem>>, vector<4x4x32xf32>
    tpu.strided_store %arg21[%c1_299, %c1_300, %c0_301], %212 {strides = array<i32: 2, 2, 1>} : memref<9x9x32xf32, #tpu.memory_space<vmem>>, vector<4x4x32xf32>
    %c0_302 = arith.constant 0 : index
    %c0_303 = arith.constant 0 : index
    %c0_304 = arith.constant 0 : index
    %214 = vector.load %arg21[%c0_302, %c0_303, %c0_304] : memref<9x9x32xf32, #tpu.memory_space<vmem>>, vector<8x8x32xf32>
    %215 = vector.shape_cast %214 : vector<8x8x32xf32> to vector<64x32xf32>
    %c0_305 = arith.constant 0 : index
    %c0_306 = arith.constant 0 : index
    %216 = vector.load %arg15[%c0_305, %c0_306] : memref<256x576xf32, #tpu.memory_space<vmem>>, vector<64x32xf32>
    tpu.vector_store %arg15[%c0_305, %c0_306], %215 {strides = array<i32>} : memref<256x576xf32, #tpu.memory_space<vmem>>, vector<64x32xf32>,
    %c0_307 = arith.constant 0 : index
    %c1_308 = arith.constant 1 : index
    %c0_309 = arith.constant 0 : index
    %217 = vector.load %arg21[%c0_307, %c1_308, %c0_309] : memref<9x9x32xf32, #tpu.memory_space<vmem>>, vector<8x8x32xf32>
    %218 = vector.shape_cast %217 : vector<8x8x32xf32> to vector<64x32xf32>
    %c0_310 = arith.constant 0 : index
    %c32_311 = arith.constant 32 : index
    %219 = vector.load %arg15[%c0_310, %c32_311] : memref<256x576xf32, #tpu.memory_space<vmem>>, vector<64x32xf32>
    tpu.vector_store %arg15[%c0_310, %c32_311], %218 {strides = array<i32>} : memref<256x576xf32, #tpu.memory_space<vmem>>, vector<64x32xf32>,
    %c1_312 = arith.constant 1 : index
    %c0_313 = arith.constant 0 : index
    %c0_314 = arith.constant 0 : index
    %220 = vector.load %arg21[%c1_312, %c0_313, %c0_314] : memref<9x9x32xf32, #tpu.memory_space<vmem>>, vector<8x8x32xf32>
    %221 = vector.shape_cast %220 : vector<8x8x32xf32> to vector<64x32xf32>
    %c0_315 = arith.constant 0 : index
    %c64_316 = arith.constant 64 : index
    %222 = vector.load %arg15[%c0_315, %c64_316] : memref<256x576xf32, #tpu.memory_space<vmem>>, vector<64x32xf32>
    tpu.vector_store %arg15[%c0_315, %c64_316], %221 {strides = array<i32>} : memref<256x576xf32, #tpu.memory_space<vmem>>, vector<64x32xf32>,
    %c1_317 = arith.constant 1 : index
    %c1_318 = arith.constant 1 : index
    %c0_319 = arith.constant 0 : index
    %223 = vector.load %arg21[%c1_317, %c1_318, %c0_319] : memref<9x9x32xf32, #tpu.memory_space<vmem>>, vector<8x8x32xf32>
    %224 = vector.shape_cast %223 : vector<8x8x32xf32> to vector<64x32xf32>
    %c0_320 = arith.constant 0 : index
    %c96_321 = arith.constant 96 : index
    %225 = vector.load %arg15[%c0_320, %c96_321] : memref<256x576xf32, #tpu.memory_space<vmem>>, vector<64x32xf32>
    tpu.vector_store %arg15[%c0_320, %c96_321], %224 {strides = array<i32>} : memref<256x576xf32, #tpu.memory_space<vmem>>, vector<64x32xf32>,
    %c0_322 = arith.constant 0 : index
    %c0_323 = arith.constant 0 : index
    %226 = vector.load %arg15[%c0_322, %c0_323] : memref<256x576xf32, #tpu.memory_space<vmem>>, vector<64x128xf32>
    %c0_324 = arith.constant 0 : index
    %c0_325 = arith.constant 0 : index
    %227 = vector.load %arg12[%c0_324, %c0_325] : memref<128x128xf32, #tpu.memory_space<vmem>>, vector<128x128xf32>
    %cst_326 = arith.constant dense<0.000000e+00> : vector<64x128xf32>
    %228 = tpu.matmul %226, %227, %cst_326 {dimension_numbers = #tpu.dot_dimension_numbers<[1], [0], [0], [1], [0, 0, 1, 1], [], []>} : vector<64x128xf32>, vector<128x128xf32>, vector<64x128xf32> -> vector<64x128xf32>
    %c0_327 = arith.constant 0 : index
    %c0_328 = arith.constant 0 : index
    %229 = vector.load %arg13[%c0_327, %c0_328] : memref<1x128xf32, #tpu.memory_space<vmem>>, vector<1x128xf32>
    %230 = vector.broadcast %229 : vector<1x128xf32> to vector<64x128xf32>
    %231 = arith.addf %228, %230 : vector<64x128xf32>
    %c0_329 = arith.constant 0 : index
    %c0_330 = arith.constant 0 : index
    %c0_331 = arith.constant 0 : index
    %232 = vector.load %arg14[%c0_329, %c0_330, %c0_331] : memref<1x64x128xf32, #tpu.memory_space<vmem>>, vector<1x64x128xf32>
    %233 = vector.shape_cast %232 : vector<1x64x128xf32> to vector<64x128xf32>
    %234 = vector.shape_cast %231 : vector<64x128xf32> to vector<1x64x128xf32>
    tpu.vector_store %arg14[%c0_329, %c0_330, %c0_331], %234 {strides = array<i32>} : memref<1x64x128xf32, #tpu.memory_space<vmem>>, vector<1x64x128xf32>,
    return
  }
  func.func @transform_0(%arg0: i32) -> (i32, i32, i32, i32) {
    %c0_i32 = arith.constant 0 : i32
    %c0_i32_0 = arith.constant 0 : i32
    %c0_i32_1 = arith.constant 0 : i32
    %c0_i32_2 = arith.constant 0 : i32
    return %arg0, %c0_i32, %c0_i32_0, %c0_i32_1 : i32, i32, i32, i32
  }
  func.func @transform_1(%arg0: i32) -> (i32, i32) {
    %c0_i32 = arith.constant 0 : i32
    %c0_i32_0 = arith.constant 0 : i32
    %c0_i32_1 = arith.constant 0 : i32
    return %c0_i32, %c0_i32_0 : i32, i32
  }
  func.func @transform_2(%arg0: i32) -> (i32, i32) {
    %c0_i32 = arith.constant 0 : i32
    %c0_i32_0 = arith.constant 0 : i32
    %c0_i32_1 = arith.constant 0 : i32
    return %c0_i32, %c0_i32_0 : i32, i32
  }
  func.func @transform_3(%arg0: i32) -> (i32, i32) {
    %c0_i32 = arith.constant 0 : i32
    %c0_i32_0 = arith.constant 0 : i32
    %c0_i32_1 = arith.constant 0 : i32
    return %c0_i32, %c0_i32_0 : i32, i32
  }
  func.func @transform_4(%arg0: i32) -> (i32, i32) {
    %c0_i32 = arith.constant 0 : i32
    %c0_i32_0 = arith.constant 0 : i32
    %c0_i32_1 = arith.constant 0 : i32
    return %c0_i32, %c0_i32_0 : i32, i32
  }
  func.func @transform_5(%arg0: i32) -> (i32, i32) {
    %c0_i32 = arith.constant 0 : i32
    %c0_i32_0 = arith.constant 0 : i32
    %c0_i32_1 = arith.constant 0 : i32
    return %c0_i32, %c0_i32_0 : i32, i32
  }
  func.func @transform_6(%arg0: i32) -> (i32, i32) {
    %c0_i32 = arith.constant 0 : i32
    %c0_i32_0 = arith.constant 0 : i32
    %c0_i32_1 = arith.constant 0 : i32
    return %c0_i32, %c0_i32_0 : i32, i32
  }
  func.func @transform_7(%arg0: i32) -> (i32, i32) {
    %c0_i32 = arith.constant 0 : i32
    %c0_i32_0 = arith.constant 0 : i32
    %c0_i32_1 = arith.constant 0 : i32
    return %c0_i32, %c0_i32_0 : i32, i32
  }
  func.func @transform_8(%arg0: i32) -> (i32, i32) {
    %c0_i32 = arith.constant 0 : i32
    %c0_i32_0 = arith.constant 0 : i32
    %c0_i32_1 = arith.constant 0 : i32
    return %c0_i32, %c0_i32_0 : i32, i32
  }
  func.func @transform_9(%arg0: i32) -> (i32, i32) {
    %c0_i32 = arith.constant 0 : i32
    %c0_i32_0 = arith.constant 0 : i32
    %c0_i32_1 = arith.constant 0 : i32
    return %c0_i32, %c0_i32_0 : i32, i32
  }
  func.func @transform_10(%arg0: i32) -> (i32, i32) {
    %c0_i32 = arith.constant 0 : i32
    %c0_i32_0 = arith.constant 0 : i32
    %c0_i32_1 = arith.constant 0 : i32
    return %c0_i32, %c0_i32_0 : i32, i32
  }
  func.func @transform_11(%arg0: i32) -> (i32, i32) {
    %c0_i32 = arith.constant 0 : i32
    %c0_i32_0 = arith.constant 0 : i32
    %c0_i32_1 = arith.constant 0 : i32
    return %c0_i32, %c0_i32_0 : i32, i32
  }
  func.func @transform_12(%arg0: i32) -> (i32, i32) {
    %c0_i32 = arith.constant 0 : i32
    %c0_i32_0 = arith.constant 0 : i32
    %c0_i32_1 = arith.constant 0 : i32
    return %c0_i32, %c0_i32_0 : i32, i32
  }
  func.func @transform_13(%arg0: i32) -> (i32, i32, i32) {
    %c0_i32 = arith.constant 0 : i32
    %c0_i32_0 = arith.constant 0 : i32
    %c0_i32_1 = arith.constant 0 : i32
    return %arg0, %c0_i32, %c0_i32_0 : i32, i32, i32
  }
}

</mosaic_0001>

<llo_original>
// kernel: dae_forward.1
$region0: #{dae_forward.1}
  #allocation0 [shape = 'u32[]', space=smem, size = 0x4, offset = 0x4, fixed_abs, tag = 'smem constant byte address 0x4 - core index']
  #allocation1 [shape = 'u32[72,128]{1,0:T(1,128)}', space=vmem, size = 0x9000, scoped, tag = 'internal scratch']
  #allocation2 [shape = 'f32[256,576]{1,0:T(8,128)}', space=vmem, size = 0xa0000, scoped, tag = 'scratch operand']
  #allocation3 [shape = 'f32[18,18,8]{2,1,0:T(8,128)}', space=vmem, size = 0x36000, scoped, tag = 'scratch operand']
  #allocation4 [shape = 'f32[10,10,32]{2,1,0:T(8,128)}', space=vmem, size = 0x14000, scoped, tag = 'scratch operand']
  #allocation5 [shape = 'f32[6,6,64]{2,1,0:T(8,128)}', space=vmem, size = 0x6000, scoped, tag = 'scratch operand']
  #allocation6 [shape = 'f32[3,3,128]{2,1,0:T(4,128)}', space=vmem, size = 0x1800, scoped, tag = 'scratch operand']
  #allocation7 [shape = 'f32[5,5,64]{2,1,0:T(8,128)}', space=vmem, size = 0x5000, scoped, tag = 'scratch operand']
  #allocation8 [shape = 'f32[9,9,32]{2,1,0:T(8,128)}', space=vmem, size = 0x12000, scoped, tag = 'scratch operand']
  #allocation9 [shape = 'f32[16,16,32]{2,1,0:T(8,128)}', space=vmem, size = 0x20000, scoped, tag = 'scratch operand']
  #allocation10 [shape = 'f32[8,8,64]{2,1,0:T(8,128)}', space=vmem, size = 0x8000, scoped, tag = 'scratch operand']
  #allocation11 [shape = 'f32[4,4,128]{2,1,0:T(4,128)}', space=vmem, size = 0x2000, scoped, tag = 'scratch operand']
  %s0 = inlined_call_operand.vmem [shape: f32[2,16,16,3], index: 0, kind: input, shape index: {}]
  %s1 = inlined_call_operand.vmem [shape: f32[72,32], index: 1, kind: input, shape index: {}]
  %s2 = inlined_call_operand.vmem [shape: f32[1,32], index: 2, kind: input, shape index: {}]
  %s3 = inlined_call_operand.vmem [shape: f32[288,64], index: 3, kind: input, shape index: {}]
  %s4 = inlined_call_operand.vmem [shape: f32[1,64], index: 4, kind: input, shape index: {}]
  %s5 = inlined_call_operand.vmem [shape: f32[576,128], index: 5, kind: input, shape index: {}]
  %s6 = inlined_call_operand.vmem [shape: f32[1,128], index: 6, kind: input, shape index: {}]
  %s7 = inlined_call_operand.hbm [shape: f32[512,256], index: 7, kind: input, shape index: {}]
  %s8 = inlined_call_operand.vmem [shape: f32[1,256], index: 8, kind: input, shape index: {}]
  %s9 = inlined_call_operand.vmem [shape: f32[256,128], index: 9, kind: input, shape index: {}]
  %s10 = inlined_call_operand.vmem [shape: f32[1,128], index: 10, kind: input, shape index: {}]
  %s11 = inlined_call_operand.vmem [shape: f32[128,128], index: 11, kind: input, shape index: {}]
  %s12 = inlined_call_operand.vmem [shape: f32[1,128], index: 12, kind: input, shape index: {}]
  %s13 = inlined_call_operand.vmem [shape: f32[2,64,128], index: 13, kind: output, shape index: {}]
  %s14 = sld [smem:[#allocation0]]
  $region89: #{dae_forward.1} parent=0
    _
  %s16 = ssub.s32 1, %s14
  %s17 = scalar_select 0, %s16, %s14
  $region1: #{dae_forward.1} parent=0
    #allocation12 [shape = 'u8[524288]{0}', space=vmem, size = 0x80000, scoped, tag = 'input window, operand 7, single buffered']
    #allocation13 [shape = 's32[2]{0}', space=sflag, size = 0x8, scoped, tag = 'scoped memory for dae_forward.1']
    %18 = vsyncpa [#allocation13], 0
    loop: start=0, step=1, limit=4
    $region2: #{dae_forward.1} parent=1 // loop_pre_header
      _
    $region3: #{dae_forward.1} parent=1 // loop_header
      %s20 = sphi 0, %s24
      %p21 = scmp.ge.s32.totalorder %s20, 4
      %s30 = sphi 0, %s32
      %s33 = sphi 0, %s30
      %s34 = sphi 0, %s33
      %s50 = sphi 0, %s34
      %s54 = sphi 0, %s54
      %s56 = sphi 0, %s54
      %s57 = sphi 0, %s56
      %s71 = sphi 0, %s57
      %s75 = sphi 0, %s75
      %s77 = sphi 0, %s75
      %s78 = sphi 0, %s77
      %s92 = sphi 0, %s78
      %s96 = sphi 0, %s96
      %s98 = sphi 0, %s96
      %s99 = sphi 0, %s98
      %s113 = sphi 0, %s99
      %s117 = sphi 0, %s117
      %s119 = sphi 0, %s117
      %s120 = sphi 0, %s119
      %s134 = sphi 0, %s120
      %s138 = sphi 0, %s138
      %s140 = sphi 0, %s138
      %s141 = sphi 0, %s140
      %s155 = sphi 0, %s141
      %s159 = sphi 0, %s159
      %s161 = sphi 0, %s159
      %s162 = sphi 0, %s161
      %s176 = sphi 0, %s162
      %s180 = sphi 0, %s180
      %s182 = sphi 0, %s180
      %s183 = sphi 0, %s182
      %s197 = sphi 0, %s183
      %s201 = sphi 0, %s201
      %s203 = sphi 0, %s201
      %s204 = sphi 0, %s203
      %s218 = sphi 0, %s204
      %s222 = sphi 0, %s222
      %s224 = sphi 0, %s222
      %s225 = sphi 0, %s224
      %s239 = sphi 0, %s225
      %s243 = sphi 0, %s243
      %s245 = sphi 0, %s243
      %s246 = sphi 0, %s245
      %s260 = sphi 0, %s246
      %s264 = sphi 0, %s264
      %s266 = sphi 0, %s264
      %s267 = sphi 0, %s266
      %s281 = sphi 0, %s267
      %s285 = sphi 0, %s285
      %s287 = sphi 0, %s285
      %s288 = sphi 0, %s287
      %s302 = sphi 0, %s288
      %s308 = sphi 0, %s310
      %s311 = sphi 0, %s308
      %s312 = sphi 0, %s311
      %s328 = sphi 0, %s312
    $region4: #{dae_forward.1} parent=1 // loop_header_branch
      %23 = sbr.rel (%p21) target = $region8
    $region5: #{dae_forward.1} parent=1 // loop_body
      %s25 = ssub.s32 %s20, 1
      %s26 = ssub.s32 %s20, 2
      %s27 = sadd.s32 %s20, 1
      %s28 = ssub.s32 %s20, %s27
      %p29 = scmp.eq.s32.totalorder %s28, 0
      %s31 = sadd.s32 %s30, 1
      %s32 = scalar_select %p29, %s30, %s31
      %p35 = pneg %p29
      %p36 = scmp.eq.s32.totalorder %s20, 1
      %p37 = por %p35, %p36
      %p38 = scmp.ne.s32.totalorder %s30, %s33
      %p39 = scmp.eq.s32.totalorder %s20, 0
      %p40 = por %p38, %p39
      %p41 = scmp.ne.s32.totalorder %s30, %s33
      %p42 = scmp.eq.s32.totalorder %s25, 1
      %p43 = por %p41, %p42
      %p44 = scmp.ne.s32.totalorder %s33, %s34
      %p45 = scmp.eq.s32.totalorder %s25, 0
      %p46 = por %p44, %p45
      %p47 = scmp.ne.s32.totalorder %s33, %s34
      %p48 = scmp.eq.s32.totalorder %s26, 1
      %p49 = por %p47, %p48
      %p51 = scmp.ne.s32.totalorder %s34, %s50
      %p52 = scmp.eq.s32.totalorder %s26, 0
      %p53 = por %p51, %p52
      %s55 = sadd.s32 %s54, 1
      %p58 = scmp.eq.s32.totalorder %s20, 1
      %p59 = scmp.ne.s32.totalorder %s54, %s56
      %p60 = scmp.eq.s32.totalorder %s20, 0
      %p61 = por %p59, %p60
      %p62 = scmp.ne.s32.totalorder %s54, %s56
      %p63 = scmp.eq.s32.totalorder %s25, 1
      %p64 = por %p62, %p63
      %p65 = scmp.ne.s32.totalorder %s56, %s57
      %p66 = scmp.eq.s32.totalorder %s25, 0
      %p67 = por %p65, %p66
      %p68 = scmp.ne.s32.totalorder %s56, %s57
      %p69 = scmp.eq.s32.totalorder %s26, 1
      %p70 = por %p68, %p69
      %p72 = scmp.ne.s32.totalorder %s57, %s71
      %p73 = scmp.eq.s32.totalorder %s26, 0
      %p74 = por %p72, %p73
      %s76 = sadd.s32 %s75, 1
      %p79 = scmp.eq.s32.totalorder %s20, 1
      %p80 = scmp.ne.s32.totalorder %s75, %s77
      %p81 = scmp.eq.s32.totalorder %s20, 0
      %p82 = por %p80, %p81
      %p83 = scmp.ne.s32.totalorder %s75, %s77
      %p84 = scmp.eq.s32.totalorder %s25, 1
      %p85 = por %p83, %p84
      %p86 = scmp.ne.s32.totalorder %s77, %s78
      %p87 = scmp.eq.s32.totalorder %s25, 0
      %p88 = por %p86, %p87
      %p89 = scmp.ne.s32.totalorder %s77, %s78
      %p90 = scmp.eq.s32.totalorder %s26, 1
      %p91 = por %p89, %p90
      %p93 = scmp.ne.s32.totalorder %s78, %s92
      %p94 = scmp.eq.s32.totalorder %s26, 0
      %p95 = por %p93, %p94
      %s97 = sadd.s32 %s96, 1
      %p100 = scmp.eq.s32.totalorder %s20, 1
      %p101 = scmp.ne.s32.totalorder %s96, %s98
      %p102 = scmp.eq.s32.totalorder %s20, 0
      %p103 = por %p101, %p102
      %p104 = scmp.ne.s32.totalorder %s96, %s98
      %p105 = scmp.eq.s32.totalorder %s25, 1
      %p106 = por %p104, %p105
      %p107 = scmp.ne.s32.totalorder %s98, %s99
      %p108 = scmp.eq.s32.totalorder %s25, 0
      %p109 = por %p107, %p108
      %p110 = scmp.ne.s32.totalorder %s98, %s99
      %p111 = scmp.eq.s32.totalorder %s26, 1
      %p112 = por %p110, %p111
      %p114 = scmp.ne.s32.totalorder %s99, %s113
      %p115 = scmp.eq.s32.totalorder %s26, 0
      %p116 = por %p114, %p115
      %s118 = sadd.s32 %s117, 1
      %p121 = scmp.eq.s32.totalorder %s20, 1
      %p122 = scmp.ne.s32.totalorder %s117, %s119
      %p123 = scmp.eq.s32.totalorder %s20, 0
      %p124 = por %p122, %p123
      %p125 = scmp.ne.s32.totalorder %s117, %s119
      %p126 = scmp.eq.s32.totalorder %s25, 1
      %p127 = por %p125, %p126
      %p128 = scmp.ne.s32.totalorder %s119, %s120
      %p129 = scmp.eq.s32.totalorder %s25, 0
      %p130 = por %p128, %p129
      %p131 = scmp.ne.s32.totalorder %s119, %s120
      %p132 = scmp.eq.s32.totalorder %s26, 1
      %p133 = por %p131, %p132
      %p135 = scmp.ne.s32.totalorder %s120, %s134
      %p136 = scmp.eq.s32.totalorder %s26, 0
      %p137 = por %p135, %p136
      %s139 = sadd.s32 %s138, 1
      %p142 = scmp.eq.s32.totalorder %s20, 1
      %p143 = scmp.ne.s32.totalorder %s138, %s140
      %p144 = scmp.eq.s32.totalorder %s20, 0
      %p145 = por %p143, %p144
      %p146 = scmp.ne.s32.totalorder %s138, %s140
      %p147 = scmp.eq.s32.totalorder %s25, 1
      %p148 = por %p146, %p147
      %p149 = scmp.ne.s32.totalorder %s140, %s141
      %p150 = scmp.eq.s32.totalorder %s25, 0
      %p151 = por %p149, %p150
      %p152 = scmp.ne.s32.totalorder %s140, %s141
      %p153 = scmp.eq.s32.totalorder %s26, 1
      %p154 = por %p152, %p153
      %p156 = scmp.ne.s32.totalorder %s141, %s155
      %p157 = scmp.eq.s32.totalorder %s26, 0
      %p158 = por %p156, %p157
      %s160 = sadd.s32 %s159, 1
      %p163 = scmp.eq.s32.totalorder %s20, 1
      %p164 = scmp.ne.s32.totalorder %s159, %s161
      %p165 = scmp.eq.s32.totalorder %s20, 0
      %p166 = por %p164, %p165
      %p167 = scmp.ne.s32.totalorder %s159, %s161
      %p168 = scmp.eq.s32.totalorder %s25, 1
      %p169 = por %p167, %p168
      %p170 = scmp.ne.s32.totalorder %s161, %s162
      %p171 = scmp.eq.s32.totalorder %s25, 0
      %p172 = por %p170, %p171
      %p173 = scmp.ne.s32.totalorder %s161, %s162
      %p174 = scmp.eq.s32.totalorder %s26, 1
      %p175 = por %p173, %p174
      %p177 = scmp.ne.s32.totalorder %s162, %s176
      %p178 = scmp.eq.s32.totalorder %s26, 0
      %p179 = por %p177, %p178
      %s181 = sadd.s32 %s180, 1
      %p184 = scmp.eq.s32.totalorder %s20, 1
      %p185 = scmp.ne.s32.totalorder %s180, %s182
      %p186 = scmp.eq.s32.totalorder %s20, 0
      %p187 = por %p185, %p186
      %p188 = scmp.ne.s32.totalorder %s180, %s182
      %p189 = scmp.eq.s32.totalorder %s25, 1
      %p190 = por %p188, %p189
      %p191 = scmp.ne.s32.totalorder %s182, %s183
      %p192 = scmp.eq.s32.totalorder %s25, 0
      %p193 = por %p191, %p192
      %p194 = scmp.ne.s32.totalorder %s182, %s183
      %p195 = scmp.eq.s32.totalorder %s26, 1
      %p196 = por %p194, %p195
      %p198 = scmp.ne.s32.totalorder %s183, %s197
      %p199 = scmp.eq.s32.totalorder %s26, 0
      %p200 = por %p198, %p199
      %s202 = sadd.s32 %s201, 1
      %p205 = scmp.eq.s32.totalorder %s20, 1
      %p206 = scmp.ne.s32.totalorder %s201, %s203
      %p207 = scmp.eq.s32.totalorder %s20, 0
      %p208 = por %p206, %p207
      %p209 = scmp.ne.s32.totalorder %s201, %s203
      %p210 = scmp.eq.s32.totalorder %s25, 1
      %p211 = por %p209, %p210
      %p212 = scmp.ne.s32.totalorder %s203, %s204
      %p213 = scmp.eq.s32.totalorder %s25, 0
      %p214 = por %p212, %p213
      %p215 = scmp.ne.s32.totalorder %s203, %s204
      %p216 = scmp.eq.s32.totalorder %s26, 1
      %p217 = por %p215, %p216
      %p219 = scmp.ne.s32.totalorder %s204, %s218
      %p220 = scmp.eq.s32.totalorder %s26, 0
      %p221 = por %p219, %p220
      %s223 = sadd.s32 %s222, 1
      %p226 = scmp.eq.s32.totalorder %s20, 1
      %p227 = scmp.ne.s32.totalorder %s222, %s224
      %p228 = scmp.eq.s32.totalorder %s20, 0
      %p229 = por %p227, %p228
      %p230 = scmp.ne.s32.totalorder %s222, %s224
      %p231 = scmp.eq.s32.totalorder %s25, 1
      %p232 = por %p230, %p231
      %p233 = scmp.ne.s32.totalorder %s224, %s225
      %p234 = scmp.eq.s32.totalorder %s25, 0
      %p235 = por %p233, %p234
      %p236 = scmp.ne.s32.totalorder %s224, %s225
      %p237 = scmp.eq.s32.totalorder %s26, 1
      %p238 = por %p236, %p237
      %p240 = scmp.ne.s32.totalorder %s225, %s239
      %p241 = scmp.eq.s32.totalorder %s26, 0
      %p242 = por %p240, %p241
      %s244 = sadd.s32 %s243, 1
      %p247 = scmp.eq.s32.totalorder %s20, 1
      %p248 = scmp.ne.s32.totalorder %s243, %s245
      %p249 = scmp.eq.s32.totalorder %s20, 0
      %p250 = por %p248, %p249
      %p251 = scmp.ne.s32.totalorder %s243, %s245
      %p252 = scmp.eq.s32.totalorder %s25, 1
      %p253 = por %p251, %p252
      %p254 = scmp.ne.s32.totalorder %s245, %s246
      %p255 = scmp.eq.s32.totalorder %s25, 0
      %p256 = por %p254, %p255
      %p257 = scmp.ne.s32.totalorder %s245, %s246
      %p258 = scmp.eq.s32.totalorder %s26, 1
      %p259 = por %p257, %p258
      %p261 = scmp.ne.s32.totalorder %s246, %s260
      %p262 = scmp.eq.s32.totalorder %s26, 0
      %p263 = por %p261, %p262
      %s265 = sadd.s32 %s264, 1
      %p268 = scmp.eq.s32.totalorder %s20, 1
      %p269 = scmp.ne.s32.totalorder %s264, %s266
      %p270 = scmp.eq.s32.totalorder %s20, 0
      %p271 = por %p269, %p270
      %p272 = scmp.ne.s32.totalorder %s264, %s266
      %p273 = scmp.eq.s32.totalorder %s25, 1
      %p274 = por %p272, %p273
      %p275 = scmp.ne.s32.totalorder %s266, %s267
      %p276 = scmp.eq.s32.totalorder %s25, 0
      %p277 = por %p275, %p276
      %p278 = scmp.ne.s32.totalorder %s266, %s267
      %p279 = scmp.eq.s32.totalorder %s26, 1
      %p280 = por %p278, %p279
      %p282 = scmp.ne.s32.totalorder %s267, %s281
      %p283 = scmp.eq.s32.totalorder %s26, 0
      %p284 = por %p282, %p283
      %s286 = sadd.s32 %s285, 1
      %p289 = scmp.eq.s32.totalorder %s20, 1
      %p290 = scmp.ne.s32.totalorder %s285, %s287
      %p291 = scmp.eq.s32.totalorder %s20, 0
      %p292 = por %p290, %p291
      %p293 = scmp.ne.s32.totalorder %s285, %s287
      %p294 = scmp.eq.s32.totalorder %s25, 1
      %p295 = por %p293, %p294
      %p296 = scmp.ne.s32.totalorder %s287, %s288
      %p297 = scmp.eq.s32.totalorder %s25, 0
      %p298 = por %p296, %p297
      %p299 = scmp.ne.s32.totalorder %s287, %s288
      %p300 = scmp.eq.s32.totalorder %s26, 1
      %p301 = por %p299, %p300
      %p303 = scmp.ne.s32.totalorder %s288, %s302
      %p304 = scmp.eq.s32.totalorder %s26, 0
      %p305 = por %p303, %p304
      %s306 = ssub.s32 %s20, %s27
      %p307 = scmp.eq.s32.totalorder %s306, 0
      %s309 = sadd.s32 %s308, 1
      %s310 = scalar_select %p307, %s308, %s309
      %p313 = pneg %p307
      %p314 = scmp.eq.s32.totalorder %s20, 1
      %p315 = por %p313, %p314
      %p316 = scmp.ne.s32.totalorder %s308, %s311
      %p317 = scmp.eq.s32.totalorder %s20, 0
      %p318 = por %p316, %p317
      %p319 = scmp.ne.s32.totalorder %s308, %s311
      %p320 = scmp.eq.s32.totalorder %s25, 1
      %p321 = por %p319, %p320
      %p322 = scmp.ne.s32.totalorder %s311, %s312
      %p323 = scmp.eq.s32.totalorder %s25, 0
      %p324 = por %p322, %p323
      %p325 = scmp.ne.s32.totalorder %s311, %s312
      %p326 = scmp.eq.s32.totalorder %s26, 1
      %p327 = por %p325, %p326
      %p329 = scmp.ne.s32.totalorder %s312, %s328
      %p330 = scmp.eq.s32.totalorder %s26, 0
      %p331 = por %p329, %p330
      %p332 = scmp.le.s32.totalorder 1, %s20
      %p333 = scmp.lt.s32.totalorder %s20, 3
      %p334 = pnand %p332, %p333
      %p335 = pneg %p334
      // Predicated region
      $region9: #{dae_forward.1} parent=5 // pred_check
        _
      $region10: #{dae_forward.1} parent=5 // pred_check_branch
        %337 = sbr.rel (%p334) target = $region12
      $region11: #{dae_forward.1} parent=5 // pred_region
        %s338 = ssub.s32 %s20, 1
        // Predicated region
        $region13: #{dae_forward.1} parent=11 // pred_check
          %p339 = pneg %p67
        $region14: #{dae_forward.1} parent=11 // pred_check_branch
          %341 = sbr.rel (%p339) target = $region16
        $region15: #{dae_forward.1} parent=11 // pred_region
          _
        $region16: #{dae_forward.1} parent=11 // pred_fallthru
          _
        // Predicated region
        $region17: #{dae_forward.1} parent=11 // pred_check
          %p342 = pneg %p88
        $region18: #{dae_forward.1} parent=11 // pred_check_branch
          %344 = sbr.rel (%p342) target = $region20
        $region19: #{dae_forward.1} parent=11 // pred_region
          _
        $region20: #{dae_forward.1} parent=11 // pred_fallthru
          _
        // Predicated region
        $region21: #{dae_forward.1} parent=11 // pred_check
          %p345 = pneg %p109
        $region22: #{dae_forward.1} parent=11 // pred_check_branch
          %347 = sbr.rel (%p345) target = $region24
        $region23: #{dae_forward.1} parent=11 // pred_region
          _
        $region24: #{dae_forward.1} parent=11 // pred_fallthru
          _
        // Predicated region
        $region25: #{dae_forward.1} parent=11 // pred_check
          %p348 = pneg %p130
        $region26: #{dae_forward.1} parent=11 // pred_check_branch
          %350 = sbr.rel (%p348) target = $region28
        $region27: #{dae_forward.1} parent=11 // pred_region
          _
        $region28: #{dae_forward.1} parent=11 // pred_fallthru
          _
        // Predicated region
        $region29: #{dae_forward.1} parent=11 // pred_check
          %p351 = pneg %p151
        $region30: #{dae_forward.1} parent=11 // pred_check_branch
          %353 = sbr.rel (%p351) target = $region32
        $region31: #{dae_forward.1} parent=11 // pred_region
          _
        $region32: #{dae_forward.1} parent=11 // pred_fallthru
          _
        // Predicated region
        $region33: #{dae_forward.1} parent=11 // pred_check
          %p354 = pneg %p172
        $region34: #{dae_forward.1} parent=11 // pred_check_branch
          %356 = sbr.rel (%p354) target = $region36
        $region35: #{dae_forward.1} parent=11 // pred_region
          _
        $region36: #{dae_forward.1} parent=11 // pred_fallthru
          _
        // Predicated region
        $region37: #{dae_forward.1} parent=11 // pred_check
          %p357 = pneg %p193
        $region38: #{dae_forward.1} parent=11 // pred_check_branch
          %359 = sbr.rel (%p357) target = $region40
        $region39: #{dae_forward.1} parent=11 // pred_region
          %361 = vsyncadd [#allocation13], 0
          %s362 = sshll.u32 %s7, 4
          %s363 = int_to_ptr.hbm [resolvable:$true] %s362
          %s364 = sshll.u32 [#allocation12], 4
          %s365 = int_to_ptr.vmem [resolvable:$true] %s364
          %370 = dma.hbm_to_vmem [thread:$0]  %s363, 16384, %s365, [#allocation13], 256, 256, 16
        $region40: #{dae_forward.1} parent=11 // pred_fallthru
          _
        // Predicated region
        $region41: #{dae_forward.1} parent=11 // pred_check
          %p371 = pneg %p214
        $region42: #{dae_forward.1} parent=11 // pred_check_branch
          %373 = sbr.rel (%p371) target = $region44
        $region43: #{dae_forward.1} parent=11 // pred_region
          _
        $region44: #{dae_forward.1} parent=11 // pred_fallthru
          _
        // Predicated region
        $region45: #{dae_forward.1} parent=11 // pred_check
          %p374 = pneg %p235
        $region46: #{dae_forward.1} parent=11 // pred_check_branch
          %376 = sbr.rel (%p374) target = $region48
        $region47: #{dae_forward.1} parent=11 // pred_region
          _
        $region48: #{dae_forward.1} parent=11 // pred_fallthru
          _
        // Predicated region
        $region49: #{dae_forward.1} parent=11 // pred_check
          %p377 = pneg %p256
        $region50: #{dae_forward.1} parent=11 // pred_check_branch
          %379 = sbr.rel (%p377) target = $region52
        $region51: #{dae_forward.1} parent=11 // pred_region
          _
        $region52: #{dae_forward.1} parent=11 // pred_fallthru
          _
        // Predicated region
        $region53: #{dae_forward.1} parent=11 // pred_check
          %p380 = pneg %p277
        $region54: #{dae_forward.1} parent=11 // pred_check_branch
          %382 = sbr.rel (%p380) target = $region56
        $region55: #{dae_forward.1} parent=11 // pred_region
          _
        $region56: #{dae_forward.1} parent=11 // pred_fallthru
          _
        // Predicated region
        $region57: #{dae_forward.1} parent=11 // pred_check
          %p383 = pneg %p298
        $region58: #{dae_forward.1} parent=11 // pred_check_branch
          %385 = sbr.rel (%p383) target = $region60
        $region59: #{dae_forward.1} parent=11 // pred_region
          _
        $region60: #{dae_forward.1} parent=11 // pred_fallthru
          _
      $region12: #{dae_forward.1} parent=5 // pred_fallthru
        _
      %p386 = scmp.lt.s32.totalorder %s20, 2
      // Predicated region
      $region61: #{dae_forward.1} parent=5 // pred_check
        %p387 = pneg %p386
      $region62: #{dae_forward.1} parent=5 // pred_check_branch
        %389 = sbr.rel (%p387) target = $region64
      $region63: #{dae_forward.1} parent=5 // pred_region
        // Predicated region
        $region65: #{dae_forward.1} parent=63 // pred_check
          %p390 = pneg %p40
        $region66: #{dae_forward.1} parent=63 // pred_check_branch
          %392 = sbr.rel (%p390) target = $region68
        $region67: #{dae_forward.1} parent=63 // pred_region
          %p393 = scmp.lt.s32.totalorder %s20, 1
          %s394 = scalar_select %p393, %s20, 1
          %s395 = smul.addr %s394, 32
          %s396 = smul.addr %s395, 8
          %s397 = scalar_lea.vmem %s0, %s396
        $region68: #{dae_forward.1} parent=63 // pred_fallthru
          _
      $region64: #{dae_forward.1} parent=5 // pred_fallthru
        _
      %p398 = scmp.le.s32.totalorder 1, %s20
      %p399 = scmp.lt.s32.totalorder %s20, 3
      %p400 = pnand %p398, %p399
      %p401 = pneg %p400
      // Predicated region
      $region69: #{dae_forward.1} parent=5 // pred_check
        _
      $region70: #{dae_forward.1} parent=5 // pred_check_branch
        %403 = sbr.rel (%p400) target = $region72
      $region71: #{dae_forward.1} parent=5 // pred_region
        %s404 = ssub.s32 %s20, 1
        // Predicated region
        $region73: #{dae_forward.1} parent=71 // pred_check
          %p405 = pneg %p193
        $region74: #{dae_forward.1} parent=71 // pred_check_branch
          %407 = sbr.rel (%p405) target = $region76
        $region75: #{dae_forward.1} parent=71 // pred_region
          %409 = dma.done [#allocation13], 16384
        $region76: #{dae_forward.1} parent=71 // pred_fallthru
          _
        %p410 = scmp.lt.s32.totalorder %s25, 1
        %s411 = scalar_select %p410, %s25, 1
        %s412 = smul.addr %s411, 32
        %s413 = smul.addr %s412, 8
        %s414 = scalar_lea.vmem %s0, %s413
        %p415 = pneg %p46
        %p416 = pneg %p43
        %p417 = pneg %p67
        %p418 = pneg %p64
        %p419 = pneg %p88
        %p420 = pneg %p85
        %p421 = pneg %p109
        %p422 = pneg %p106
        %p423 = pneg %p130
        %p424 = pneg %p127
        %p425 = pneg %p151
        %p426 = pneg %p148
        %p427 = pneg %p172
        %p428 = pneg %p169
        %p429 = pneg %p193
        %p430 = pneg %p190
        %p431 = pneg %p214
        %p432 = pneg %p211
        %p433 = pneg %p235
        %p434 = pneg %p232
        %p435 = pneg %p256
        %p436 = pneg %p253
        %p437 = pneg %p277
        %p438 = pneg %p274
        %p439 = pneg %p298
        %p440 = pneg %p295
        %p441 = pneg %p324
        %p442 = pneg %p321
        %p443 = scmp.lt.s32.totalorder %s25, 1
        %s444 = scalar_select %p443, %s25, 1
        %s445 = smul.addr %s444, 8
        %s446 = smul.addr %s445, 8
        %s447 = scalar_lea.vmem %s13, %s446
        %p448 = scmp.lt.s32.totalorder %s25, 1
        %s449 = scalar_select %p448, %s25, 1
        %s450 = smul.addr %s449, 32
        %s451 = smul.addr %s450, 8
        %s452 = scalar_lea.vmem %s0, %s451
        %p453 = scmp.lt.s32.totalorder %s25, 1
        %s454 = scalar_select %p453, %s25, 1
        %s455 = smul.addr %s454, 8
        %s456 = smul.addr %s455, 8
        %s457 = scalar_lea.vmem %s13, %s456
        %vm458 = vcmask 64512
        %459 = vst.msk [vmem:[#allocation3] sm:$0xff] %vm458, 0.0
        %460 = vst.msk [vmem:[#allocation3 + $0x8] sm:$0xff] %vm458, 0.0
        %vm461 = vcmask 58368
        %462 = vst.msk [vmem:[#allocation3 + $0x10] sm:$0x3] %vm461, 0.0
        %463 = vst.msk [vmem:[#allocation3 + $0x18] sm:$0xff] %vm458, 0.0
        %464 = vst.msk [vmem:[#allocation3 + $0x20] sm:$0xff] %vm458, 0.0
        %465 = vst.msk [vmem:[#allocation3 + $0x28] sm:$0x3] %vm461, 0.0
        %466 = vst.msk [vmem:[#allocation3 + $0x30] sm:$0xff] %vm458, 0.0
        %467 = vst.msk [vmem:[#allocation3 + $0x38] sm:$0xff] %vm458, 0.0
        %468 = vst.msk [vmem:[#allocation3 + $0x40] sm:$0x3] %vm461, 0.0
        %469 = vst.msk [vmem:[#allocation3 + $0x48] sm:$0xff] %vm458, 0.0
        %470 = vst.msk [vmem:[#allocation3 + $0x50] sm:$0xff] %vm458, 0.0
        %471 = vst.msk [vmem:[#allocation3 + $0x58] sm:$0x3] %vm461, 0.0
        %472 = vst.msk [vmem:[#allocation3 + $0x60] sm:$0xff] %vm458, 0.0
        %473 = vst.msk [vmem:[#allocation3 + $0x68] sm:$0xff] %vm458, 0.0
        %474 = vst.msk [vmem:[#allocation3 + $0x70] sm:$0x3] %vm461, 0.0
        %475 = vst.msk [vmem:[#allocation3 + $0x78] sm:$0xff] %vm458, 0.0
        %476 = vst.msk [vmem:[#allocation3 + $0x80] sm:$0xff] %vm458, 0.0
        %477 = vst.msk [vmem:[#allocation3 + $0x88] sm:$0x3] %vm461, 0.0
        %478 = vst.msk [vmem:[#allocation3 + $0x90] sm:$0xff] %vm458, 0.0
        %479 = vst.msk [vmem:[#allocation3 + $0x98] sm:$0xff] %vm458, 0.0
        %480 = vst.msk [vmem:[#allocation3 + $0xa0] sm:$0x3] %vm461, 0.0
        %481 = vst.msk [vmem:[#allocation3 + $0xa8] sm:$0xff] %vm458, 0.0
        %482 = vst.msk [vmem:[#allocation3 + $0xb0] sm:$0xff] %vm458, 0.0
        %483 = vst.msk [vmem:[#allocation3 + $0xb8] sm:$0x3] %vm461, 0.0
        %484 = vst.msk [vmem:[#allocation3 + $0xc0] sm:$0xff] %vm458, 0.0
        %485 = vst.msk [vmem:[#allocation3 + $0xc8] sm:$0xff] %vm458, 0.0
        %486 = vst.msk [vmem:[#allocation3 + $0xd0] sm:$0x3] %vm461, 0.0
        %487 = vst.msk [vmem:[#allocation3 + $0xd8] sm:$0xff] %vm458, 0.0
        %488 = vst.msk [vmem:[#allocation3 + $0xe0] sm:$0xff] %vm458, 0.0
        %489 = vst.msk [vmem:[#allocation3 + $0xe8] sm:$0x3] %vm461, 0.0
        %490 = vst.msk [vmem:[#allocation3 + $0xf0] sm:$0xff] %vm458, 0.0
        %491 = vst.msk [vmem:[#allocation3 + $0xf8] sm:$0xff] %vm458, 0.0
        %492 = vst.msk [vmem:[#allocation3 + $0x100] sm:$0x3] %vm461, 0.0
        %493 = vst.msk [vmem:[#allocation3 + $0x108] sm:$0xff] %vm458, 0.0
        %494 = vst.msk [vmem:[#allocation3 + $0x110] sm:$0xff] %vm458, 0.0
        %495 = vst.msk [vmem:[#allocation3 + $0x118] sm:$0x3] %vm461, 0.0
        %496 = vst.msk [vmem:[#allocation3 + $0x120] sm:$0xff] %vm458, 0.0
        %497 = vst.msk [vmem:[#allocation3 + $0x128] sm:$0xff] %vm458, 0.0
        %498 = vst.msk [vmem:[#allocation3 + $0x130] sm:$0x3] %vm461, 0.0
        %499 = vst.msk [vmem:[#allocation3 + $0x138] sm:$0xff] %vm458, 0.0
        %500 = vst.msk [vmem:[#allocation3 + $0x140] sm:$0xff] %vm458, 0.0
        %501 = vst.msk [vmem:[#allocation3 + $0x148] sm:$0x3] %vm461, 0.0
        %502 = vst.msk [vmem:[#allocation3 + $0x150] sm:$0xff] %vm458, 0.0
        %503 = vst.msk [vmem:[#allocation3 + $0x158] sm:$0xff] %vm458, 0.0
        %504 = vst.msk [vmem:[#allocation3 + $0x160] sm:$0x3] %vm461, 0.0
        %505 = vst.msk [vmem:[#allocation3 + $0x168] sm:$0xff] %vm458, 0.0
        %506 = vst.msk [vmem:[#allocation3 + $0x170] sm:$0xff] %vm458, 0.0
        %507 = vst.msk [vmem:[#allocation3 + $0x178] sm:$0x3] %vm461, 0.0
        %508 = vst.msk [vmem:[#allocation3 + $0x180] sm:$0xff] %vm458, 0.0
        %509 = vst.msk [vmem:[#allocation3 + $0x188] sm:$0xff] %vm458, 0.0
        %510 = vst.msk [vmem:[#allocation3 + $0x190] sm:$0x3] %vm461, 0.0
        %511 = vst.msk [vmem:[#allocation3 + $0x198] sm:$0xff] %vm458, 0.0
        %512 = vst.msk [vmem:[#allocation3 + $0x1a0] sm:$0xff] %vm458, 0.0
        %513 = vst.msk [vmem:[#allocation3 + $0x1a8] sm:$0x3] %vm461, 0.0
        %vm514 = vcmask 261120
        %515 = vst.msk [vmem:[#allocation4] sm:$0xff] %vm514, 0.0
        %vm516 = vcmask 254976
        %517 = vst.msk [vmem:[#allocation4 + $0x8] sm:$0x3] %vm516, 0.0
        %518 = vst.msk [vmem:[#allocation4 + $0x10] sm:$0xff] %vm514, 0.0
        %519 = vst.msk [vmem:[#allocation4 + $0x18] sm:$0x3] %vm516, 0.0
        %520 = vst.msk [vmem:[#allocation4 + $0x20] sm:$0xff] %vm514, 0.0
        %521 = vst.msk [vmem:[#allocation4 + $0x28] sm:$0x3] %vm516, 0.0
        %522 = vst.msk [vmem:[#allocation4 + $0x30] sm:$0xff] %vm514, 0.0
        %523 = vst.msk [vmem:[#allocation4 + $0x38] sm:$0x3] %vm516, 0.0
        %524 = vst.msk [vmem:[#allocation4 + $0x40] sm:$0xff] %vm514, 0.0
        %525 = vst.msk [vmem:[#allocation4 + $0x48] sm:$0x3] %vm516, 0.0
        %526 = vst.msk [vmem:[#allocation4 + $0x50] sm:$0xff] %vm514, 0.0
        %527 = vst.msk [vmem:[#allocation4 + $0x58] sm:$0x3] %vm516, 0.0
        %528 = vst.msk [vmem:[#allocation4 + $0x60] sm:$0xff] %vm514, 0.0
        %529 = vst.msk [vmem:[#allocation4 + $0x68] sm:$0x3] %vm516, 0.0
        %530 = vst.msk [vmem:[#allocation4 + $0x70] sm:$0xff] %vm514, 0.0
        %531 = vst.msk [vmem:[#allocation4 + $0x78] sm:$0x3] %vm516, 0.0
        %532 = vst.msk [vmem:[#allocation4 + $0x80] sm:$0xff] %vm514, 0.0
        %533 = vst.msk [vmem:[#allocation4 + $0x88] sm:$0x3] %vm516, 0.0
        %534 = vst.msk [vmem:[#allocation4 + $0x90] sm:$0xff] %vm514, 0.0
        %535 = vst.msk [vmem:[#allocation4 + $0x98] sm:$0x3] %vm516, 0.0
        %vm536 = vcmask 521216
        %537 = vst.msk [vmem:[#allocation5] sm:$0x3f] %vm536, 0.0
        %538 = vst.msk [vmem:[#allocation5 + $0x8] sm:$0x3f] %vm536, 0.0
        %539 = vst.msk [vmem:[#allocation5 + $0x10] sm:$0x3f] %vm536, 0.0
        %540 = vst.msk [vmem:[#allocation5 + $0x18] sm:$0x3f] %vm536, 0.0
        %541 = vst.msk [vmem:[#allocation5 + $0x20] sm:$0x3f] %vm536, 0.0
        %542 = vst.msk [vmem:[#allocation5 + $0x28] sm:$0x3f] %vm536, 0.0
        %543 = vst [vmem:[#allocation6] sm:$0x7] 0.0
        %544 = vst [vmem:[#allocation6 + $0x4] sm:$0x7] 0.0
        %545 = vst [vmem:[#allocation6 + $0x8] sm:$0x7] 0.0
        %vm546 = vcmask 520192
        %547 = vst.msk [vmem:[#allocation7] sm:$0x1f] %vm546, 0.0
        %548 = vst.msk [vmem:[#allocation7 + $0x8] sm:$0x1f] %vm546, 0.0
        %549 = vst.msk [vmem:[#allocation7 + $0x10] sm:$0x1f] %vm546, 0.0
        %550 = vst.msk [vmem:[#allocation7 + $0x18] sm:$0x1f] %vm546, 0.0
        %551 = vst.msk [vmem:[#allocation7 + $0x20] sm:$0x1f] %vm546, 0.0
        %552 = vst.msk [vmem:[#allocation8] sm:$0xff] %vm514, 0.0
        %vm553 = vcmask 253952
        %554 = vst.msk [vmem:[#allocation8 + $0x8] sm:$0x1] %vm553, 0.0
        %555 = vst.msk [vmem:[#allocation8 + $0x10] sm:$0xff] %vm514, 0.0
        %556 = vst.msk [vmem:[#allocation8 + $0x18] sm:$0x1] %vm553, 0.0
        %557 = vst.msk [vmem:[#allocation8 + $0x20] sm:$0xff] %vm514, 0.0
        %558 = vst.msk [vmem:[#allocation8 + $0x28] sm:$0x1] %vm553, 0.0
        %559 = vst.msk [vmem:[#allocation8 + $0x30] sm:$0xff] %vm514, 0.0
        %560 = vst.msk [vmem:[#allocation8 + $0x38] sm:$0x1] %vm553, 0.0
        %561 = vst.msk [vmem:[#allocation8 + $0x40] sm:$0xff] %vm514, 0.0
        %562 = vst.msk [vmem:[#allocation8 + $0x48] sm:$0x1] %vm553, 0.0
        %563 = vst.msk [vmem:[#allocation8 + $0x50] sm:$0xff] %vm514, 0.0
        %564 = vst.msk [vmem:[#allocation8 + $0x58] sm:$0x1] %vm553, 0.0
        %565 = vst.msk [vmem:[#allocation8 + $0x60] sm:$0xff] %vm514, 0.0
        %566 = vst.msk [vmem:[#allocation8 + $0x68] sm:$0x1] %vm553, 0.0
        %567 = vst.msk [vmem:[#allocation8 + $0x70] sm:$0xff] %vm514, 0.0
        %568 = vst.msk [vmem:[#allocation8 + $0x78] sm:$0x1] %vm553, 0.0
        %569 = vst.msk [vmem:[#allocation8 + $0x80] sm:$0xff] %vm514, 0.0
        %570 = vst.msk [vmem:[#allocation8 + $0x88] sm:$0x1] %vm553, 0.0
        %v571 = vld [vmem:[%s452] sm:$0xff]
        %v572 = vld [vmem:[%s452 + $0x8] sm:$0xff]
        %v573 = vld [vmem:[%s452 + $0x10] sm:$0xff]
        %v574 = vld [vmem:[%s452 + $0x18] sm:$0xff]
        %v575 = vld [vmem:[%s452 + $0x20] sm:$0xff]
        %v576 = vld [vmem:[%s452 + $0x28] sm:$0xff]
        %v577 = vld [vmem:[%s452 + $0x30] sm:$0xff]
        %v578 = vld [vmem:[%s452 + $0x38] sm:$0xff]
        %v579 = vld [vmem:[%s452 + $0x40] sm:$0xff]
        %v580 = vld [vmem:[%s452 + $0x48] sm:$0xff]
        %v581 = vld [vmem:[%s452 + $0x50] sm:$0xff]
        %v582 = vld [vmem:[%s452 + $0x58] sm:$0xff]
        %v583 = vld [vmem:[%s452 + $0x60] sm:$0xff]
        %v584 = vld [vmem:[%s452 + $0x68] sm:$0xff]
        %v585 = vld [vmem:[%s452 + $0x70] sm:$0xff]
        %v586 = vld [vmem:[%s452 + $0x78] sm:$0xff]
        %v587 = vld [vmem:[%s452 + $0x80] sm:$0xff]
        %v588 = vld [vmem:[%s452 + $0x88] sm:$0xff]
        %v589 = vld [vmem:[%s452 + $0x90] sm:$0xff]
        %v590 = vld [vmem:[%s452 + $0x98] sm:$0xff]
        %v591 = vld [vmem:[%s452 + $0xa0] sm:$0xff]
        %v592 = vld [vmem:[%s452 + $0xa8] sm:$0xff]
        %v593 = vld [vmem:[%s452 + $0xb0] sm:$0xff]
        %v594 = vld [vmem:[%s452 + $0xb8] sm:$0xff]
        %v595 = vld [vmem:[%s452 + $0xc0] sm:$0xff]
        %v596 = vld [vmem:[%s452 + $0xc8] sm:$0xff]
        %v597 = vld [vmem:[%s452 + $0xd0] sm:$0xff]
        %v598 = vld [vmem:[%s452 + $0xd8] sm:$0xff]
        %v599 = vld [vmem:[%s452 + $0xe0] sm:$0xff]
        %v600 = vld [vmem:[%s452 + $0xe8] sm:$0xff]
        %v601 = vld [vmem:[%s452 + $0xf0] sm:$0xff]
        %v602 = vld [vmem:[%s452 + $0xf8] sm:$0xff]
        %s603 = scalar_lea.vmem [#allocation3], 24
        %vm604 = vcmask 23552
        %605 = vst.msk [vmem:[%s603 + $0x1] sm:$0xff] %vm604, %v571
        %606 = vst.msk [vmem:[%s603 + $0x9] sm:$0xff] %vm604, %v572
        %607 = vst.msk [vmem:[%s603 + $0x19] sm:$0xff] %vm604, %v573
        %608 = vst.msk [vmem:[%s603 + $0x21] sm:$0xff] %vm604, %v574
        %609 = vst.msk [vmem:[%s603 + $0x31] sm:$0xff] %vm604, %v575
        %610 = vst.msk [vmem:[%s603 + $0x39] sm:$0xff] %vm604, %v576
        %611 = vst.msk [vmem:[%s603 + $0x49] sm:$0xff] %vm604, %v577
        %612 = vst.msk [vmem:[%s603 + $0x51] sm:$0xff] %vm604, %v578
        %613 = vst.msk [vmem:[%s603 + $0x61] sm:$0xff] %vm604, %v579
        %614 = vst.msk [vmem:[%s603 + $0x69] sm:$0xff] %vm604, %v580
        %615 = vst.msk [vmem:[%s603 + $0x79] sm:$0xff] %vm604, %v581
        %616 = vst.msk [vmem:[%s603 + $0x81] sm:$0xff] %vm604, %v582
        %617 = vst.msk [vmem:[%s603 + $0x91] sm:$0xff] %vm604, %v583
        %618 = vst.msk [vmem:[%s603 + $0x99] sm:$0xff] %vm604, %v584
        %619 = vst.msk [vmem:[%s603 + $0xa9] sm:$0xff] %vm604, %v585
        %620 = vst.msk [vmem:[%s603 + $0xb1] sm:$0xff] %vm604, %v586
        %621 = vst.msk [vmem:[%s603 + $0xc1] sm:$0xff] %vm604, %v587
        %622 = vst.msk [vmem:[%s603 + $0xc9] sm:$0xff] %vm604, %v588
        %623 = vst.msk [vmem:[%s603 + $0xd9] sm:$0xff] %vm604, %v589
        %624 = vst.msk [vmem:[%s603 + $0xe1] sm:$0xff] %vm604, %v590
        %625 = vst.msk [vmem:[%s603 + $0xf1] sm:$0xff] %vm604, %v591
        %626 = vst.msk [vmem:[%s603 + $0xf9] sm:$0xff] %vm604, %v592
        %627 = vst.msk [vmem:[%s603 + $0x109] sm:$0xff] %vm604, %v593
        %628 = vst.msk [vmem:[%s603 + $0x111] sm:$0xff] %vm604, %v594
        %629 = vst.msk [vmem:[%s603 + $0x121] sm:$0xff] %vm604, %v595
        %630 = vst.msk [vmem:[%s603 + $0x129] sm:$0xff] %vm604, %v596
        %631 = vst.msk [vmem:[%s603 + $0x139] sm:$0xff] %vm604, %v597
        %632 = vst.msk [vmem:[%s603 + $0x141] sm:$0xff] %vm604, %v598
        %633 = vst.msk [vmem:[%s603 + $0x151] sm:$0xff] %vm604, %v599
        %634 = vst.msk [vmem:[%s603 + $0x159] sm:$0xff] %vm604, %v600
        %635 = vst.msk [vmem:[%s603 + $0x169] sm:$0xff] %vm604, %v601
        %636 = vst.msk [vmem:[%s603 + $0x171] sm:$0xff] %vm604, %v602
        %v637 = vld [vmem:[#allocation3] sm:$0xff]
        %v638 = vld [vmem:[#allocation3 + $0x8] sm:$0xff]
        %v639 = vld [vmem:[#allocation3 + $0x18] sm:$0xff]
        %v640 = vld [vmem:[#allocation3 + $0x20] sm:$0xff]
        %v641 = vld [vmem:[#allocation3 + $0x30] sm:$0xff]
        %v642 = vld [vmem:[#allocation3 + $0x38] sm:$0xff]
        %v643 = vld [vmem:[#allocation3 + $0x48] sm:$0xff]
        %v644 = vld [vmem:[#allocation3 + $0x50] sm:$0xff]
        %v645 = vld [vmem:[#allocation3 + $0x60] sm:$0xff]
        %v646 = vld [vmem:[#allocation3 + $0x68] sm:$0xff]
        %v647 = vld [vmem:[#allocation3 + $0x78] sm:$0xff]
        %v648 = vld [vmem:[#allocation3 + $0x80] sm:$0xff]
        %v649 = vld [vmem:[#allocation3 + $0x90] sm:$0xff]
        %v650 = vld [vmem:[#allocation3 + $0x98] sm:$0xff]
        %v651 = vld [vmem:[#allocation3 + $0xa8] sm:$0xff]
        %v652 = vld [vmem:[#allocation3 + $0xb0] sm:$0xff]
        %v653 = vld [vmem:[#allocation3 + $0xc0] sm:$0xff]
        %v654 = vld [vmem:[#allocation3 + $0xc8] sm:$0xff]
        %v655 = vld [vmem:[#allocation3 + $0xd8] sm:$0xff]
        %v656 = vld [vmem:[#allocation3 + $0xe0] sm:$0xff]
        %v657 = vld [vmem:[#allocation3 + $0xf0] sm:$0xff]
        %v658 = vld [vmem:[#allocation3 + $0xf8] sm:$0xff]
        %v659 = vld [vmem:[#allocation3 + $0x108] sm:$0xff]
        %v660 = vld [vmem:[#allocation3 + $0x110] sm:$0xff]
        %v661 = vld [vmem:[#allocation3 + $0x120] sm:$0xff]
        %v662 = vld [vmem:[#allocation3 + $0x128] sm:$0xff]
        %v663 = vld [vmem:[#allocation3 + $0x138] sm:$0xff]
        %v664 = vld [vmem:[#allocation3 + $0x140] sm:$0xff]
        %v665 = vld [vmem:[#allocation3 + $0x150] sm:$0xff]
        %v666 = vld [vmem:[#allocation3 + $0x158] sm:$0xff]
        %v667 = vld [vmem:[#allocation3 + $0x168] sm:$0xff]
        %v668 = vld [vmem:[#allocation3 + $0x170] sm:$0xff]
        %669 = vst.msk [vmem:[#allocation2] sm:$0xff] %vm458, %v637
        %670 = vst.msk [vmem:[#allocation2 + $0x28] sm:$0xff] %vm458, %v638
        %671 = vst.msk [vmem:[#allocation2 + $0x50] sm:$0xff] %vm458, %v639
        %672 = vst.msk [vmem:[#allocation2 + $0x78] sm:$0xff] %vm458, %v640
        %673 = vst.msk [vmem:[#allocation2 + $0xa0] sm:$0xff] %vm458, %v641
        %674 = vst.msk [vmem:[#allocation2 + $0xc8] sm:$0xff] %vm458, %v642
        %675 = vst.msk [vmem:[#allocation2 + $0xf0] sm:$0xff] %vm458, %v643
        %676 = vst.msk [vmem:[#allocation2 + $0x118] sm:$0xff] %vm458, %v644
        %677 = vst.msk [vmem:[#allocation2 + $0x140] sm:$0xff] %vm458, %v645
        %678 = vst.msk [vmem:[#allocation2 + $0x168] sm:$0xff] %vm458, %v646
        %679 = vst.msk [vmem:[#allocation2 + $0x190] sm:$0xff] %vm458, %v647
        %680 = vst.msk [vmem:[#allocation2 + $0x1b8] sm:$0xff] %vm458, %v648
        %681 = vst.msk [vmem:[#allocation2 + $0x1e0] sm:$0xff] %vm458, %v649
        %682 = vst.msk [vmem:[#allocation2 + $0x208] sm:$0xff] %vm458, %v650
        %683 = vst.msk [vmem:[#allocation2 + $0x230] sm:$0xff] %vm458, %v651
        %684 = vst.msk [vmem:[#allocation2 + $0x258] sm:$0xff] %vm458, %v652
        %685 = vst.msk [vmem:[#allocation2 + $0x280] sm:$0xff] %vm458, %v653
        %686 = vst.msk [vmem:[#allocation2 + $0x2a8] sm:$0xff] %vm458, %v654
        %687 = vst.msk [vmem:[#allocation2 + $0x2d0] sm:$0xff] %vm458, %v655
        %688 = vst.msk [vmem:[#allocation2 + $0x2f8] sm:$0xff] %vm458, %v656
        %689 = vst.msk [vmem:[#allocation2 + $0x320] sm:$0xff] %vm458, %v657
        %690 = vst.msk [vmem:[#allocation2 + $0x348] sm:$0xff] %vm458, %v658
        %691 = vst.msk [vmem:[#allocation2 + $0x370] sm:$0xff] %vm458, %v659
        %692 = vst.msk [vmem:[#allocation2 + $0x398] sm:$0xff] %vm458, %v660
        %693 = vst.msk [vmem:[#allocation2 + $0x3c0] sm:$0xff] %vm458, %v661
        %694 = vst.msk [vmem:[#allocation2 + $0x3e8] sm:$0xff] %vm458, %v662
        %695 = vst.msk [vmem:[#allocation2 + $0x410] sm:$0xff] %vm458, %v663
        %696 = vst.msk [vmem:[#allocation2 + $0x438] sm:$0xff] %vm458, %v664
        %697 = vst.msk [vmem:[#allocation2 + $0x460] sm:$0xff] %vm458, %v665
        %698 = vst.msk [vmem:[#allocation2 + $0x488] sm:$0xff] %vm458, %v666
        %699 = vst.msk [vmem:[#allocation2 + $0x4b0] sm:$0xff] %vm458, %v667
        %700 = vst.msk [vmem:[#allocation2 + $0x4d8] sm:$0xff] %vm458, %v668
        %v701 = vld [vmem:[#allocation3 + $0x1] sm:$0xff]
        %v702 = vld [vmem:[#allocation3 + $0x9] sm:$0xff]
        %v703 = vld [vmem:[#allocation3 + $0x19] sm:$0xff]
        %v704 = vld [vmem:[#allocation3 + $0x21] sm:$0xff]
        %v705 = vld [vmem:[#allocation3 + $0x31] sm:$0xff]
        %v706 = vld [vmem:[#allocation3 + $0x39] sm:$0xff]
        %v707 = vld [vmem:[#allocation3 + $0x49] sm:$0xff]
        %v708 = vld [vmem:[#allocation3 + $0x51] sm:$0xff]
        %v709 = vld [vmem:[#allocation3 + $0x61] sm:$0xff]
        %v710 = vld [vmem:[#allocation3 + $0x69] sm:$0xff]
        %v711 = vld [vmem:[#allocation3 + $0x79] sm:$0xff]
        %v712 = vld [vmem:[#allocation3 + $0x81] sm:$0xff]
        %v713 = vld [vmem:[#allocation3 + $0x91] sm:$0xff]
        %v714 = vld [vmem:[#allocation3 + $0x99] sm:$0xff]
        %v715 = vld [vmem:[#allocation3 + $0xa9] sm:$0xff]
        %v716 = vld [vmem:[#allocation3 + $0xb1] sm:$0xff]
        %v717 = vld [vmem:[#allocation3 + $0xc1] sm:$0xff]
        %v718 = vld [vmem:[#allocation3 + $0xc9] sm:$0xff]
        %v719 = vld [vmem:[#allocation3 + $0xd9] sm:$0xff]
        %v720 = vld [vmem:[#allocation3 + $0xe1] sm:$0xff]
        %v721 = vld [vmem:[#allocation3 + $0xf1] sm:$0xff]
        %v722 = vld [vmem:[#allocation3 + $0xf9] sm:$0xff]
        %v723 = vld [vmem:[#allocation3 + $0x109] sm:$0xff]
        %v724 = vld [vmem:[#allocation3 + $0x111] sm:$0xff]
        %v725 = vld [vmem:[#allocation3 + $0x121] sm:$0xff]
        %v726 = vld [vmem:[#allocation3 + $0x129] sm:$0xff]
        %v727 = vld [vmem:[#allocation3 + $0x139] sm:$0xff]
        %v728 = vld [vmem:[#allocation3 + $0x141] sm:$0xff]
        %v729 = vld [vmem:[#allocation3 + $0x151] sm:$0xff]
        %v730 = vld [vmem:[#allocation3 + $0x159] sm:$0xff]
        %v731 = vld [vmem:[#allocation3 + $0x169] sm:$0xff]
        %v732 = vld [vmem:[#allocation3 + $0x171] sm:$0xff]
        %765 = vrot.lane.b32.xlu0 %v701, 8
        %v766 = vpop.permute.xlu0 %765
        %767 = vrot.lane.b32.xlu0 %v702, 8
        %v768 = vpop.permute.xlu0 %767
        %769 = vrot.lane.b32.xlu0 %v703, 8
        %v770 = vpop.permute.xlu0 %769
        %771 = vrot.lane.b32.xlu0 %v704, 8
        %v772 = vpop.permute.xlu0 %771
        %773 = vrot.lane.b32.xlu0 %v705, 8
        %v774 = vpop.permute.xlu0 %773
        %775 = vrot.lane.b32.xlu0 %v706, 8
        %v776 = vpop.permute.xlu0 %775
        %777 = vrot.lane.b32.xlu0 %v707, 8
        %v778 = vpop.permute.xlu0 %777
        %779 = vrot.lane.b32.xlu0 %v708, 8
        %v780 = vpop.permute.xlu0 %779
        %781 = vrot.lane.b32.xlu0 %v709, 8
        %v782 = vpop.permute.xlu0 %781
        %783 = vrot.lane.b32.xlu0 %v710, 8
        %v784 = vpop.permute.xlu0 %783
        %785 = vrot.lane.b32.xlu0 %v711, 8
        %v786 = vpop.permute.xlu0 %785
        %787 = vrot.lane.b32.xlu0 %v712, 8
        %v788 = vpop.permute.xlu0 %787
        %789 = vrot.lane.b32.xlu0 %v713, 8
        %v790 = vpop.permute.xlu0 %789
        %791 = vrot.lane.b32.xlu0 %v714, 8
        %v792 = vpop.permute.xlu0 %791
        %793 = vrot.lane.b32.xlu0 %v715, 8
        %v794 = vpop.permute.xlu0 %793
        %795 = vrot.lane.b32.xlu0 %v716, 8
        %v796 = vpop.permute.xlu0 %795
        %797 = vrot.lane.b32.xlu0 %v717, 8
        %v798 = vpop.permute.xlu0 %797
        %799 = vrot.lane.b32.xlu0 %v718, 8
        %v800 = vpop.permute.xlu0 %799
        %801 = vrot.lane.b32.xlu0 %v719, 8
        %v802 = vpop.permute.xlu0 %801
        %803 = vrot.lane.b32.xlu0 %v720, 8
        %v804 = vpop.permute.xlu0 %803
        %805 = vrot.lane.b32.xlu0 %v721, 8
        %v806 = vpop.permute.xlu0 %805
        %807 = vrot.lane.b32.xlu0 %v722, 8
        %v808 = vpop.permute.xlu0 %807
        %809 = vrot.lane.b32.xlu0 %v723, 8
        %v810 = vpop.permute.xlu0 %809
        %811 = vrot.lane.b32.xlu0 %v724, 8
        %v812 = vpop.permute.xlu0 %811
        %813 = vrot.lane.b32.xlu0 %v725, 8
        %v814 = vpop.permute.xlu0 %813
        %815 = vrot.lane.b32.xlu0 %v726, 8
        %v816 = vpop.permute.xlu0 %815
        %817 = vrot.lane.b32.xlu0 %v727, 8
        %v818 = vpop.permute.xlu0 %817
        %819 = vrot.lane.b32.xlu0 %v728, 8
        %v820 = vpop.permute.xlu0 %819
        %821 = vrot.lane.b32.xlu0 %v729, 8
        %v822 = vpop.permute.xlu0 %821
        %823 = vrot.lane.b32.xlu0 %v730, 8
        %v824 = vpop.permute.xlu0 %823
        %825 = vrot.lane.b32.xlu0 %v731, 8
        %v826 = vpop.permute.xlu0 %825
        %827 = vrot.lane.b32.xlu0 %v732, 8
        %v828 = vpop.permute.xlu0 %827
        %vm861 = vcmask 130112
        %862 = vst.msk [vmem:[#allocation2] sm:$0xff] %vm861, %v766
        %863 = vst.msk [vmem:[#allocation2 + $0x28] sm:$0xff] %vm861, %v768
        %864 = vst.msk [vmem:[#allocation2 + $0x50] sm:$0xff] %vm861, %v770
        %865 = vst.msk [vmem:[#allocation2 + $0x78] sm:$0xff] %vm861, %v772
        %866 = vst.msk [vmem:[#allocation2 + $0xa0] sm:$0xff] %vm861, %v774
        %867 = vst.msk [vmem:[#allocation2 + $0xc8] sm:$0xff] %vm861, %v776
        %868 = vst.msk [vmem:[#allocation2 + $0xf0] sm:$0xff] %vm861, %v778
        %869 = vst.msk [vmem:[#allocation2 + $0x118] sm:$0xff] %vm861, %v780
        %870 = vst.msk [vmem:[#allocation2 + $0x140] sm:$0xff] %vm861, %v782
        %871 = vst.msk [vmem:[#allocation2 + $0x168] sm:$0xff] %vm861, %v784
        %872 = vst.msk [vmem:[#allocation2 + $0x190] sm:$0xff] %vm861, %v786
        %873 = vst.msk [vmem:[#allocation2 + $0x1b8] sm:$0xff] %vm861, %v788
        %874 = vst.msk [vmem:[#allocation2 + $0x1e0] sm:$0xff] %vm861, %v790
        %875 = vst.msk [vmem:[#allocation2 + $0x208] sm:$0xff] %vm861, %v792
        %876 = vst.msk [vmem:[#allocation2 + $0x230] sm:$0xff] %vm861, %v794
        %877 = vst.msk [vmem:[#allocation2 + $0x258] sm:$0xff] %vm861, %v796
        %878 = vst.msk [vmem:[#allocation2 + $0x280] sm:$0xff] %vm861, %v798
        %879 = vst.msk [vmem:[#allocation2 + $0x2a8] sm:$0xff] %vm861, %v800
        %880 = vst.msk [vmem:[#allocation2 + $0x2d0] sm:$0xff] %vm861, %v802
        %881 = vst.msk [vmem:[#allocation2 + $0x2f8] sm:$0xff] %vm861, %v804
        %882 = vst.msk [vmem:[#allocation2 + $0x320] sm:$0xff] %vm861, %v806
        %883 = vst.msk [vmem:[#allocation2 + $0x348] sm:$0xff] %vm861, %v808
        %884 = vst.msk [vmem:[#allocation2 + $0x370] sm:$0xff] %vm861, %v810
        %885 = vst.msk [vmem:[#allocation2 + $0x398] sm:$0xff] %vm861, %v812
        %886 = vst.msk [vmem:[#allocation2 + $0x3c0] sm:$0xff] %vm861, %v814
        %887 = vst.msk [vmem:[#allocation2 + $0x3e8] sm:$0xff] %vm861, %v816
        %888 = vst.msk [vmem:[#allocation2 + $0x410] sm:$0xff] %vm861, %v818
        %889 = vst.msk [vmem:[#allocation2 + $0x438] sm:$0xff] %vm861, %v820
        %890 = vst.msk [vmem:[#allocation2 + $0x460] sm:$0xff] %vm861, %v822
        %891 = vst.msk [vmem:[#allocation2 + $0x488] sm:$0xff] %vm861, %v824
        %892 = vst.msk [vmem:[#allocation2 + $0x4b0] sm:$0xff] %vm861, %v826
        %893 = vst.msk [vmem:[#allocation2 + $0x4d8] sm:$0xff] %vm861, %v828
        %v894 = vld [vmem:[#allocation3 + $0x2] sm:$0xff]
        %v895 = vld [vmem:[#allocation3 + $0xa] sm:$0xff]
        %v896 = vld [vmem:[#allocation3 + $0x1a] sm:$0xff]
        %v897 = vld [vmem:[#allocation3 + $0x22] sm:$0xff]
        %v898 = vld [vmem:[#allocation3 + $0x32] sm:$0xff]
        %v899 = vld [vmem:[#allocation3 + $0x3a] sm:$0xff]
        %v900 = vld [vmem:[#allocation3 + $0x4a] sm:$0xff]
        %v901 = vld [vmem:[#allocation3 + $0x52] sm:$0xff]
        %v902 = vld [vmem:[#allocation3 + $0x62] sm:$0xff]
        %v903 = vld [vmem:[#allocation3 + $0x6a] sm:$0xff]
        %v904 = vld [vmem:[#allocation3 + $0x7a] sm:$0xff]
        %v905 = vld [vmem:[#allocation3 + $0x82] sm:$0xff]
        %v906 = vld [vmem:[#allocation3 + $0x92] sm:$0xff]
        %v907 = vld [vmem:[#allocation3 + $0x9a] sm:$0xff]
        %v908 = vld [vmem:[#allocation3 + $0xaa] sm:$0xff]
        %v909 = vld [vmem:[#allocation3 + $0xb2] sm:$0xff]
        %v910 = vld [vmem:[#allocation3 + $0xc2] sm:$0xff]
        %v911 = vld [vmem:[#allocation3 + $0xca] sm:$0xff]
        %v912 = vld [vmem:[#allocation3 + $0xda] sm:$0xff]
        %v913 = vld [vmem:[#allocation3 + $0xe2] sm:$0xff]
        %v914 = vld [vmem:[#allocation3 + $0xf2] sm:$0xff]
        %v915 = vld [vmem:[#allocation3 + $0xfa] sm:$0xff]
        %v916 = vld [vmem:[#allocation3 + $0x10a] sm:$0xff]
        %v917 = vld [vmem:[#allocation3 + $0x112] sm:$0xff]
        %v918 = vld [vmem:[#allocation3 + $0x122] sm:$0xff]
        %v919 = vld [vmem:[#allocation3 + $0x12a] sm:$0xff]
        %v920 = vld [vmem:[#allocation3 + $0x13a] sm:$0xff]
        %v921 = vld [vmem:[#allocation3 + $0x142] sm:$0xff]
        %v922 = vld [vmem:[#allocation3 + $0x152] sm:$0xff]
        %v923 = vld [vmem:[#allocation3 + $0x15a] sm:$0xff]
        %v924 = vld [vmem:[#allocation3 + $0x16a] sm:$0xff]
        %v925 = vld [vmem:[#allocation3 + $0x172] sm:$0xff]
        %958 = vrot.lane.b32.xlu0 %v894, 16
        %v959 = vpop.permute.xlu0 %958
        %960 = vrot.lane.b32.xlu0 %v895, 16
        %v961 = vpop.permute.xlu0 %960
        %962 = vrot.lane.b32.xlu0 %v896, 16
        %v963 = vpop.permute.xlu0 %962
        %964 = vrot.lane.b32.xlu0 %v897, 16
        %v965 = vpop.permute.xlu0 %964
        %966 = vrot.lane.b32.xlu0 %v898, 16
        %v967 = vpop.permute.xlu0 %966
        %968 = vrot.lane.b32.xlu0 %v899, 16
        %v969 = vpop.permute.xlu0 %968
        %970 = vrot.lane.b32.xlu0 %v900, 16
        %v971 = vpop.permute.xlu0 %970
        %972 = vrot.lane.b32.xlu0 %v901, 16
        %v973 = vpop.permute.xlu0 %972
        %974 = vrot.lane.b32.xlu0 %v902, 16
        %v975 = vpop.permute.xlu0 %974
        %976 = vrot.lane.b32.xlu0 %v903, 16
        %v977 = vpop.permute.xlu0 %976
        %978 = vrot.lane.b32.xlu0 %v904, 16
        %v979 = vpop.permute.xlu0 %978
        %980 = vrot.lane.b32.xlu0 %v905, 16
        %v981 = vpop.permute.xlu0 %980
        %982 = vrot.lane.b32.xlu0 %v906, 16
        %v983 = vpop.permute.xlu0 %982
        %984 = vrot.lane.b32.xlu0 %v907, 16
        %v985 = vpop.permute.xlu0 %984
        %986 = vrot.lane.b32.xlu0 %v908, 16
        %v987 = vpop.permute.xlu0 %986
        %988 = vrot.lane.b32.xlu0 %v909, 16
        %v989 = vpop.permute.xlu0 %988
        %990 = vrot.lane.b32.xlu0 %v910, 16
        %v991 = vpop.permute.xlu0 %990
        %992 = vrot.lane.b32.xlu0 %v911, 16
        %v993 = vpop.permute.xlu0 %992
        %994 = vrot.lane.b32.xlu0 %v912, 16
        %v995 = vpop.permute.xlu0 %994
        %996 = vrot.lane.b32.xlu0 %v913, 16
        %v997 = vpop.permute.xlu0 %996
        %998 = vrot.lane.b32.xlu0 %v914, 16
        %v999 = vpop.permute.xlu0 %998
        %1000 = vrot.lane.b32.xlu0 %v915, 16
        %v1001 = vpop.permute.xlu0 %1000
        %1002 = vrot.lane.b32.xlu0 %v916, 16
        %v1003 = vpop.permute.xlu0 %1002
        %1004 = vrot.lane.b32.xlu0 %v917, 16
        %v1005 = vpop.permute.xlu0 %1004
        %1006 = vrot.lane.b32.xlu0 %v918, 16
        %v1007 = vpop.permute.xlu0 %1006
        %1008 = vrot.lane.b32.xlu0 %v919, 16
        %v1009 = vpop.permute.xlu0 %1008
        %1010 = vrot.lane.b32.xlu0 %v920, 16
        %v1011 = vpop.permute.xlu0 %1010
        %1012 = vrot.lane.b32.xlu0 %v921, 16
        %v1013 = vpop.permute.xlu0 %1012
        %1014 = vrot.lane.b32.xlu0 %v922, 16
        %v1015 = vpop.permute.xlu0 %1014
        %1016 = vrot.lane.b32.xlu0 %v923, 16
        %v1017 = vpop.permute.xlu0 %1016
        %1018 = vrot.lane.b32.xlu0 %v924, 16
        %v1019 = vpop.permute.xlu0 %1018
        %1020 = vrot.lane.b32.xlu0 %v925, 16
        %v1021 = vpop.permute.xlu0 %1020
        %vm1054 = vcmask 195712
        %1055 = vst.msk [vmem:[#allocation2] sm:$0xff] %vm1054, %v959
        %1056 = vst.msk [vmem:[#allocation2 + $0x28] sm:$0xff] %vm1054, %v961
        %1057 = vst.msk [vmem:[#allocation2 + $0x50] sm:$0xff] %vm1054, %v963
        %1058 = vst.msk [vmem:[#allocation2 + $0x78] sm:$0xff] %vm1054, %v965
        %1059 = vst.msk [vmem:[#allocation2 + $0xa0] sm:$0xff] %vm1054, %v967
        %1060 = vst.msk [vmem:[#allocation2 + $0xc8] sm:$0xff] %vm1054, %v969
        %1061 = vst.msk [vmem:[#allocation2 + $0xf0] sm:$0xff] %vm1054, %v971
        %1062 = vst.msk [vmem:[#allocation2 + $0x118] sm:$0xff] %vm1054, %v973
        %1063 = vst.msk [vmem:[#allocation2 + $0x140] sm:$0xff] %vm1054, %v975
        %1064 = vst.msk [vmem:[#allocation2 + $0x168] sm:$0xff] %vm1054, %v977
        %1065 = vst.msk [vmem:[#allocation2 + $0x190] sm:$0xff] %vm1054, %v979
        %1066 = vst.msk [vmem:[#allocation2 + $0x1b8] sm:$0xff] %vm1054, %v981
        %1067 = vst.msk [vmem:[#allocation2 + $0x1e0] sm:$0xff] %vm1054, %v983
        %1068 = vst.msk [vmem:[#allocation2 + $0x208] sm:$0xff] %vm1054, %v985
        %1069 = vst.msk [vmem:[#allocation2 + $0x230] sm:$0xff] %vm1054, %v987
        %1070 = vst.msk [vmem:[#allocation2 + $0x258] sm:$0xff] %vm1054, %v989
        %1071 = vst.msk [vmem:[#allocation2 + $0x280] sm:$0xff] %vm1054, %v991
        %1072 = vst.msk [vmem:[#allocation2 + $0x2a8] sm:$0xff] %vm1054, %v993
        %1073 = vst.msk [vmem:[#allocation2 + $0x2d0] sm:$0xff] %vm1054, %v995
        %1074 = vst.msk [vmem:[#allocation2 + $0x2f8] sm:$0xff] %vm1054, %v997
        %1075 = vst.msk [vmem:[#allocation2 + $0x320] sm:$0xff] %vm1054, %v999
        %1076 = vst.msk [vmem:[#allocation2 + $0x348] sm:$0xff] %vm1054, %v1001
        %1077 = vst.msk [vmem:[#allocation2 + $0x370] sm:$0xff] %vm1054, %v1003
        %1078 = vst.msk [vmem:[#allocation2 + $0x398] sm:$0xff] %vm1054, %v1005
        %1079 = vst.msk [vmem:[#allocation2 + $0x3c0] sm:$0xff] %vm1054, %v1007
        %1080 = vst.msk [vmem:[#allocation2 + $0x3e8] sm:$0xff] %vm1054, %v1009
        %1081 = vst.msk [vmem:[#allocation2 + $0x410] sm:$0xff] %vm1054, %v1011
        %1082 = vst.msk [vmem:[#allocation2 + $0x438] sm:$0xff] %vm1054, %v1013
        %1083 = vst.msk [vmem:[#allocation2 + $0x460] sm:$0xff] %vm1054, %v1015
        %1084 = vst.msk [vmem:[#allocation2 + $0x488] sm:$0xff] %vm1054, %v1017
        %1085 = vst.msk [vmem:[#allocation2 + $0x4b0] sm:$0xff] %vm1054, %v1019
        %1086 = vst.msk [vmem:[#allocation2 + $0x4d8] sm:$0xff] %vm1054, %v1021
        %v1087 = vld [vmem:[%s603] sm:$0xff]
        %v1088 = vld [vmem:[%s603 + $0x8] sm:$0xff]
        %v1089 = vld [vmem:[%s603 + $0x18] sm:$0xff]
        %v1090 = vld [vmem:[%s603 + $0x20] sm:$0xff]
        %v1091 = vld [vmem:[%s603 + $0x30] sm:$0xff]
        %v1092 = vld [vmem:[%s603 + $0x38] sm:$0xff]
        %v1093 = vld [vmem:[%s603 + $0x48] sm:$0xff]
        %v1094 = vld [vmem:[%s603 + $0x50] sm:$0xff]
        %v1095 = vld [vmem:[%s603 + $0x60] sm:$0xff]
        %v1096 = vld [vmem:[%s603 + $0x68] sm:$0xff]
        %v1097 = vld [vmem:[%s603 + $0x78] sm:$0xff]
        %v1098 = vld [vmem:[%s603 + $0x80] sm:$0xff]
        %v1099 = vld [vmem:[%s603 + $0x90] sm:$0xff]
        %v1100 = vld [vmem:[%s603 + $0x98] sm:$0xff]
        %v1101 = vld [vmem:[%s603 + $0xa8] sm:$0xff]
        %v1102 = vld [vmem:[%s603 + $0xb0] sm:$0xff]
        %v1103 = vld [vmem:[%s603 + $0xc0] sm:$0xff]
        %v1104 = vld [vmem:[%s603 + $0xc8] sm:$0xff]
        %v1105 = vld [vmem:[%s603 + $0xd8] sm:$0xff]
        %v1106 = vld [vmem:[%s603 + $0xe0] sm:$0xff]
        %v1107 = vld [vmem:[%s603 + $0xf0] sm:$0xff]
        %v1108 = vld [vmem:[%s603 + $0xf8] sm:$0xff]
        %v1109 = vld [vmem:[%s603 + $0x108] sm:$0xff]
        %v1110 = vld [vmem:[%s603 + $0x110] sm:$0xff]
        %v1111 = vld [vmem:[%s603 + $0x120] sm:$0xff]
        %v1112 = vld [vmem:[%s603 + $0x128] sm:$0xff]
        %v1113 = vld [vmem:[%s603 + $0x138] sm:$0xff]
        %v1114 = vld [vmem:[%s603 + $0x140] sm:$0xff]
        %v1115 = vld [vmem:[%s603 + $0x150] sm:$0xff]
        %v1116 = vld [vmem:[%s603 + $0x158] sm:$0xff]
        %v1117 = vld [vmem:[%s603 + $0x168] sm:$0xff]
        %v1118 = vld [vmem:[%s603 + $0x170] sm:$0xff]
        %1151 = vrot.lane.b32.xlu0 %v1087, 24
        %v1152 = vpop.permute.xlu0 %1151
        %1153 = vrot.lane.b32.xlu0 %v1088, 24
        %v1154 = vpop.permute.xlu0 %1153
        %1155 = vrot.lane.b32.xlu0 %v1089, 24
        %v1156 = vpop.permute.xlu0 %1155
        %1157 = vrot.lane.b32.xlu0 %v1090, 24
        %v1158 = vpop.permute.xlu0 %1157
        %1159 = vrot.lane.b32.xlu0 %v1091, 24
        %v1160 = vpop.permute.xlu0 %1159
        %1161 = vrot.lane.b32.xlu0 %v1092, 24
        %v1162 = vpop.permute.xlu0 %1161
        %1163 = vrot.lane.b32.xlu0 %v1093, 24
        %v1164 = vpop.permute.xlu0 %1163
        %1165 = vrot.lane.b32.xlu0 %v1094, 24
        %v1166 = vpop.permute.xlu0 %1165
        %1167 = vrot.lane.b32.xlu0 %v1095, 24
        %v1168 = vpop.permute.xlu0 %1167
        %1169 = vrot.lane.b32.xlu0 %v1096, 24
        %v1170 = vpop.permute.xlu0 %1169
        %1171 = vrot.lane.b32.xlu0 %v1097, 24
        %v1172 = vpop.permute.xlu0 %1171
        %1173 = vrot.lane.b32.xlu0 %v1098, 24
        %v1174 = vpop.permute.xlu0 %1173
        %1175 = vrot.lane.b32.xlu0 %v1099, 24
        %v1176 = vpop.permute.xlu0 %1175
        %1177 = vrot.lane.b32.xlu0 %v1100, 24
        %v1178 = vpop.permute.xlu0 %1177
        %1179 = vrot.lane.b32.xlu0 %v1101, 24
        %v1180 = vpop.permute.xlu0 %1179
        %1181 = vrot.lane.b32.xlu0 %v1102, 24
        %v1182 = vpop.permute.xlu0 %1181
        %1183 = vrot.lane.b32.xlu0 %v1103, 24
        %v1184 = vpop.permute.xlu0 %1183
        %1185 = vrot.lane.b32.xlu0 %v1104, 24
        %v1186 = vpop.permute.xlu0 %1185
        %1187 = vrot.lane.b32.xlu0 %v1105, 24
        %v1188 = vpop.permute.xlu0 %1187
        %1189 = vrot.lane.b32.xlu0 %v1106, 24
        %v1190 = vpop.permute.xlu0 %1189
        %1191 = vrot.lane.b32.xlu0 %v1107, 24
        %v1192 = vpop.permute.xlu0 %1191
        %1193 = vrot.lane.b32.xlu0 %v1108, 24
        %v1194 = vpop.permute.xlu0 %1193
        %1195 = vrot.lane.b32.xlu0 %v1109, 24
        %v1196 = vpop.permute.xlu0 %1195
        %1197 = vrot.lane.b32.xlu0 %v1110, 24
        %v1198 = vpop.permute.xlu0 %1197
        %1199 = vrot.lane.b32.xlu0 %v1111, 24
        %v1200 = vpop.permute.xlu0 %1199
        %1201 = vrot.lane.b32.xlu0 %v1112, 24
        %v1202 = vpop.permute.xlu0 %1201
        %1203 = vrot.lane.b32.xlu0 %v1113, 24
        %v1204 = vpop.permute.xlu0 %1203
        %1205 = vrot.lane.b32.xlu0 %v1114, 24
        %v1206 = vpop.permute.xlu0 %1205
        %1207 = vrot.lane.b32.xlu0 %v1115, 24
        %v1208 = vpop.permute.xlu0 %1207
        %1209 = vrot.lane.b32.xlu0 %v1116, 24
        %v1210 = vpop.permute.xlu0 %1209
        %1211 = vrot.lane.b32.xlu0 %v1117, 24
        %v1212 = vpop.permute.xlu0 %1211
        %1213 = vrot.lane.b32.xlu0 %v1118, 24
        %v1214 = vpop.permute.xlu0 %1213
        %vm1247 = vcmask 261312
        %1248 = vst.msk [vmem:[#allocation2] sm:$0xff] %vm1247, %v1152
        %1249 = vst.msk [vmem:[#allocation2 + $0x28] sm:$0xff] %vm1247, %v1154
        %1250 = vst.msk [vmem:[#allocation2 + $0x50] sm:$0xff] %vm1247, %v1156
        %1251 = vst.msk [vmem:[#allocation2 + $0x78] sm:$0xff] %vm1247, %v1158
        %1252 = vst.msk [vmem:[#allocation2 + $0xa0] sm:$0xff] %vm1247, %v1160
        %1253 = vst.msk [vmem:[#allocation2 + $0xc8] sm:$0xff] %vm1247, %v1162
        %1254 = vst.msk [vmem:[#allocation2 + $0xf0] sm:$0xff] %vm1247, %v1164
        %1255 = vst.msk [vmem:[#allocation2 + $0x118] sm:$0xff] %vm1247, %v1166
        %1256 = vst.msk [vmem:[#allocation2 + $0x140] sm:$0xff] %vm1247, %v1168
        %1257 = vst.msk [vmem:[#allocation2 + $0x168] sm:$0xff] %vm1247, %v1170
        %1258 = vst.msk [vmem:[#allocation2 + $0x190] sm:$0xff] %vm1247, %v1172
        %1259 = vst.msk [vmem:[#allocation2 + $0x1b8] sm:$0xff] %vm1247, %v1174
        %1260 = vst.msk [vmem:[#allocation2 + $0x1e0] sm:$0xff] %vm1247, %v1176
        %1261 = vst.msk [vmem:[#allocation2 + $0x208] sm:$0xff] %vm1247, %v1178
        %1262 = vst.msk [vmem:[#allocation2 + $0x230] sm:$0xff] %vm1247, %v1180
        %1263 = vst.msk [vmem:[#allocation2 + $0x258] sm:$0xff] %vm1247, %v1182
        %1264 = vst.msk [vmem:[#allocation2 + $0x280] sm:$0xff] %vm1247, %v1184
        %1265 = vst.msk [vmem:[#allocation2 + $0x2a8] sm:$0xff] %vm1247, %v1186
        %1266 = vst.msk [vmem:[#allocation2 + $0x2d0] sm:$0xff] %vm1247, %v1188
        %1267 = vst.msk [vmem:[#allocation2 + $0x2f8] sm:$0xff] %vm1247, %v1190
        %1268 = vst.msk [vmem:[#allocation2 + $0x320] sm:$0xff] %vm1247, %v1192
        %1269 = vst.msk [vmem:[#allocation2 + $0x348] sm:$0xff] %vm1247, %v1194
        %1270 = vst.msk [vmem:[#allocation2 + $0x370] sm:$0xff] %vm1247, %v1196
        %1271 = vst.msk [vmem:[#allocation2 + $0x398] sm:$0xff] %vm1247, %v1198
        %1272 = vst.msk [vmem:[#allocation2 + $0x3c0] sm:$0xff] %vm1247, %v1200
        %1273 = vst.msk [vmem:[#allocation2 + $0x3e8] sm:$0xff] %vm1247, %v1202
        %1274 = vst.msk [vmem:[#allocation2 + $0x410] sm:$0xff] %vm1247, %v1204
        %1275 = vst.msk [vmem:[#allocation2 + $0x438] sm:$0xff] %vm1247, %v1206
        %1276 = vst.msk [vmem:[#allocation2 + $0x460] sm:$0xff] %vm1247, %v1208
        %1277 = vst.msk [vmem:[#allocation2 + $0x488] sm:$0xff] %vm1247, %v1210
        %1278 = vst.msk [vmem:[#allocation2 + $0x4b0] sm:$0xff] %vm1247, %v1212
        %1279 = vst.msk [vmem:[#allocation2 + $0x4d8] sm:$0xff] %vm1247, %v1214
        %v1280 = vld [vmem:[%s603 + $0x1] sm:$0xff]
        %v1281 = vld [vmem:[%s603 + $0x9] sm:$0xff]
        %v1282 = vld [vmem:[%s603 + $0x19] sm:$0xff]
        %v1283 = vld [vmem:[%s603 + $0x21] sm:$0xff]
        %v1284 = vld [vmem:[%s603 + $0x31] sm:$0xff]
        %v1285 = vld [vmem:[%s603 + $0x39] sm:$0xff]
        %v1286 = vld [vmem:[%s603 + $0x49] sm:$0xff]
        %v1287 = vld [vmem:[%s603 + $0x51] sm:$0xff]
        %v1288 = vld [vmem:[%s603 + $0x61] sm:$0xff]
        %v1289 = vld [vmem:[%s603 + $0x69] sm:$0xff]
        %v1290 = vld [vmem:[%s603 + $0x79] sm:$0xff]
        %v1291 = vld [vmem:[%s603 + $0x81] sm:$0xff]
        %v1292 = vld [vmem:[%s603 + $0x91] sm:$0xff]
        %v1293 = vld [vmem:[%s603 + $0x99] sm:$0xff]
        %v1294 = vld [vmem:[%s603 + $0xa9] sm:$0xff]
        %v1295 = vld [vmem:[%s603 + $0xb1] sm:$0xff]
        %v1296 = vld [vmem:[%s603 + $0xc1] sm:$0xff]
        %v1297 = vld [vmem:[%s603 + $0xc9] sm:$0xff]
        %v1298 = vld [vmem:[%s603 + $0xd9] sm:$0xff]
        %v1299 = vld [vmem:[%s603 + $0xe1] sm:$0xff]
        %v1300 = vld [vmem:[%s603 + $0xf1] sm:$0xff]
        %v1301 = vld [vmem:[%s603 + $0xf9] sm:$0xff]
        %v1302 = vld [vmem:[%s603 + $0x109] sm:$0xff]
        %v1303 = vld [vmem:[%s603 + $0x111] sm:$0xff]
        %v1304 = vld [vmem:[%s603 + $0x121] sm:$0xff]
        %v1305 = vld [vmem:[%s603 + $0x129] sm:$0xff]
        %v1306 = vld [vmem:[%s603 + $0x139] sm:$0xff]
        %v1307 = vld [vmem:[%s603 + $0x141] sm:$0xff]
        %v1308 = vld [vmem:[%s603 + $0x151] sm:$0xff]
        %v1309 = vld [vmem:[%s603 + $0x159] sm:$0xff]
        %v1310 = vld [vmem:[%s603 + $0x169] sm:$0xff]
        %v1311 = vld [vmem:[%s603 + $0x171] sm:$0xff]
        %1344 = vrot.lane.b32.xlu0 %v1280, 32
        %v1345 = vpop.permute.xlu0 %1344
        %1346 = vrot.lane.b32.xlu0 %v1281, 32
        %v1347 = vpop.permute.xlu0 %1346
        %1348 = vrot.lane.b32.xlu0 %v1282, 32
        %v1349 = vpop.permute.xlu0 %1348
        %1350 = vrot.lane.b32.xlu0 %v1283, 32
        %v1351 = vpop.permute.xlu0 %1350
        %1352 = vrot.lane.b32.xlu0 %v1284, 32
        %v1353 = vpop.permute.xlu0 %1352
        %1354 = vrot.lane.b32.xlu0 %v1285, 32
        %v1355 = vpop.permute.xlu0 %1354
        %1356 = vrot.lane.b32.xlu0 %v1286, 32
        %v1357 = vpop.permute.xlu0 %1356
        %1358 = vrot.lane.b32.xlu0 %v1287, 32
        %v1359 = vpop.permute.xlu0 %1358
        %1360 = vrot.lane.b32.xlu0 %v1288, 32
        %v1361 = vpop.permute.xlu0 %1360
        %1362 = vrot.lane.b32.xlu0 %v1289, 32
        %v1363 = vpop.permute.xlu0 %1362
        %1364 = vrot.lane.b32.xlu0 %v1290, 32
        %v1365 = vpop.permute.xlu0 %1364
        %1366 = vrot.lane.b32.xlu0 %v1291, 32
        %v1367 = vpop.permute.xlu0 %1366
        %1368 = vrot.lane.b32.xlu0 %v1292, 32
        %v1369 = vpop.permute.xlu0 %1368
        %1370 = vrot.lane.b32.xlu0 %v1293, 32
        %v1371 = vpop.permute.xlu0 %1370
        %1372 = vrot.lane.b32.xlu0 %v1294, 32
        %v1373 = vpop.permute.xlu0 %1372
        %1374 = vrot.lane.b32.xlu0 %v1295, 32
        %v1375 = vpop.permute.xlu0 %1374
        %1376 = vrot.lane.b32.xlu0 %v1296, 32
        %v1377 = vpop.permute.xlu0 %1376
        %1378 = vrot.lane.b32.xlu0 %v1297, 32
        %v1379 = vpop.permute.xlu0 %1378
        %1380 = vrot.lane.b32.xlu0 %v1298, 32
        %v1381 = vpop.permute.xlu0 %1380
        %1382 = vrot.lane.b32.xlu0 %v1299, 32
        %v1383 = vpop.permute.xlu0 %1382
        %1384 = vrot.lane.b32.xlu0 %v1300, 32
        %v1385 = vpop.permute.xlu0 %1384
        %1386 = vrot.lane.b32.xlu0 %v1301, 32
        %v1387 = vpop.permute.xlu0 %1386
        %1388 = vrot.lane.b32.xlu0 %v1302, 32
        %v1389 = vpop.permute.xlu0 %1388
        %1390 = vrot.lane.b32.xlu0 %v1303, 32
        %v1391 = vpop.permute.xlu0 %1390
        %1392 = vrot.lane.b32.xlu0 %v1304, 32
        %v1393 = vpop.permute.xlu0 %1392
        %1394 = vrot.lane.b32.xlu0 %v1305, 32
        %v1395 = vpop.permute.xlu0 %1394
        %1396 = vrot.lane.b32.xlu0 %v1306, 32
        %v1397 = vpop.permute.xlu0 %1396
        %1398 = vrot.lane.b32.xlu0 %v1307, 32
        %v1399 = vpop.permute.xlu0 %1398
        %1400 = vrot.lane.b32.xlu0 %v1308, 32
        %v1401 = vpop.permute.xlu0 %1400
        %1402 = vrot.lane.b32.xlu0 %v1309, 32
        %v1403 = vpop.permute.xlu0 %1402
        %1404 = vrot.lane.b32.xlu0 %v1310, 32
        %v1405 = vpop.permute.xlu0 %1404
        %1406 = vrot.lane.b32.xlu0 %v1311, 32
        %v1407 = vpop.permute.xlu0 %1406
        %vm1440 = vcmask 326912
        %1441 = vst.msk [vmem:[#allocation2] sm:$0xff] %vm1440, %v1345
        %1442 = vst.msk [vmem:[#allocation2 + $0x28] sm:$0xff] %vm1440, %v1347
        %1443 = vst.msk [vmem:[#allocation2 + $0x50] sm:$0xff] %vm1440, %v1349
        %1444 = vst.msk [vmem:[#allocation2 + $0x78] sm:$0xff] %vm1440, %v1351
        %1445 = vst.msk [vmem:[#allocation2 + $0xa0] sm:$0xff] %vm1440, %v1353
        %1446 = vst.msk [vmem:[#allocation2 + $0xc8] sm:$0xff] %vm1440, %v1355
        %1447 = vst.msk [vmem:[#allocation2 + $0xf0] sm:$0xff] %vm1440, %v1357
        %1448 = vst.msk [vmem:[#allocation2 + $0x118] sm:$0xff] %vm1440, %v1359
        %1449 = vst.msk [vmem:[#allocation2 + $0x140] sm:$0xff] %vm1440, %v1361
        %1450 = vst.msk [vmem:[#allocation2 + $0x168] sm:$0xff] %vm1440, %v1363
        %1451 = vst.msk [vmem:[#allocation2 + $0x190] sm:$0xff] %vm1440, %v1365
        %1452 = vst.msk [vmem:[#allocation2 + $0x1b8] sm:$0xff] %vm1440, %v1367
        %1453 = vst.msk [vmem:[#allocation2 + $0x1e0] sm:$0xff] %vm1440, %v1369
        %1454 = vst.msk [vmem:[#allocation2 + $0x208] sm:$0xff] %vm1440, %v1371
        %1455 = vst.msk [vmem:[#allocation2 + $0x230] sm:$0xff] %vm1440, %v1373
        %1456 = vst.msk [vmem:[#allocation2 + $0x258] sm:$0xff] %vm1440, %v1375
        %1457 = vst.msk [vmem:[#allocation2 + $0x280] sm:$0xff] %vm1440, %v1377
        %1458 = vst.msk [vmem:[#allocation2 + $0x2a8] sm:$0xff] %vm1440, %v1379
        %1459 = vst.msk [vmem:[#allocation2 + $0x2d0] sm:$0xff] %vm1440, %v1381
        %1460 = vst.msk [vmem:[#allocation2 + $0x2f8] sm:$0xff] %vm1440, %v1383
        %1461 = vst.msk [vmem:[#allocation2 + $0x320] sm:$0xff] %vm1440, %v1385
        %1462 = vst.msk [vmem:[#allocation2 + $0x348] sm:$0xff] %vm1440, %v1387
        %1463 = vst.msk [vmem:[#allocation2 + $0x370] sm:$0xff] %vm1440, %v1389
        %1464 = vst.msk [vmem:[#allocation2 + $0x398] sm:$0xff] %vm1440, %v1391
        %1465 = vst.msk [vmem:[#allocation2 + $0x3c0] sm:$0xff] %vm1440, %v1393
        %1466 = vst.msk [vmem:[#allocation2 + $0x3e8] sm:$0xff] %vm1440, %v1395
        %1467 = vst.msk [vmem:[#allocation2 + $0x410] sm:$0xff] %vm1440, %v1397
        %1468 = vst.msk [vmem:[#allocation2 + $0x438] sm:$0xff] %vm1440, %v1399
        %1469 = vst.msk [vmem:[#allocation2 + $0x460] sm:$0xff] %vm1440, %v1401
        %1470 = vst.msk [vmem:[#allocation2 + $0x488] sm:$0xff] %vm1440, %v1403
        %1471 = vst.msk [vmem:[#allocation2 + $0x4b0] sm:$0xff] %vm1440, %v1405
        %1472 = vst.msk [vmem:[#allocation2 + $0x4d8] sm:$0xff] %vm1440, %v1407
        %v1473 = vld [vmem:[%s603 + $0x2] sm:$0xff]
        %v1474 = vld [vmem:[%s603 + $0xa] sm:$0xff]
        %v1475 = vld [vmem:[%s603 + $0x1a] sm:$0xff]
        %v1476 = vld [vmem:[%s603 + $0x22] sm:$0xff]
        %v1477 = vld [vmem:[%s603 + $0x32] sm:$0xff]
        %v1478 = vld [vmem:[%s603 + $0x3a] sm:$0xff]
        %v1479 = vld [vmem:[%s603 + $0x4a] sm:$0xff]
        %v1480 = vld [vmem:[%s603 + $0x52] sm:$0xff]
        %v1481 = vld [vmem:[%s603 + $0x62] sm:$0xff]
        %v1482 = vld [vmem:[%s603 + $0x6a] sm:$0xff]
        %v1483 = vld [vmem:[%s603 + $0x7a] sm:$0xff]
        %v1484 = vld [vmem:[%s603 + $0x82] sm:$0xff]
        %v1485 = vld [vmem:[%s603 + $0x92] sm:$0xff]
        %v1486 = vld [vmem:[%s603 + $0x9a] sm:$0xff]
        %v1487 = vld [vmem:[%s603 + $0xaa] sm:$0xff]
        %v1488 = vld [vmem:[%s603 + $0xb2] sm:$0xff]
        %v1489 = vld [vmem:[%s603 + $0xc2] sm:$0xff]
        %v1490 = vld [vmem:[%s603 + $0xca] sm:$0xff]
        %v1491 = vld [vmem:[%s603 + $0xda] sm:$0xff]
        %v1492 = vld [vmem:[%s603 + $0xe2] sm:$0xff]
        %v1493 = vld [vmem:[%s603 + $0xf2] sm:$0xff]
        %v1494 = vld [vmem:[%s603 + $0xfa] sm:$0xff]
        %v1495 = vld [vmem:[%s603 + $0x10a] sm:$0xff]
        %v1496 = vld [vmem:[%s603 + $0x112] sm:$0xff]
        %v1497 = vld [vmem:[%s603 + $0x122] sm:$0xff]
        %v1498 = vld [vmem:[%s603 + $0x12a] sm:$0xff]
        %v1499 = vld [vmem:[%s603 + $0x13a] sm:$0xff]
        %v1500 = vld [vmem:[%s603 + $0x142] sm:$0xff]
        %v1501 = vld [vmem:[%s603 + $0x152] sm:$0xff]
        %v1502 = vld [vmem:[%s603 + $0x15a] sm:$0xff]
        %v1503 = vld [vmem:[%s603 + $0x16a] sm:$0xff]
        %v1504 = vld [vmem:[%s603 + $0x172] sm:$0xff]
        %1537 = vrot.lane.b32.xlu0 %v1473, 40
        %v1538 = vpop.permute.xlu0 %1537
        %1539 = vrot.lane.b32.xlu0 %v1474, 40
        %v1540 = vpop.permute.xlu0 %1539
        %1541 = vrot.lane.b32.xlu0 %v1475, 40
        %v1542 = vpop.permute.xlu0 %1541
        %1543 = vrot.lane.b32.xlu0 %v1476, 40
        %v1544 = vpop.permute.xlu0 %1543
        %1545 = vrot.lane.b32.xlu0 %v1477, 40
        %v1546 = vpop.permute.xlu0 %1545
        %1547 = vrot.lane.b32.xlu0 %v1478, 40
        %v1548 = vpop.permute.xlu0 %1547
        %1549 = vrot.lane.b32.xlu0 %v1479, 40
        %v1550 = vpop.permute.xlu0 %1549
        %1551 = vrot.lane.b32.xlu0 %v1480, 40
        %v1552 = vpop.permute.xlu0 %1551
        %1553 = vrot.lane.b32.xlu0 %v1481, 40
        %v1554 = vpop.permute.xlu0 %1553
        %1555 = vrot.lane.b32.xlu0 %v1482, 40
        %v1556 = vpop.permute.xlu0 %1555
        %1557 = vrot.lane.b32.xlu0 %v1483, 40
        %v1558 = vpop.permute.xlu0 %1557
        %1559 = vrot.lane.b32.xlu0 %v1484, 40
        %v1560 = vpop.permute.xlu0 %1559
        %1561 = vrot.lane.b32.xlu0 %v1485, 40
        %v1562 = vpop.permute.xlu0 %1561
        %1563 = vrot.lane.b32.xlu0 %v1486, 40
        %v1564 = vpop.permute.xlu0 %1563
        %1565 = vrot.lane.b32.xlu0 %v1487, 40
        %v1566 = vpop.permute.xlu0 %1565
        %1567 = vrot.lane.b32.xlu0 %v1488, 40
        %v1568 = vpop.permute.xlu0 %1567
        %1569 = vrot.lane.b32.xlu0 %v1489, 40
        %v1570 = vpop.permute.xlu0 %1569
        %1571 = vrot.lane.b32.xlu0 %v1490, 40
        %v1572 = vpop.permute.xlu0 %1571
        %1573 = vrot.lane.b32.xlu0 %v1491, 40
        %v1574 = vpop.permute.xlu0 %1573
        %1575 = vrot.lane.b32.xlu0 %v1492, 40
        %v1576 = vpop.permute.xlu0 %1575
        %1577 = vrot.lane.b32.xlu0 %v1493, 40
        %v1578 = vpop.permute.xlu0 %1577
        %1579 = vrot.lane.b32.xlu0 %v1494, 40
        %v1580 = vpop.permute.xlu0 %1579
        %1581 = vrot.lane.b32.xlu0 %v1495, 40
        %v1582 = vpop.permute.xlu0 %1581
        %1583 = vrot.lane.b32.xlu0 %v1496, 40
        %v1584 = vpop.permute.xlu0 %1583
        %1585 = vrot.lane.b32.xlu0 %v1497, 40
        %v1586 = vpop.permute.xlu0 %1585
        %1587 = vrot.lane.b32.xlu0 %v1498, 40
        %v1588 = vpop.permute.xlu0 %1587
        %1589 = vrot.lane.b32.xlu0 %v1499, 40
        %v1590 = vpop.permute.xlu0 %1589
        %1591 = vrot.lane.b32.xlu0 %v1500, 40
        %v1592 = vpop.permute.xlu0 %1591
        %1593 = vrot.lane.b32.xlu0 %v1501, 40
        %v1594 = vpop.permute.xlu0 %1593
        %1595 = vrot.lane.b32.xlu0 %v1502, 40
        %v1596 = vpop.permute.xlu0 %1595
        %1597 = vrot.lane.b32.xlu0 %v1503, 40
        %v1598 = vpop.permute.xlu0 %1597
        %1599 = vrot.lane.b32.xlu0 %v1504, 40
        %v1600 = vpop.permute.xlu0 %1599
        %vm1633 = vcmask 392512
        %1634 = vst.msk [vmem:[#allocation2] sm:$0xff] %vm1633, %v1538
        %1635 = vst.msk [vmem:[#allocation2 + $0x28] sm:$0xff] %vm1633, %v1540
        %1636 = vst.msk [vmem:[#allocation2 + $0x50] sm:$0xff] %vm1633, %v1542
        %1637 = vst.msk [vmem:[#allocation2 + $0x78] sm:$0xff] %vm1633, %v1544
        %1638 = vst.msk [vmem:[#allocation2 + $0xa0] sm:$0xff] %vm1633, %v1546
        %1639 = vst.msk [vmem:[#allocation2 + $0xc8] sm:$0xff] %vm1633, %v1548
        %1640 = vst.msk [vmem:[#allocation2 + $0xf0] sm:$0xff] %vm1633, %v1550
        %1641 = vst.msk [vmem:[#allocation2 + $0x118] sm:$0xff] %vm1633, %v1552
        %1642 = vst.msk [vmem:[#allocation2 + $0x140] sm:$0xff] %vm1633, %v1554
        %1643 = vst.msk [vmem:[#allocation2 + $0x168] sm:$0xff] %vm1633, %v1556
        %1644 = vst.msk [vmem:[#allocation2 + $0x190] sm:$0xff] %vm1633, %v1558
        %1645 = vst.msk [vmem:[#allocation2 + $0x1b8] sm:$0xff] %vm1633, %v1560
        %1646 = vst.msk [vmem:[#allocation2 + $0x1e0] sm:$0xff] %vm1633, %v1562
        %1647 = vst.msk [vmem:[#allocation2 + $0x208] sm:$0xff] %vm1633, %v1564
        %1648 = vst.msk [vmem:[#allocation2 + $0x230] sm:$0xff] %vm1633, %v1566
        %1649 = vst.msk [vmem:[#allocation2 + $0x258] sm:$0xff] %vm1633, %v1568
        %1650 = vst.msk [vmem:[#allocation2 + $0x280] sm:$0xff] %vm1633, %v1570
        %1651 = vst.msk [vmem:[#allocation2 + $0x2a8] sm:$0xff] %vm1633, %v1572
        %1652 = vst.msk [vmem:[#allocation2 + $0x2d0] sm:$0xff] %vm1633, %v1574
        %1653 = vst.msk [vmem:[#allocation2 + $0x2f8] sm:$0xff] %vm1633, %v1576
        %1654 = vst.msk [vmem:[#allocation2 + $0x320] sm:$0xff] %vm1633, %v1578
        %1655 = vst.msk [vmem:[#allocation2 + $0x348] sm:$0xff] %vm1633, %v1580
        %1656 = vst.msk [vmem:[#allocation2 + $0x370] sm:$0xff] %vm1633, %v1582
        %1657 = vst.msk [vmem:[#allocation2 + $0x398] sm:$0xff] %vm1633, %v1584
        %1658 = vst.msk [vmem:[#allocation2 + $0x3c0] sm:$0xff] %vm1633, %v1586
        %1659 = vst.msk [vmem:[#allocation2 + $0x3e8] sm:$0xff] %vm1633, %v1588
        %1660 = vst.msk [vmem:[#allocation2 + $0x410] sm:$0xff] %vm1633, %v1590
        %1661 = vst.msk [vmem:[#allocation2 + $0x438] sm:$0xff] %vm1633, %v1592
        %1662 = vst.msk [vmem:[#allocation2 + $0x460] sm:$0xff] %vm1633, %v1594
        %1663 = vst.msk [vmem:[#allocation2 + $0x488] sm:$0xff] %vm1633, %v1596
        %1664 = vst.msk [vmem:[#allocation2 + $0x4b0] sm:$0xff] %vm1633, %v1598
        %1665 = vst.msk [vmem:[#allocation2 + $0x4d8] sm:$0xff] %vm1633, %v1600
        %s1666 = scalar_lea.vmem [#allocation3], 48
        %v1667 = vld [vmem:[%s1666] sm:$0xff]
        %v1668 = vld [vmem:[%s1666 + $0x8] sm:$0xff]
        %v1669 = vld [vmem:[%s1666 + $0x18] sm:$0xff]
        %v1670 = vld [vmem:[%s1666 + $0x20] sm:$0xff]
        %v1671 = vld [vmem:[%s1666 + $0x30] sm:$0xff]
        %v1672 = vld [vmem:[%s1666 + $0x38] sm:$0xff]
        %v1673 = vld [vmem:[%s1666 + $0x48] sm:$0xff]
        %v1674 = vld [vmem:[%s1666 + $0x50] sm:$0xff]
        %v1675 = vld [vmem:[%s1666 + $0x60] sm:$0xff]
        %v1676 = vld [vmem:[%s1666 + $0x68] sm:$0xff]
        %v1677 = vld [vmem:[%s1666 + $0x78] sm:$0xff]
        %v1678 = vld [vmem:[%s1666 + $0x80] sm:$0xff]
        %v1679 = vld [vmem:[%s1666 + $0x90] sm:$0xff]
        %v1680 = vld [vmem:[%s1666 + $0x98] sm:$0xff]
        %v1681 = vld [vmem:[%s1666 + $0xa8] sm:$0xff]
        %v1682 = vld [vmem:[%s1666 + $0xb0] sm:$0xff]
        %v1683 = vld [vmem:[%s1666 + $0xc0] sm:$0xff]
        %v1684 = vld [vmem:[%s1666 + $0xc8] sm:$0xff]
        %v1685 = vld [vmem:[%s1666 + $0xd8] sm:$0xff]
        %v1686 = vld [vmem:[%s1666 + $0xe0] sm:$0xff]
        %v1687 = vld [vmem:[%s1666 + $0xf0] sm:$0xff]
        %v1688 = vld [vmem:[%s1666 + $0xf8] sm:$0xff]
        %v1689 = vld [vmem:[%s1666 + $0x108] sm:$0xff]
        %v1690 = vld [vmem:[%s1666 + $0x110] sm:$0xff]
        %v1691 = vld [vmem:[%s1666 + $0x120] sm:$0xff]
        %v1692 = vld [vmem:[%s1666 + $0x128] sm:$0xff]
        %v1693 = vld [vmem:[%s1666 + $0x138] sm:$0xff]
        %v1694 = vld [vmem:[%s1666 + $0x140] sm:$0xff]
        %v1695 = vld [vmem:[%s1666 + $0x150] sm:$0xff]
        %v1696 = vld [vmem:[%s1666 + $0x158] sm:$0xff]
        %v1697 = vld [vmem:[%s1666 + $0x168] sm:$0xff]
        %v1698 = vld [vmem:[%s1666 + $0x170] sm:$0xff]
        %1731 = vrot.lane.b32.xlu0 %v1667, 48
        %v1732 = vpop.permute.xlu0 %1731
        %1733 = vrot.lane.b32.xlu0 %v1668, 48
        %v1734 = vpop.permute.xlu0 %1733
        %1735 = vrot.lane.b32.xlu0 %v1669, 48
        %v1736 = vpop.permute.xlu0 %1735
        %1737 = vrot.lane.b32.xlu0 %v1670, 48
        %v1738 = vpop.permute.xlu0 %1737
        %1739 = vrot.lane.b32.xlu0 %v1671, 48
        %v1740 = vpop.permute.xlu0 %1739
        %1741 = vrot.lane.b32.xlu0 %v1672, 48
        %v1742 = vpop.permute.xlu0 %1741
        %1743 = vrot.lane.b32.xlu0 %v1673, 48
        %v1744 = vpop.permute.xlu0 %1743
        %1745 = vrot.lane.b32.xlu0 %v1674, 48
        %v1746 = vpop.permute.xlu0 %1745
        %1747 = vrot.lane.b32.xlu0 %v1675, 48
        %v1748 = vpop.permute.xlu0 %1747
        %1749 = vrot.lane.b32.xlu0 %v1676, 48
        %v1750 = vpop.permute.xlu0 %1749
        %1751 = vrot.lane.b32.xlu0 %v1677, 48
        %v1752 = vpop.permute.xlu0 %1751
        %1753 = vrot.lane.b32.xlu0 %v1678, 48
        %v1754 = vpop.permute.xlu0 %1753
        %1755 = vrot.lane.b32.xlu0 %v1679, 48
        %v1756 = vpop.permute.xlu0 %1755
        %1757 = vrot.lane.b32.xlu0 %v1680, 48
        %v1758 = vpop.permute.xlu0 %1757
        %1759 = vrot.lane.b32.xlu0 %v1681, 48
        %v1760 = vpop.permute.xlu0 %1759
        %1761 = vrot.lane.b32.xlu0 %v1682, 48
        %v1762 = vpop.permute.xlu0 %1761
        %1763 = vrot.lane.b32.xlu0 %v1683, 48
        %v1764 = vpop.permute.xlu0 %1763
        %1765 = vrot.lane.b32.xlu0 %v1684, 48
        %v1766 = vpop.permute.xlu0 %1765
        %1767 = vrot.lane.b32.xlu0 %v1685, 48
        %v1768 = vpop.permute.xlu0 %1767
        %1769 = vrot.lane.b32.xlu0 %v1686, 48
        %v1770 = vpop.permute.xlu0 %1769
        %1771 = vrot.lane.b32.xlu0 %v1687, 48
        %v1772 = vpop.permute.xlu0 %1771
        %1773 = vrot.lane.b32.xlu0 %v1688, 48
        %v1774 = vpop.permute.xlu0 %1773
        %1775 = vrot.lane.b32.xlu0 %v1689, 48
        %v1776 = vpop.permute.xlu0 %1775
        %1777 = vrot.lane.b32.xlu0 %v1690, 48
        %v1778 = vpop.permute.xlu0 %1777
        %1779 = vrot.lane.b32.xlu0 %v1691, 48
        %v1780 = vpop.permute.xlu0 %1779
        %1781 = vrot.lane.b32.xlu0 %v1692, 48
        %v1782 = vpop.permute.xlu0 %1781
        %1783 = vrot.lane.b32.xlu0 %v1693, 48
        %v1784 = vpop.permute.xlu0 %1783
        %1785 = vrot.lane.b32.xlu0 %v1694, 48
        %v1786 = vpop.permute.xlu0 %1785
        %1787 = vrot.lane.b32.xlu0 %v1695, 48
        %v1788 = vpop.permute.xlu0 %1787
        %1789 = vrot.lane.b32.xlu0 %v1696, 48
        %v1790 = vpop.permute.xlu0 %1789
        %1791 = vrot.lane.b32.xlu0 %v1697, 48
        %v1792 = vpop.permute.xlu0 %1791
        %1793 = vrot.lane.b32.xlu0 %v1698, 48
        %v1794 = vpop.permute.xlu0 %1793
        %vm1827 = vcmask 458112
        %1828 = vst.msk [vmem:[#allocation2] sm:$0xff] %vm1827, %v1732
        %1829 = vst.msk [vmem:[#allocation2 + $0x28] sm:$0xff] %vm1827, %v1734
        %1830 = vst.msk [vmem:[#allocation2 + $0x50] sm:$0xff] %vm1827, %v1736
        %1831 = vst.msk [vmem:[#allocation2 + $0x78] sm:$0xff] %vm1827, %v1738
        %1832 = vst.msk [vmem:[#allocation2 + $0xa0] sm:$0xff] %vm1827, %v1740
        %1833 = vst.msk [vmem:[#allocation2 + $0xc8] sm:$0xff] %vm1827, %v1742
        %1834 = vst.msk [vmem:[#allocation2 + $0xf0] sm:$0xff] %vm1827, %v1744
        %1835 = vst.msk [vmem:[#allocation2 + $0x118] sm:$0xff] %vm1827, %v1746
        %1836 = vst.msk [vmem:[#allocation2 + $0x140] sm:$0xff] %vm1827, %v1748
        %1837 = vst.msk [vmem:[#allocation2 + $0x168] sm:$0xff] %vm1827, %v1750
        %1838 = vst.msk [vmem:[#allocation2 + $0x190] sm:$0xff] %vm1827, %v1752
        %1839 = vst.msk [vmem:[#allocation2 + $0x1b8] sm:$0xff] %vm1827, %v1754
        %1840 = vst.msk [vmem:[#allocation2 + $0x1e0] sm:$0xff] %vm1827, %v1756
        %1841 = vst.msk [vmem:[#allocation2 + $0x208] sm:$0xff] %vm1827, %v1758
        %1842 = vst.msk [vmem:[#allocation2 + $0x230] sm:$0xff] %vm1827, %v1760
        %1843 = vst.msk [vmem:[#allocation2 + $0x258] sm:$0xff] %vm1827, %v1762
        %1844 = vst.msk [vmem:[#allocation2 + $0x280] sm:$0xff] %vm1827, %v1764
        %1845 = vst.msk [vmem:[#allocation2 + $0x2a8] sm:$0xff] %vm1827, %v1766
        %1846 = vst.msk [vmem:[#allocation2 + $0x2d0] sm:$0xff] %vm1827, %v1768
        %1847 = vst.msk [vmem:[#allocation2 + $0x2f8] sm:$0xff] %vm1827, %v1770
        %1848 = vst.msk [vmem:[#allocation2 + $0x320] sm:$0xff] %vm1827, %v1772
        %1849 = vst.msk [vmem:[#allocation2 + $0x348] sm:$0xff] %vm1827, %v1774
        %1850 = vst.msk [vmem:[#allocation2 + $0x370] sm:$0xff] %vm1827, %v1776
        %1851 = vst.msk [vmem:[#allocation2 + $0x398] sm:$0xff] %vm1827, %v1778
        %1852 = vst.msk [vmem:[#allocation2 + $0x3c0] sm:$0xff] %vm1827, %v1780
        %1853 = vst.msk [vmem:[#allocation2 + $0x3e8] sm:$0xff] %vm1827, %v1782
        %1854 = vst.msk [vmem:[#allocation2 + $0x410] sm:$0xff] %vm1827, %v1784
        %1855 = vst.msk [vmem:[#allocation2 + $0x438] sm:$0xff] %vm1827, %v1786
        %1856 = vst.msk [vmem:[#allocation2 + $0x460] sm:$0xff] %vm1827, %v1788
        %1857 = vst.msk [vmem:[#allocation2 + $0x488] sm:$0xff] %vm1827, %v1790
        %1858 = vst.msk [vmem:[#allocation2 + $0x4b0] sm:$0xff] %vm1827, %v1792
        %1859 = vst.msk [vmem:[#allocation2 + $0x4d8] sm:$0xff] %vm1827, %v1794
        %v1860 = vld [vmem:[%s1666 + $0x1] sm:$0xff]
        %v1861 = vld [vmem:[%s1666 + $0x9] sm:$0xff]
        %v1862 = vld [vmem:[%s1666 + $0x19] sm:$0xff]
        %v1863 = vld [vmem:[%s1666 + $0x21] sm:$0xff]
        %v1864 = vld [vmem:[%s1666 + $0x31] sm:$0xff]
        %v1865 = vld [vmem:[%s1666 + $0x39] sm:$0xff]
        %v1866 = vld [vmem:[%s1666 + $0x49] sm:$0xff]
        %v1867 = vld [vmem:[%s1666 + $0x51] sm:$0xff]
        %v1868 = vld [vmem:[%s1666 + $0x61] sm:$0xff]
        %v1869 = vld [vmem:[%s1666 + $0x69] sm:$0xff]
        %v1870 = vld [vmem:[%s1666 + $0x79] sm:$0xff]
        %v1871 = vld [vmem:[%s1666 + $0x81] sm:$0xff]
        %v1872 = vld [vmem:[%s1666 + $0x91] sm:$0xff]
        %v1873 = vld [vmem:[%s1666 + $0x99] sm:$0xff]
        %v1874 = vld [vmem:[%s1666 + $0xa9] sm:$0xff]
        %v1875 = vld [vmem:[%s1666 + $0xb1] sm:$0xff]
        %v1876 = vld [vmem:[%s1666 + $0xc1] sm:$0xff]
        %v1877 = vld [vmem:[%s1666 + $0xc9] sm:$0xff]
        %v1878 = vld [vmem:[%s1666 + $0xd9] sm:$0xff]
        %v1879 = vld [vmem:[%s1666 + $0xe1] sm:$0xff]
        %v1880 = vld [vmem:[%s1666 + $0xf1] sm:$0xff]
        %v1881 = vld [vmem:[%s1666 + $0xf9] sm:$0xff]
        %v1882 = vld [vmem:[%s1666 + $0x109] sm:$0xff]
        %v1883 = vld [vmem:[%s1666 + $0x111] sm:$0xff]
        %v1884 = vld [vmem:[%s1666 + $0x121] sm:$0xff]
        %v1885 = vld [vmem:[%s1666 + $0x129] sm:$0xff]
        %v1886 = vld [vmem:[%s1666 + $0x139] sm:$0xff]
        %v1887 = vld [vmem:[%s1666 + $0x141] sm:$0xff]
        %v1888 = vld [vmem:[%s1666 + $0x151] sm:$0xff]
        %v1889 = vld [vmem:[%s1666 + $0x159] sm:$0xff]
        %v1890 = vld [vmem:[%s1666 + $0x169] sm:$0xff]
        %v1891 = vld [vmem:[%s1666 + $0x171] sm:$0xff]
        %1924 = vrot.lane.b32.xlu0 %v1860, 56
        %v1925 = vpop.permute.xlu0 %1924
        %1926 = vrot.lane.b32.xlu0 %v1861, 56
        %v1927 = vpop.permute.xlu0 %1926
        %1928 = vrot.lane.b32.xlu0 %v1862, 56
        %v1929 = vpop.permute.xlu0 %1928
        %1930 = vrot.lane.b32.xlu0 %v1863, 56
        %v1931 = vpop.permute.xlu0 %1930
        %1932 = vrot.lane.b32.xlu0 %v1864, 56
        %v1933 = vpop.permute.xlu0 %1932
        %1934 = vrot.lane.b32.xlu0 %v1865, 56
        %v1935 = vpop.permute.xlu0 %1934
        %1936 = vrot.lane.b32.xlu0 %v1866, 56
        %v1937 = vpop.permute.xlu0 %1936
        %1938 = vrot.lane.b32.xlu0 %v1867, 56
        %v1939 = vpop.permute.xlu0 %1938
        %1940 = vrot.lane.b32.xlu0 %v1868, 56
        %v1941 = vpop.permute.xlu0 %1940
        %1942 = vrot.lane.b32.xlu0 %v1869, 56
        %v1943 = vpop.permute.xlu0 %1942
        %1944 = vrot.lane.b32.xlu0 %v1870, 56
        %v1945 = vpop.permute.xlu0 %1944
        %1946 = vrot.lane.b32.xlu0 %v1871, 56
        %v1947 = vpop.permute.xlu0 %1946
        %1948 = vrot.lane.b32.xlu0 %v1872, 56
        %v1949 = vpop.permute.xlu0 %1948
        %1950 = vrot.lane.b32.xlu0 %v1873, 56
        %v1951 = vpop.permute.xlu0 %1950
        %1952 = vrot.lane.b32.xlu0 %v1874, 56
        %v1953 = vpop.permute.xlu0 %1952
        %1954 = vrot.lane.b32.xlu0 %v1875, 56
        %v1955 = vpop.permute.xlu0 %1954
        %1956 = vrot.lane.b32.xlu0 %v1876, 56
        %v1957 = vpop.permute.xlu0 %1956
        %1958 = vrot.lane.b32.xlu0 %v1877, 56
        %v1959 = vpop.permute.xlu0 %1958
        %1960 = vrot.lane.b32.xlu0 %v1878, 56
        %v1961 = vpop.permute.xlu0 %1960
        %1962 = vrot.lane.b32.xlu0 %v1879, 56
        %v1963 = vpop.permute.xlu0 %1962
        %1964 = vrot.lane.b32.xlu0 %v1880, 56
        %v1965 = vpop.permute.xlu0 %1964
        %1966 = vrot.lane.b32.xlu0 %v1881, 56
        %v1967 = vpop.permute.xlu0 %1966
        %1968 = vrot.lane.b32.xlu0 %v1882, 56
        %v1969 = vpop.permute.xlu0 %1968
        %1970 = vrot.lane.b32.xlu0 %v1883, 56
        %v1971 = vpop.permute.xlu0 %1970
        %1972 = vrot.lane.b32.xlu0 %v1884, 56
        %v1973 = vpop.permute.xlu0 %1972
        %1974 = vrot.lane.b32.xlu0 %v1885, 56
        %v1975 = vpop.permute.xlu0 %1974
        %1976 = vrot.lane.b32.xlu0 %v1886, 56
        %v1977 = vpop.permute.xlu0 %1976
        %1978 = vrot.lane.b32.xlu0 %v1887, 56
        %v1979 = vpop.permute.xlu0 %1978
        %1980 = vrot.lane.b32.xlu0 %v1888, 56
        %v1981 = vpop.permute.xlu0 %1980
        %1982 = vrot.lane.b32.xlu0 %v1889, 56
        %v1983 = vpop.permute.xlu0 %1982
        %1984 = vrot.lane.b32.xlu0 %v1890, 56
        %v1985 = vpop.permute.xlu0 %1984
        %1986 = vrot.lane.b32.xlu0 %v1891, 56
        %v1987 = vpop.permute.xlu0 %1986
        %vm2020 = vcmask 523712
        %2021 = vst.msk [vmem:[#allocation2] sm:$0xff] %vm2020, %v1925
        %2022 = vst.msk [vmem:[#allocation2 + $0x28] sm:$0xff] %vm2020, %v1927
        %2023 = vst.msk [vmem:[#allocation2 + $0x50] sm:$0xff] %vm2020, %v1929
        %2024 = vst.msk [vmem:[#allocation2 + $0x78] sm:$0xff] %vm2020, %v1931
        %2025 = vst.msk [vmem:[#allocation2 + $0xa0] sm:$0xff] %vm2020, %v1933
        %2026 = vst.msk [vmem:[#allocation2 + $0xc8] sm:$0xff] %vm2020, %v1935
        %2027 = vst.msk [vmem:[#allocation2 + $0xf0] sm:$0xff] %vm2020, %v1937
        %2028 = vst.msk [vmem:[#allocation2 + $0x118] sm:$0xff] %vm2020, %v1939
        %2029 = vst.msk [vmem:[#allocation2 + $0x140] sm:$0xff] %vm2020, %v1941
        %2030 = vst.msk [vmem:[#allocation2 + $0x168] sm:$0xff] %vm2020, %v1943
        %2031 = vst.msk [vmem:[#allocation2 + $0x190] sm:$0xff] %vm2020, %v1945
        %2032 = vst.msk [vmem:[#allocation2 + $0x1b8] sm:$0xff] %vm2020, %v1947
        %2033 = vst.msk [vmem:[#allocation2 + $0x1e0] sm:$0xff] %vm2020, %v1949
        %2034 = vst.msk [vmem:[#allocation2 + $0x208] sm:$0xff] %vm2020, %v1951
        %2035 = vst.msk [vmem:[#allocation2 + $0x230] sm:$0xff] %vm2020, %v1953
        %2036 = vst.msk [vmem:[#allocation2 + $0x258] sm:$0xff] %vm2020, %v1955
        %2037 = vst.msk [vmem:[#allocation2 + $0x280] sm:$0xff] %vm2020, %v1957
        %2038 = vst.msk [vmem:[#allocation2 + $0x2a8] sm:$0xff] %vm2020, %v1959
        %2039 = vst.msk [vmem:[#allocation2 + $0x2d0] sm:$0xff] %vm2020, %v1961
        %2040 = vst.msk [vmem:[#allocation2 + $0x2f8] sm:$0xff] %vm2020, %v1963
        %2041 = vst.msk [vmem:[#allocation2 + $0x320] sm:$0xff] %vm2020, %v1965
        %2042 = vst.msk [vmem:[#allocation2 + $0x348] sm:$0xff] %vm2020, %v1967
        %2043 = vst.msk [vmem:[#allocation2 + $0x370] sm:$0xff] %vm2020, %v1969
        %2044 = vst.msk [vmem:[#allocation2 + $0x398] sm:$0xff] %vm2020, %v1971
        %2045 = vst.msk [vmem:[#allocation2 + $0x3c0] sm:$0xff] %vm2020, %v1973
        %2046 = vst.msk [vmem:[#allocation2 + $0x3e8] sm:$0xff] %vm2020, %v1975
        %2047 = vst.msk [vmem:[#allocation2 + $0x410] sm:$0xff] %vm2020, %v1977
        %2048 = vst.msk [vmem:[#allocation2 + $0x438] sm:$0xff] %vm2020, %v1979
        %2049 = vst.msk [vmem:[#allocation2 + $0x460] sm:$0xff] %vm2020, %v1981
        %2050 = vst.msk [vmem:[#allocation2 + $0x488] sm:$0xff] %vm2020, %v1983
        %2051 = vst.msk [vmem:[#allocation2 + $0x4b0] sm:$0xff] %vm2020, %v1985
        %2052 = vst.msk [vmem:[#allocation2 + $0x4d8] sm:$0xff] %vm2020, %v1987
        %v2053 = vld [vmem:[%s1666 + $0x2] sm:$0xff]
        %v2054 = vld [vmem:[%s1666 + $0xa] sm:$0xff]
        %v2055 = vld [vmem:[%s1666 + $0x1a] sm:$0xff]
        %v2056 = vld [vmem:[%s1666 + $0x22] sm:$0xff]
        %v2057 = vld [vmem:[%s1666 + $0x32] sm:$0xff]
        %v2058 = vld [vmem:[%s1666 + $0x3a] sm:$0xff]
        %v2059 = vld [vmem:[%s1666 + $0x4a] sm:$0xff]
        %v2060 = vld [vmem:[%s1666 + $0x52] sm:$0xff]
        %v2061 = vld [vmem:[%s1666 + $0x62] sm:$0xff]
        %v2062 = vld [vmem:[%s1666 + $0x6a] sm:$0xff]
        %v2063 = vld [vmem:[%s1666 + $0x7a] sm:$0xff]
        %v2064 = vld [vmem:[%s1666 + $0x82] sm:$0xff]
        %v2065 = vld [vmem:[%s1666 + $0x92] sm:$0xff]
        %v2066 = vld [vmem:[%s1666 + $0x9a] sm:$0xff]
        %v2067 = vld [vmem:[%s1666 + $0xaa] sm:$0xff]
        %v2068 = vld [vmem:[%s1666 + $0xb2] sm:$0xff]
        %v2069 = vld [vmem:[%s1666 + $0xc2] sm:$0xff]
        %v2070 = vld [vmem:[%s1666 + $0xca] sm:$0xff]
        %v2071 = vld [vmem:[%s1666 + $0xda] sm:$0xff]
        %v2072 = vld [vmem:[%s1666 + $0xe2] sm:$0xff]
        %v2073 = vld [vmem:[%s1666 + $0xf2] sm:$0xff]
        %v2074 = vld [vmem:[%s1666 + $0xfa] sm:$0xff]
        %v2075 = vld [vmem:[%s1666 + $0x10a] sm:$0xff]
        %v2076 = vld [vmem:[%s1666 + $0x112] sm:$0xff]
        %v2077 = vld [vmem:[%s1666 + $0x122] sm:$0xff]
        %v2078 = vld [vmem:[%s1666 + $0x12a] sm:$0xff]
        %v2079 = vld [vmem:[%s1666 + $0x13a] sm:$0xff]
        %v2080 = vld [vmem:[%s1666 + $0x142] sm:$0xff]
        %v2081 = vld [vmem:[%s1666 + $0x152] sm:$0xff]
        %v2082 = vld [vmem:[%s1666 + $0x15a] sm:$0xff]
        %v2083 = vld [vmem:[%s1666 + $0x16a] sm:$0xff]
        %v2084 = vld [vmem:[%s1666 + $0x172] sm:$0xff]
        %2117 = vrot.lane.b32.xlu0 %v2053, 64
        %v2118 = vpop.permute.xlu0 %2117
        %2119 = vrot.lane.b32.xlu0 %v2054, 64
        %v2120 = vpop.permute.xlu0 %2119
        %2121 = vrot.lane.b32.xlu0 %v2055, 64
        %v2122 = vpop.permute.xlu0 %2121
        %2123 = vrot.lane.b32.xlu0 %v2056, 64
        %v2124 = vpop.permute.xlu0 %2123
        %2125 = vrot.lane.b32.xlu0 %v2057, 64
        %v2126 = vpop.permute.xlu0 %2125
        %2127 = vrot.lane.b32.xlu0 %v2058, 64
        %v2128 = vpop.permute.xlu0 %2127
        %2129 = vrot.lane.b32.xlu0 %v2059, 64
        %v2130 = vpop.permute.xlu0 %2129
        %2131 = vrot.lane.b32.xlu0 %v2060, 64
        %v2132 = vpop.permute.xlu0 %2131
        %2133 = vrot.lane.b32.xlu0 %v2061, 64
        %v2134 = vpop.permute.xlu0 %2133
        %2135 = vrot.lane.b32.xlu0 %v2062, 64
        %v2136 = vpop.permute.xlu0 %2135
        %2137 = vrot.lane.b32.xlu0 %v2063, 64
        %v2138 = vpop.permute.xlu0 %2137
        %2139 = vrot.lane.b32.xlu0 %v2064, 64
        %v2140 = vpop.permute.xlu0 %2139
        %2141 = vrot.lane.b32.xlu0 %v2065, 64
        %v2142 = vpop.permute.xlu0 %2141
        %2143 = vrot.lane.b32.xlu0 %v2066, 64
        %v2144 = vpop.permute.xlu0 %2143
        %2145 = vrot.lane.b32.xlu0 %v2067, 64
        %v2146 = vpop.permute.xlu0 %2145
        %2147 = vrot.lane.b32.xlu0 %v2068, 64
        %v2148 = vpop.permute.xlu0 %2147
        %2149 = vrot.lane.b32.xlu0 %v2069, 64
        %v2150 = vpop.permute.xlu0 %2149
        %2151 = vrot.lane.b32.xlu0 %v2070, 64
        %v2152 = vpop.permute.xlu0 %2151
        %2153 = vrot.lane.b32.xlu0 %v2071, 64
        %v2154 = vpop.permute.xlu0 %2153
        %2155 = vrot.lane.b32.xlu0 %v2072, 64
        %v2156 = vpop.permute.xlu0 %2155
        %2157 = vrot.lane.b32.xlu0 %v2073, 64
        %v2158 = vpop.permute.xlu0 %2157
        %2159 = vrot.lane.b32.xlu0 %v2074, 64
        %v2160 = vpop.permute.xlu0 %2159
        %2161 = vrot.lane.b32.xlu0 %v2075, 64
        %v2162 = vpop.permute.xlu0 %2161
        %2163 = vrot.lane.b32.xlu0 %v2076, 64
        %v2164 = vpop.permute.xlu0 %2163
        %2165 = vrot.lane.b32.xlu0 %v2077, 64
        %v2166 = vpop.permute.xlu0 %2165
        %2167 = vrot.lane.b32.xlu0 %v2078, 64
        %v2168 = vpop.permute.xlu0 %2167
        %2169 = vrot.lane.b32.xlu0 %v2079, 64
        %v2170 = vpop.permute.xlu0 %2169
        %2171 = vrot.lane.b32.xlu0 %v2080, 64
        %v2172 = vpop.permute.xlu0 %2171
        %2173 = vrot.lane.b32.xlu0 %v2081, 64
        %v2174 = vpop.permute.xlu0 %2173
        %2175 = vrot.lane.b32.xlu0 %v2082, 64
        %v2176 = vpop.permute.xlu0 %2175
        %2177 = vrot.lane.b32.xlu0 %v2083, 64
        %v2178 = vpop.permute.xlu0 %2177
        %2179 = vrot.lane.b32.xlu0 %v2084, 64
        %v2180 = vpop.permute.xlu0 %2179
        %vm2213 = vcmask 589312
        %2214 = vst.msk [vmem:[#allocation2] sm:$0xff] %vm2213, %v2118
        %2215 = vst.msk [vmem:[#allocation2 + $0x28] sm:$0xff] %vm2213, %v2120
        %2216 = vst.msk [vmem:[#allocation2 + $0x50] sm:$0xff] %vm2213, %v2122
        %2217 = vst.msk [vmem:[#allocation2 + $0x78] sm:$0xff] %vm2213, %v2124
        %2218 = vst.msk [vmem:[#allocation2 + $0xa0] sm:$0xff] %vm2213, %v2126
        %2219 = vst.msk [vmem:[#allocation2 + $0xc8] sm:$0xff] %vm2213, %v2128
        %2220 = vst.msk [vmem:[#allocation2 + $0xf0] sm:$0xff] %vm2213, %v2130
        %2221 = vst.msk [vmem:[#allocation2 + $0x118] sm:$0xff] %vm2213, %v2132
        %2222 = vst.msk [vmem:[#allocation2 + $0x140] sm:$0xff] %vm2213, %v2134
        %2223 = vst.msk [vmem:[#allocation2 + $0x168] sm:$0xff] %vm2213, %v2136
        %2224 = vst.msk [vmem:[#allocation2 + $0x190] sm:$0xff] %vm2213, %v2138
        %2225 = vst.msk [vmem:[#allocation2 + $0x1b8] sm:$0xff] %vm2213, %v2140
        %2226 = vst.msk [vmem:[#allocation2 + $0x1e0] sm:$0xff] %vm2213, %v2142
        %2227 = vst.msk [vmem:[#allocation2 + $0x208] sm:$0xff] %vm2213, %v2144
        %2228 = vst.msk [vmem:[#allocation2 + $0x230] sm:$0xff] %vm2213, %v2146
        %2229 = vst.msk [vmem:[#allocation2 + $0x258] sm:$0xff] %vm2213, %v2148
        %2230 = vst.msk [vmem:[#allocation2 + $0x280] sm:$0xff] %vm2213, %v2150
        %2231 = vst.msk [vmem:[#allocation2 + $0x2a8] sm:$0xff] %vm2213, %v2152
        %2232 = vst.msk [vmem:[#allocation2 + $0x2d0] sm:$0xff] %vm2213, %v2154
        %2233 = vst.msk [vmem:[#allocation2 + $0x2f8] sm:$0xff] %vm2213, %v2156
        %2234 = vst.msk [vmem:[#allocation2 + $0x320] sm:$0xff] %vm2213, %v2158
        %2235 = vst.msk [vmem:[#allocation2 + $0x348] sm:$0xff] %vm2213, %v2160
        %2236 = vst.msk [vmem:[#allocation2 + $0x370] sm:$0xff] %vm2213, %v2162
        %2237 = vst.msk [vmem:[#allocation2 + $0x398] sm:$0xff] %vm2213, %v2164
        %2238 = vst.msk [vmem:[#allocation2 + $0x3c0] sm:$0xff] %vm2213, %v2166
        %2239 = vst.msk [vmem:[#allocation2 + $0x3e8] sm:$0xff] %vm2213, %v2168
        %2240 = vst.msk [vmem:[#allocation2 + $0x410] sm:$0xff] %vm2213, %v2170
        %2241 = vst.msk [vmem:[#allocation2 + $0x438] sm:$0xff] %vm2213, %v2172
        %2242 = vst.msk [vmem:[#allocation2 + $0x460] sm:$0xff] %vm2213, %v2174
        %2243 = vst.msk [vmem:[#allocation2 + $0x488] sm:$0xff] %vm2213, %v2176
        %2244 = vst.msk [vmem:[#allocation2 + $0x4b0] sm:$0xff] %vm2213, %v2178
        %2245 = vst.msk [vmem:[#allocation2 + $0x4d8] sm:$0xff] %vm2213, %v2180
        %v2246 = vld [vmem:[#allocation2] sm:$0xff]
        %v2247 = vld [vmem:[#allocation2 + $0x28] sm:$0xff]
        %v2248 = vld [vmem:[#allocation2 + $0x50] sm:$0xff]
        %v2249 = vld [vmem:[#allocation2 + $0x78] sm:$0xff]
        %v2250 = vld [vmem:[#allocation2 + $0xa0] sm:$0xff]
        %v2251 = vld [vmem:[#allocation2 + $0xc8] sm:$0xff]
        %v2252 = vld [vmem:[#allocation2 + $0xf0] sm:$0xff]
        %v2253 = vld [vmem:[#allocation2 + $0x118] sm:$0xff]
        %v2254 = vld [vmem:[#allocation2 + $0x140] sm:$0xff]
        %v2255 = vld [vmem:[#allocation2 + $0x168] sm:$0xff]
        %v2256 = vld [vmem:[#allocation2 + $0x190] sm:$0xff]
        %v2257 = vld [vmem:[#allocation2 + $0x1b8] sm:$0xff]
        %v2258 = vld [vmem:[#allocation2 + $0x1e0] sm:$0xff]
        %v2259 = vld [vmem:[#allocation2 + $0x208] sm:$0xff]
        %v2260 = vld [vmem:[#allocation2 + $0x230] sm:$0xff]
        %v2261 = vld [vmem:[#allocation2 + $0x258] sm:$0xff]
        %v2262 = vld [vmem:[#allocation2 + $0x280] sm:$0xff]
        %v2263 = vld [vmem:[#allocation2 + $0x2a8] sm:$0xff]
        %v2264 = vld [vmem:[#allocation2 + $0x2d0] sm:$0xff]
        %v2265 = vld [vmem:[#allocation2 + $0x2f8] sm:$0xff]
        %v2266 = vld [vmem:[#allocation2 + $0x320] sm:$0xff]
        %v2267 = vld [vmem:[#allocation2 + $0x348] sm:$0xff]
        %v2268 = vld [vmem:[#allocation2 + $0x370] sm:$0xff]
        %v2269 = vld [vmem:[#allocation2 + $0x398] sm:$0xff]
        %v2270 = vld [vmem:[#allocation2 + $0x3c0] sm:$0xff]
        %v2271 = vld [vmem:[#allocation2 + $0x3e8] sm:$0xff]
        %v2272 = vld [vmem:[#allocation2 + $0x410] sm:$0xff]
        %v2273 = vld [vmem:[#allocation2 + $0x438] sm:$0xff]
        %v2274 = vld [vmem:[#allocation2 + $0x460] sm:$0xff]
        %v2275 = vld [vmem:[#allocation2 + $0x488] sm:$0xff]
        %v2276 = vld [vmem:[#allocation2 + $0x4b0] sm:$0xff]
        %v2277 = vld [vmem:[#allocation2 + $0x4d8] sm:$0xff]
        %v2278 = vld [vmem:[%s1] sm:$0xff]
        %v2279 = vld [vmem:[%s1 + $0x8] sm:$0xff]
        %v2280 = vld [vmem:[%s1 + $0x10] sm:$0xff]
        %v2281 = vld [vmem:[%s1 + $0x18] sm:$0xff]
        %v2282 = vld [vmem:[%s1 + $0x20] sm:$0xff]
        %v2283 = vld [vmem:[%s1 + $0x28] sm:$0xff]
        %v2284 = vld [vmem:[%s1 + $0x30] sm:$0xff]
        %v2285 = vld [vmem:[%s1 + $0x38] sm:$0xff]
        %v2286 = vld [vmem:[%s1 + $0x40] sm:$0xff]
        %v2287 = vld [vmem:[%s2] sm:$0x1]
        %v2289 = vperm.slane %v2287, 0
        %vm2291 = vcmask 588800
        %v2293 = vsel %vm2291, %v2246, 0
        %v2296 = vsel %vm2291, %v2247, 0
        %v2299 = vsel %vm2291, %v2248, 0
        %v2302 = vsel %vm2291, %v2249, 0
        %v2305 = vsel %vm2291, %v2250, 0
        %v2308 = vsel %vm2291, %v2251, 0
        %v2311 = vsel %vm2291, %v2252, 0
        %v2314 = vsel %vm2291, %v2253, 0
        %v2317 = vsel %vm2291, %v2254, 0
        %v2320 = vsel %vm2291, %v2255, 0
        %v2323 = vsel %vm2291, %v2256, 0
        %v2326 = vsel %vm2291, %v2257, 0
        %v2329 = vsel %vm2291, %v2258, 0
        %v2332 = vsel %vm2291, %v2259, 0
        %v2335 = vsel %vm2291, %v2260, 0
        %v2338 = vsel %vm2291, %v2261, 0
        %v2341 = vsel %vm2291, %v2262, 0
        %v2344 = vsel %vm2291, %v2263, 0
        %v2347 = vsel %vm2291, %v2264, 0
        %v2350 = vsel %vm2291, %v2265, 0
        %v2353 = vsel %vm2291, %v2266, 0
        %v2356 = vsel %vm2291, %v2267, 0
        %v2359 = vsel %vm2291, %v2268, 0
        %v2362 = vsel %vm2291, %v2269, 0
        %v2365 = vsel %vm2291, %v2270, 0
        %v2368 = vsel %vm2291, %v2271, 0
        %v2371 = vsel %vm2291, %v2272, 0
        %v2374 = vsel %vm2291, %v2273, 0
        %v2377 = vsel %vm2291, %v2274, 0
        %v2380 = vsel %vm2291, %v2275, 0
        %v2383 = vsel %vm2291, %v2276, 0
        %v2386 = vsel %vm2291, %v2277, 0
        %2388 = vmatpush.msra.mxu0 0.0
        %2389 = vmatpush.msra.mxu0 0.0
        %2390 = vmatpush.msra.mxu0 0.0
        %2391 = vmatpush.msra.mxu0 0.0
        %2392 = vmatpush.msra.mxu0 0.0
        %2393 = vmatpush.msra.mxu0 0.0
        %2394 = vmatpush.msra.mxu0 0.0
        %2395 = vmatpush.msra.mxu0 %v2286
        %2396 = vmatpush.msra.mxu0 %v2285
        %2397 = vmatpush.msra.mxu0 %v2284
        %2398 = vmatpush.msra.mxu0 %v2283
        %2399 = vmatpush.msra.mxu0 %v2282
        %2400 = vmatpush.msra.mxu0 %v2281
        %2401 = vmatpush.msra.mxu0 %v2280
        %2402 = vmatpush.msra.mxu0 %v2279
        %2403 = vmatpush.msra.mxu0 %v2278
        %2404 = vmatmul.f32.gmra.mxu0 %v2293
        %v2405 = vpop.f32.mrf.mxu0
        %v2406 = vadd.f32 %v2289, %v2405
        %2407 = vmatmul.f32.gmra.mxu0 %v2296
        %v2408 = vpop.f32.mrf.mxu0
        %v2409 = vadd.f32 %v2289, %v2408
        %2410 = vmatmul.f32.gmra.mxu0 %v2299
        %v2411 = vpop.f32.mrf.mxu0
        %v2412 = vadd.f32 %v2289, %v2411
        %2413 = vmatmul.f32.gmra.mxu0 %v2302
        %v2414 = vpop.f32.mrf.mxu0
        %v2415 = vadd.f32 %v2289, %v2414
        %2416 = vmatmul.f32.gmra.mxu0 %v2305
        %v2417 = vpop.f32.mrf.mxu0
        %v2418 = vadd.f32 %v2289, %v2417
        %2419 = vmatmul.f32.gmra.mxu0 %v2308
        %v2420 = vpop.f32.mrf.mxu0
        %v2421 = vadd.f32 %v2289, %v2420
        %2422 = vmatmul.f32.gmra.mxu0 %v2311
        %v2423 = vpop.f32.mrf.mxu0
        %v2424 = vadd.f32 %v2289, %v2423
        %2425 = vmatmul.f32.gmra.mxu0 %v2314
        %v2426 = vpop.f32.mrf.mxu0
        %v2427 = vadd.f32 %v2289, %v2426
        %2428 = vmatmul.f32.gmra.mxu0 %v2317
        %v2429 = vpop.f32.mrf.mxu0
        %v2430 = vadd.f32 %v2289, %v2429
        %2431 = vmatmul.f32.gmra.mxu0 %v2320
        %v2432 = vpop.f32.mrf.mxu0
        %v2433 = vadd.f32 %v2289, %v2432
        %2434 = vmatmul.f32.gmra.mxu0 %v2323
        %v2435 = vpop.f32.mrf.mxu0
        %v2436 = vadd.f32 %v2289, %v2435
        %2437 = vmatmul.f32.gmra.mxu0 %v2326
        %v2438 = vpop.f32.mrf.mxu0
        %v2439 = vadd.f32 %v2289, %v2438
        %2440 = vmatmul.f32.gmra.mxu0 %v2329
        %v2441 = vpop.f32.mrf.mxu0
        %v2442 = vadd.f32 %v2289, %v2441
        %2443 = vmatmul.f32.gmra.mxu0 %v2332
        %v2444 = vpop.f32.mrf.mxu0
        %v2445 = vadd.f32 %v2289, %v2444
        %2446 = vmatmul.f32.gmra.mxu0 %v2335
        %v2447 = vpop.f32.mrf.mxu0
        %v2448 = vadd.f32 %v2289, %v2447
        %2449 = vmatmul.f32.gmra.mxu0 %v2338
        %v2450 = vpop.f32.mrf.mxu0
        %v2451 = vadd.f32 %v2289, %v2450
        %2452 = vmatmul.f32.gmra.mxu0 %v2341
        %v2453 = vpop.f32.mrf.mxu0
        %v2454 = vadd.f32 %v2289, %v2453
        %2455 = vmatmul.f32.gmra.mxu0 %v2344
        %v2456 = vpop.f32.mrf.mxu0
        %v2457 = vadd.f32 %v2289, %v2456
        %2458 = vmatmul.f32.gmra.mxu0 %v2347
        %v2459 = vpop.f32.mrf.mxu0
        %v2460 = vadd.f32 %v2289, %v2459
        %2461 = vmatmul.f32.gmra.mxu0 %v2350
        %v2462 = vpop.f32.mrf.mxu0
        %v2463 = vadd.f32 %v2289, %v2462
        %2464 = vmatmul.f32.gmra.mxu0 %v2353
        %v2465 = vpop.f32.mrf.mxu0
        %v2466 = vadd.f32 %v2289, %v2465
        %2467 = vmatmul.f32.gmra.mxu0 %v2356
        %v2468 = vpop.f32.mrf.mxu0
        %v2469 = vadd.f32 %v2289, %v2468
        %2470 = vmatmul.f32.gmra.mxu0 %v2359
        %v2471 = vpop.f32.mrf.mxu0
        %v2472 = vadd.f32 %v2289, %v2471
        %2473 = vmatmul.f32.gmra.mxu0 %v2362
        %v2474 = vpop.f32.mrf.mxu0
        %v2475 = vadd.f32 %v2289, %v2474
        %2476 = vmatmul.f32.gmra.mxu0 %v2365
        %v2477 = vpop.f32.mrf.mxu0
        %v2478 = vadd.f32 %v2289, %v2477
        %2479 = vmatmul.f32.gmra.mxu0 %v2368
        %v2480 = vpop.f32.mrf.mxu0
        %v2481 = vadd.f32 %v2289, %v2480
        %2482 = vmatmul.f32.gmra.mxu0 %v2371
        %v2483 = vpop.f32.mrf.mxu0
        %v2484 = vadd.f32 %v2289, %v2483
        %2485 = vmatmul.f32.gmra.mxu0 %v2374
        %v2486 = vpop.f32.mrf.mxu0
        %v2487 = vadd.f32 %v2289, %v2486
        %2488 = vmatmul.f32.gmra.mxu0 %v2377
        %v2489 = vpop.f32.mrf.mxu0
        %v2490 = vadd.f32 %v2289, %v2489
        %2491 = vmatmul.f32.gmra.mxu0 %v2380
        %v2492 = vpop.f32.mrf.mxu0
        %v2493 = vadd.f32 %v2289, %v2492
        %2494 = vmatmul.f32.gmra.mxu0 %v2383
        %v2495 = vpop.f32.mrf.mxu0
        %v2496 = vadd.f32 %v2289, %v2495
        %2497 = vmatmul.f32.gmra.mxu0 %v2386
        %v2498 = vpop.f32.mrf.mxu0
        %v2499 = vadd.f32 %v2289, %v2498
        %2500 = vdwg.mxu0
        %v2501 = vmax.f32 %v2406, 0.0
        %v2502 = vmax.f32 %v2409, 0.0
        %v2503 = vmax.f32 %v2412, 0.0
        %v2504 = vmax.f32 %v2415, 0.0
        %v2505 = vmax.f32 %v2418, 0.0
        %v2506 = vmax.f32 %v2421, 0.0
        %v2507 = vmax.f32 %v2424, 0.0
        %v2508 = vmax.f32 %v2427, 0.0
        %v2509 = vmax.f32 %v2430, 0.0
        %v2510 = vmax.f32 %v2433, 0.0
        %v2511 = vmax.f32 %v2436, 0.0
        %v2512 = vmax.f32 %v2439, 0.0
        %v2513 = vmax.f32 %v2442, 0.0
        %v2514 = vmax.f32 %v2445, 0.0
        %v2515 = vmax.f32 %v2448, 0.0
        %v2516 = vmax.f32 %v2451, 0.0
        %v2517 = vmax.f32 %v2454, 0.0
        %v2518 = vmax.f32 %v2457, 0.0
        %v2519 = vmax.f32 %v2460, 0.0
        %v2520 = vmax.f32 %v2463, 0.0
        %v2521 = vmax.f32 %v2466, 0.0
        %v2522 = vmax.f32 %v2469, 0.0
        %v2523 = vmax.f32 %v2472, 0.0
        %v2524 = vmax.f32 %v2475, 0.0
        %v2525 = vmax.f32 %v2478, 0.0
        %v2526 = vmax.f32 %v2481, 0.0
        %v2527 = vmax.f32 %v2484, 0.0
        %v2528 = vmax.f32 %v2487, 0.0
        %v2529 = vmax.f32 %v2490, 0.0
        %v2530 = vmax.f32 %v2493, 0.0
        %v2531 = vmax.f32 %v2496, 0.0
        %v2532 = vmax.f32 %v2499, 0.0
        %2533 = vst.msk [vmem:[#allocation9] sm:$0xff] %vm514, %v2501
        %2534 = vst.msk [vmem:[#allocation9 + $0x8] sm:$0xff] %vm514, %v2502
        %2535 = vst.msk [vmem:[#allocation9 + $0x10] sm:$0xff] %vm514, %v2503
        %2536 = vst.msk [vmem:[#allocation9 + $0x18] sm:$0xff] %vm514, %v2504
        %2537 = vst.msk [vmem:[#allocation9 + $0x20] sm:$0xff] %vm514, %v2505
        %2538 = vst.msk [vmem:[#allocation9 + $0x28] sm:$0xff] %vm514, %v2506
        %2539 = vst.msk [vmem:[#allocation9 + $0x30] sm:$0xff] %vm514, %v2507
        %2540 = vst.msk [vmem:[#allocation9 + $0x38] sm:$0xff] %vm514, %v2508
        %2541 = vst.msk [vmem:[#allocation9 + $0x40] sm:$0xff] %vm514, %v2509
        %2542 = vst.msk [vmem:[#allocation9 + $0x48] sm:$0xff] %vm514, %v2510
        %2543 = vst.msk [vmem:[#allocation9 + $0x50] sm:$0xff] %vm514, %v2511
        %2544 = vst.msk [vmem:[#allocation9 + $0x58] sm:$0xff] %vm514, %v2512
        %2545 = vst.msk [vmem:[#allocation9 + $0x60] sm:$0xff] %vm514, %v2513
        %2546 = vst.msk [vmem:[#allocation9 + $0x68] sm:$0xff] %vm514, %v2514
        %2547 = vst.msk [vmem:[#allocation9 + $0x70] sm:$0xff] %vm514, %v2515
        %2548 = vst.msk [vmem:[#allocation9 + $0x78] sm:$0xff] %vm514, %v2516
        %2549 = vst.msk [vmem:[#allocation9 + $0x80] sm:$0xff] %vm514, %v2517
        %2550 = vst.msk [vmem:[#allocation9 + $0x88] sm:$0xff] %vm514, %v2518
        %2551 = vst.msk [vmem:[#allocation9 + $0x90] sm:$0xff] %vm514, %v2519
        %2552 = vst.msk [vmem:[#allocation9 + $0x98] sm:$0xff] %vm514, %v2520
        %2553 = vst.msk [vmem:[#allocation9 + $0xa0] sm:$0xff] %vm514, %v2521
        %2554 = vst.msk [vmem:[#allocation9 + $0xa8] sm:$0xff] %vm514, %v2522
        %2555 = vst.msk [vmem:[#allocation9 + $0xb0] sm:$0xff] %vm514, %v2523
        %2556 = vst.msk [vmem:[#allocation9 + $0xb8] sm:$0xff] %vm514, %v2524
        %2557 = vst.msk [vmem:[#allocation9 + $0xc0] sm:$0xff] %vm514, %v2525
        %2558 = vst.msk [vmem:[#allocation9 + $0xc8] sm:$0xff] %vm514, %v2526
        %2559 = vst.msk [vmem:[#allocation9 + $0xd0] sm:$0xff] %vm514, %v2527
        %2560 = vst.msk [vmem:[#allocation9 + $0xd8] sm:$0xff] %vm514, %v2528
        %2561 = vst.msk [vmem:[#allocation9 + $0xe0] sm:$0xff] %vm514, %v2529
        %2562 = vst.msk [vmem:[#allocation9 + $0xe8] sm:$0xff] %vm514, %v2530
        %2563 = vst.msk [vmem:[#allocation9 + $0xf0] sm:$0xff] %vm514, %v2531
        %2564 = vst.msk [vmem:[#allocation9 + $0xf8] sm:$0xff] %vm514, %v2532
        %v2565 = vld [vmem:[#allocation9] ss:$2 sm:$0xff]
        %s2566 = scalar_lea.vmem [#allocation9], 32
        %v2567 = vld [vmem:[%s2566] ss:$2 sm:$0xff]
        %s2568 = scalar_lea.vmem [#allocation9], 64
        %v2569 = vld [vmem:[%s2568] ss:$2 sm:$0xff]
        %s2570 = scalar_lea.vmem [#allocation9], 96
        %v2571 = vld [vmem:[%s2570] ss:$2 sm:$0xff]
        %s2572 = scalar_lea.vmem [#allocation9], 128
        %v2573 = vld [vmem:[%s2572] ss:$2 sm:$0xff]
        %s2574 = scalar_lea.vmem [#allocation9], 160
        %v2575 = vld [vmem:[%s2574] ss:$2 sm:$0xff]
        %s2576 = scalar_lea.vmem [#allocation9], 192
        %v2577 = vld [vmem:[%s2576] ss:$2 sm:$0xff]
        %s2578 = scalar_lea.vmem [#allocation9], 224
        %v2579 = vld [vmem:[%s2578] ss:$2 sm:$0xff]
        %s2580 = scalar_lea.vmem [#allocation9], 1
        %v2581 = vld [vmem:[%s2580] ss:$2 sm:$0xff]
        %s2582 = scalar_lea.vmem [#allocation9], 33
        %v2583 = vld [vmem:[%s2582] ss:$2 sm:$0xff]
        %s2584 = scalar_lea.vmem [#allocation9], 65
        %v2585 = vld [vmem:[%s2584] ss:$2 sm:$0xff]
        %s2586 = scalar_lea.vmem [#allocation9], 97
        %v2587 = vld [vmem:[%s2586] ss:$2 sm:$0xff]
        %s2588 = scalar_lea.vmem [#allocation9], 129
        %v2589 = vld [vmem:[%s2588] ss:$2 sm:$0xff]
        %s2590 = scalar_lea.vmem [#allocation9], 161
        %v2591 = vld [vmem:[%s2590] ss:$2 sm:$0xff]
        %s2592 = scalar_lea.vmem [#allocation9], 193
        %v2593 = vld [vmem:[%s2592] ss:$2 sm:$0xff]
        %s2594 = scalar_lea.vmem [#allocation9], 225
        %v2595 = vld [vmem:[%s2594] ss:$2 sm:$0xff]
        %s2596 = scalar_lea.vmem [#allocation9], 16
        %v2597 = vld [vmem:[%s2596] ss:$2 sm:$0xff]
        %s2598 = scalar_lea.vmem %s2596, 32 [#allocation9]
        %v2599 = vld [vmem:[%s2598] ss:$2 sm:$0xff]
        %s2600 = scalar_lea.vmem %s2596, 64 [#allocation9]
        %v2601 = vld [vmem:[%s2600] ss:$2 sm:$0xff]
        %s2602 = scalar_lea.vmem %s2596, 96 [#allocation9]
        %v2603 = vld [vmem:[%s2602] ss:$2 sm:$0xff]
        %s2604 = scalar_lea.vmem %s2596, 128 [#allocation9]
        %v2605 = vld [vmem:[%s2604] ss:$2 sm:$0xff]
        %s2606 = scalar_lea.vmem %s2596, 160 [#allocation9]
        %v2607 = vld [vmem:[%s2606] ss:$2 sm:$0xff]
        %s2608 = scalar_lea.vmem %s2596, 192 [#allocation9]
        %v2609 = vld [vmem:[%s2608] ss:$2 sm:$0xff]
        %s2610 = scalar_lea.vmem %s2596, 224 [#allocation9]
        %v2611 = vld [vmem:[%s2610] ss:$2 sm:$0xff]
        %s2612 = scalar_lea.vmem %s2596, 1 [#allocation9]
        %v2613 = vld [vmem:[%s2612] ss:$2 sm:$0xff]
        %s2614 = scalar_lea.vmem %s2596, 33 [#allocation9]
        %v2615 = vld [vmem:[%s2614] ss:$2 sm:$0xff]
        %s2616 = scalar_lea.vmem %s2596, 65 [#allocation9]
        %v2617 = vld [vmem:[%s2616] ss:$2 sm:$0xff]
        %s2618 = scalar_lea.vmem %s2596, 97 [#allocation9]
        %v2619 = vld [vmem:[%s2618] ss:$2 sm:$0xff]
        %s2620 = scalar_lea.vmem %s2596, 129 [#allocation9]
        %v2621 = vld [vmem:[%s2620] ss:$2 sm:$0xff]
        %s2622 = scalar_lea.vmem %s2596, 161 [#allocation9]
        %v2623 = vld [vmem:[%s2622] ss:$2 sm:$0xff]
        %s2624 = scalar_lea.vmem %s2596, 193 [#allocation9]
        %v2625 = vld [vmem:[%s2624] ss:$2 sm:$0xff]
        %s2626 = scalar_lea.vmem %s2596, 225 [#allocation9]
        %v2627 = vld [vmem:[%s2626] ss:$2 sm:$0xff]
        %v2628 = vmax.f32 %v2565, %v2581
        %v2629 = vmax.f32 %v2567, %v2583
        %v2630 = vmax.f32 %v2569, %v2585
        %v2631 = vmax.f32 %v2571, %v2587
        %v2632 = vmax.f32 %v2573, %v2589
        %v2633 = vmax.f32 %v2575, %v2591
        %v2634 = vmax.f32 %v2577, %v2593
        %v2635 = vmax.f32 %v2579, %v2595
        %v2636 = vmax.f32 %v2597, %v2613
        %v2637 = vmax.f32 %v2599, %v2615
        %v2638 = vmax.f32 %v2601, %v2617
        %v2639 = vmax.f32 %v2603, %v2619
        %v2640 = vmax.f32 %v2605, %v2621
        %v2641 = vmax.f32 %v2607, %v2623
        %v2642 = vmax.f32 %v2609, %v2625
        %v2643 = vmax.f32 %v2611, %v2627
        %v2644 = vmax.f32 %v2628, %v2636
        %v2645 = vmax.f32 %v2629, %v2637
        %v2646 = vmax.f32 %v2630, %v2638
        %v2647 = vmax.f32 %v2631, %v2639
        %v2648 = vmax.f32 %v2632, %v2640
        %v2649 = vmax.f32 %v2633, %v2641
        %v2650 = vmax.f32 %v2634, %v2642
        %v2651 = vmax.f32 %v2635, %v2643
        %s2652 = scalar_lea.vmem [#allocation4], 16
        %2653 = vst.msk [vmem:[%s2652 + $0x1] sm:$0xff] %vm514, %v2644
        %2654 = vst.msk [vmem:[%s2652 + $0x11] sm:$0xff] %vm514, %v2645
        %2655 = vst.msk [vmem:[%s2652 + $0x21] sm:$0xff] %vm514, %v2646
        %2656 = vst.msk [vmem:[%s2652 + $0x31] sm:$0xff] %vm514, %v2647
        %2657 = vst.msk [vmem:[%s2652 + $0x41] sm:$0xff] %vm514, %v2648
        %2658 = vst.msk [vmem:[%s2652 + $0x51] sm:$0xff] %vm514, %v2649
        %2659 = vst.msk [vmem:[%s2652 + $0x61] sm:$0xff] %vm514, %v2650
        %2660 = vst.msk [vmem:[%s2652 + $0x71] sm:$0xff] %vm514, %v2651
        %v2661 = vld [vmem:[#allocation4] sm:$0xff]
        %v2662 = vld [vmem:[#allocation4 + $0x10] sm:$0xff]
        %v2663 = vld [vmem:[#allocation4 + $0x20] sm:$0xff]
        %v2664 = vld [vmem:[#allocation4 + $0x30] sm:$0xff]
        %v2665 = vld [vmem:[#allocation4 + $0x40] sm:$0xff]
        %v2666 = vld [vmem:[#allocation4 + $0x50] sm:$0xff]
        %v2667 = vld [vmem:[#allocation4 + $0x60] sm:$0xff]
        %v2668 = vld [vmem:[#allocation4 + $0x70] sm:$0xff]
        %2669 = vst.msk [vmem:[#allocation2] sm:$0xff] %vm514, %v2661
        %2670 = vst.msk [vmem:[#allocation2 + $0x28] sm:$0xff] %vm514, %v2662
        %2671 = vst.msk [vmem:[#allocation2 + $0x50] sm:$0xff] %vm514, %v2663
        %2672 = vst.msk [vmem:[#allocation2 + $0x78] sm:$0xff] %vm514, %v2664
        %2673 = vst.msk [vmem:[#allocation2 + $0xa0] sm:$0xff] %vm514, %v2665
        %2674 = vst.msk [vmem:[#allocation2 + $0xc8] sm:$0xff] %vm514, %v2666
        %2675 = vst.msk [vmem:[#allocation2 + $0xf0] sm:$0xff] %vm514, %v2667
        %2676 = vst.msk [vmem:[#allocation2 + $0x118] sm:$0xff] %vm514, %v2668
        %v2677 = vld [vmem:[#allocation4 + $0x1] sm:$0xff]
        %v2678 = vld [vmem:[#allocation4 + $0x11] sm:$0xff]
        %v2679 = vld [vmem:[#allocation4 + $0x21] sm:$0xff]
        %v2680 = vld [vmem:[#allocation4 + $0x31] sm:$0xff]
        %v2681 = vld [vmem:[#allocation4 + $0x41] sm:$0xff]
        %v2682 = vld [vmem:[#allocation4 + $0x51] sm:$0xff]
        %v2683 = vld [vmem:[#allocation4 + $0x61] sm:$0xff]
        %v2684 = vld [vmem:[#allocation4 + $0x71] sm:$0xff]
        %2693 = vrot.lane.b32.xlu0 %v2677, 32
        %v2694 = vpop.permute.xlu0 %2693
        %2695 = vrot.lane.b32.xlu0 %v2678, 32
        %v2696 = vpop.permute.xlu0 %2695
        %2697 = vrot.lane.b32.xlu0 %v2679, 32
        %v2698 = vpop.permute.xlu0 %2697
        %2699 = vrot.lane.b32.xlu0 %v2680, 32
        %v2700 = vpop.permute.xlu0 %2699
        %2701 = vrot.lane.b32.xlu0 %v2681, 32
        %v2702 = vpop.permute.xlu0 %2701
        %2703 = vrot.lane.b32.xlu0 %v2682, 32
        %v2704 = vpop.permute.xlu0 %2703
        %2705 = vrot.lane.b32.xlu0 %v2683, 32
        %v2706 = vpop.permute.xlu0 %2705
        %2707 = vrot.lane.b32.xlu0 %v2684, 32
        %v2708 = vpop.permute.xlu0 %2707
        %vm2717 = vcmask 523520
        %2718 = vst.msk [vmem:[#allocation2] sm:$0xff] %vm2717, %v2694
        %2719 = vst.msk [vmem:[#allocation2 + $0x28] sm:$0xff] %vm2717, %v2696
        %2720 = vst.msk [vmem:[#allocation2 + $0x50] sm:$0xff] %vm2717, %v2698
        %2721 = vst.msk [vmem:[#allocation2 + $0x78] sm:$0xff] %vm2717, %v2700
        %2722 = vst.msk [vmem:[#allocation2 + $0xa0] sm:$0xff] %vm2717, %v2702
        %2723 = vst.msk [vmem:[#allocation2 + $0xc8] sm:$0xff] %vm2717, %v2704
        %2724 = vst.msk [vmem:[#allocation2 + $0xf0] sm:$0xff] %vm2717, %v2706
        %2725 = vst.msk [vmem:[#allocation2 + $0x118] sm:$0xff] %vm2717, %v2708
        %v2726 = vld [vmem:[#allocation4 + $0x2] sm:$0xff]
        %v2727 = vld [vmem:[#allocation4 + $0x12] sm:$0xff]
        %v2728 = vld [vmem:[#allocation4 + $0x22] sm:$0xff]
        %v2729 = vld [vmem:[#allocation4 + $0x32] sm:$0xff]
        %v2730 = vld [vmem:[#allocation4 + $0x42] sm:$0xff]
        %v2731 = vld [vmem:[#allocation4 + $0x52] sm:$0xff]
        %v2732 = vld [vmem:[#allocation4 + $0x62] sm:$0xff]
        %v2733 = vld [vmem:[#allocation4 + $0x72] sm:$0xff]
        %2742 = vrot.lane.b32.xlu0 %v2726, 64
        %v2743 = vpop.permute.xlu0 %2742
        %2744 = vrot.lane.b32.xlu0 %v2727, 64
        %v2745 = vpop.permute.xlu0 %2744
        %2746 = vrot.lane.b32.xlu0 %v2728, 64
        %v2747 = vpop.permute.xlu0 %2746
        %2748 = vrot.lane.b32.xlu0 %v2729, 64
        %v2749 = vpop.permute.xlu0 %2748
        %2750 = vrot.lane.b32.xlu0 %v2730, 64
        %v2751 = vpop.permute.xlu0 %2750
        %2752 = vrot.lane.b32.xlu0 %v2731, 64
        %v2753 = vpop.permute.xlu0 %2752
        %2754 = vrot.lane.b32.xlu0 %v2732, 64
        %v2755 = vpop.permute.xlu0 %2754
        %2756 = vrot.lane.b32.xlu0 %v2733, 64
        %v2757 = vpop.permute.xlu0 %2756
        %vm2766 = vcmask 785920
        %2767 = vst.msk [vmem:[#allocation2] sm:$0xff] %vm2766, %v2743
        %2768 = vst.msk [vmem:[#allocation2 + $0x28] sm:$0xff] %vm2766, %v2745
        %2769 = vst.msk [vmem:[#allocation2 + $0x50] sm:$0xff] %vm2766, %v2747
        %2770 = vst.msk [vmem:[#allocation2 + $0x78] sm:$0xff] %vm2766, %v2749
        %2771 = vst.msk [vmem:[#allocation2 + $0xa0] sm:$0xff] %vm2766, %v2751
        %2772 = vst.msk [vmem:[#allocation2 + $0xc8] sm:$0xff] %vm2766, %v2753
        %2773 = vst.msk [vmem:[#allocation2 + $0xf0] sm:$0xff] %vm2766, %v2755
        %2774 = vst.msk [vmem:[#allocation2 + $0x118] sm:$0xff] %vm2766, %v2757
        %v2775 = vld [vmem:[%s2652] sm:$0xff]
        %v2776 = vld [vmem:[%s2652 + $0x10] sm:$0xff]
        %v2777 = vld [vmem:[%s2652 + $0x20] sm:$0xff]
        %v2778 = vld [vmem:[%s2652 + $0x30] sm:$0xff]
        %v2779 = vld [vmem:[%s2652 + $0x40] sm:$0xff]
        %v2780 = vld [vmem:[%s2652 + $0x50] sm:$0xff]
        %v2781 = vld [vmem:[%s2652 + $0x60] sm:$0xff]
        %v2782 = vld [vmem:[%s2652 + $0x70] sm:$0xff]
        %2791 = vrot.lane.b32.xlu0 %v2775, 96
        %v2792 = vpop.permute.xlu0 %2791
        %2793 = vrot.lane.b32.xlu0 %v2776, 96
        %v2794 = vpop.permute.xlu0 %2793
        %2795 = vrot.lane.b32.xlu0 %v2777, 96
        %v2796 = vpop.permute.xlu0 %2795
        %2797 = vrot.lane.b32.xlu0 %v2778, 96
        %v2798 = vpop.permute.xlu0 %2797
        %2799 = vrot.lane.b32.xlu0 %v2779, 96
        %v2800 = vpop.permute.xlu0 %2799
        %2801 = vrot.lane.b32.xlu0 %v2780, 96
        %v2802 = vpop.permute.xlu0 %2801
        %2803 = vrot.lane.b32.xlu0 %v2781, 96
        %v2804 = vpop.permute.xlu0 %2803
        %2805 = vrot.lane.b32.xlu0 %v2782, 96
        %v2806 = vpop.permute.xlu0 %2805
        %vm2815 = vcmask 1048320
        %2816 = vst.msk [vmem:[#allocation2] sm:$0xff] %vm2815, %v2792
        %2817 = vst.msk [vmem:[#allocation2 + $0x28] sm:$0xff] %vm2815, %v2794
        %2818 = vst.msk [vmem:[#allocation2 + $0x50] sm:$0xff] %vm2815, %v2796
        %2819 = vst.msk [vmem:[#allocation2 + $0x78] sm:$0xff] %vm2815, %v2798
        %2820 = vst.msk [vmem:[#allocation2 + $0xa0] sm:$0xff] %vm2815, %v2800
        %2821 = vst.msk [vmem:[#allocation2 + $0xc8] sm:$0xff] %vm2815, %v2802
        %2822 = vst.msk [vmem:[#allocation2 + $0xf0] sm:$0xff] %vm2815, %v2804
        %2823 = vst.msk [vmem:[#allocation2 + $0x118] sm:$0xff] %vm2815, %v2806
        %v2824 = vld [vmem:[%s2652 + $0x1] sm:$0xff]
        %v2825 = vld [vmem:[%s2652 + $0x11] sm:$0xff]
        %v2826 = vld [vmem:[%s2652 + $0x21] sm:$0xff]
        %v2827 = vld [vmem:[%s2652 + $0x31] sm:$0xff]
        %v2828 = vld [vmem:[%s2652 + $0x41] sm:$0xff]
        %v2829 = vld [vmem:[%s2652 + $0x51] sm:$0xff]
        %v2830 = vld [vmem:[%s2652 + $0x61] sm:$0xff]
        %v2831 = vld [vmem:[%s2652 + $0x71] sm:$0xff]
        %2832 = vst.msk [vmem:[#allocation2 + $0x8] sm:$0xff] %vm514, %v2824
        %2833 = vst.msk [vmem:[#allocation2 + $0x30] sm:$0xff] %vm514, %v2825
        %2834 = vst.msk [vmem:[#allocation2 + $0x58] sm:$0xff] %vm514, %v2826
        %2835 = vst.msk [vmem:[#allocation2 + $0x80] sm:$0xff] %vm514, %v2827
        %2836 = vst.msk [vmem:[#allocation2 + $0xa8] sm:$0xff] %vm514, %v2828
        %2837 = vst.msk [vmem:[#allocation2 + $0xd0] sm:$0xff] %vm514, %v2829
        %2838 = vst.msk [vmem:[#allocation2 + $0xf8] sm:$0xff] %vm514, %v2830
        %2839 = vst.msk [vmem:[#allocation2 + $0x120] sm:$0xff] %vm514, %v2831
        %v2840 = vld [vmem:[%s2652 + $0x2] sm:$0xff]
        %v2841 = vld [vmem:[%s2652 + $0x12] sm:$0xff]
        %v2842 = vld [vmem:[%s2652 + $0x22] sm:$0xff]
        %v2843 = vld [vmem:[%s2652 + $0x32] sm:$0xff]
        %v2844 = vld [vmem:[%s2652 + $0x42] sm:$0xff]
        %v2845 = vld [vmem:[%s2652 + $0x52] sm:$0xff]
        %v2846 = vld [vmem:[%s2652 + $0x62] sm:$0xff]
        %v2847 = vld [vmem:[%s2652 + $0x72] sm:$0xff]
        %2856 = vrot.lane.b32.xlu0 %v2840, 32
        %v2857 = vpop.permute.xlu0 %2856
        %2858 = vrot.lane.b32.xlu0 %v2841, 32
        %v2859 = vpop.permute.xlu0 %2858
        %2860 = vrot.lane.b32.xlu0 %v2842, 32
        %v2861 = vpop.permute.xlu0 %2860
        %2862 = vrot.lane.b32.xlu0 %v2843, 32
        %v2863 = vpop.permute.xlu0 %2862
        %2864 = vrot.lane.b32.xlu0 %v2844, 32
        %v2865 = vpop.permute.xlu0 %2864
        %2866 = vrot.lane.b32.xlu0 %v2845, 32
        %v2867 = vpop.permute.xlu0 %2866
        %2868 = vrot.lane.b32.xlu0 %v2846, 32
        %v2869 = vpop.permute.xlu0 %2868
        %2870 = vrot.lane.b32.xlu0 %v2847, 32
        %v2871 = vpop.permute.xlu0 %2870
        %2880 = vst.msk [vmem:[#allocation2 + $0x8] sm:$0xff] %vm2717, %v2857
        %2881 = vst.msk [vmem:[#allocation2 + $0x30] sm:$0xff] %vm2717, %v2859
        %2882 = vst.msk [vmem:[#allocation2 + $0x58] sm:$0xff] %vm2717, %v2861
        %2883 = vst.msk [vmem:[#allocation2 + $0x80] sm:$0xff] %vm2717, %v2863
        %2884 = vst.msk [vmem:[#allocation2 + $0xa8] sm:$0xff] %vm2717, %v2865
        %2885 = vst.msk [vmem:[#allocation2 + $0xd0] sm:$0xff] %vm2717, %v2867
        %2886 = vst.msk [vmem:[#allocation2 + $0xf8] sm:$0xff] %vm2717, %v2869
        %2887 = vst.msk [vmem:[#allocation2 + $0x120] sm:$0xff] %vm2717, %v2871
        %s2888 = scalar_lea.vmem [#allocation4], 32
        %v2889 = vld [vmem:[%s2888] sm:$0xff]
        %v2890 = vld [vmem:[%s2888 + $0x10] sm:$0xff]
        %v2891 = vld [vmem:[%s2888 + $0x20] sm:$0xff]
        %v2892 = vld [vmem:[%s2888 + $0x30] sm:$0xff]
        %v2893 = vld [vmem:[%s2888 + $0x40] sm:$0xff]
        %v2894 = vld [vmem:[%s2888 + $0x50] sm:$0xff]
        %v2895 = vld [vmem:[%s2888 + $0x60] sm:$0xff]
        %v2896 = vld [vmem:[%s2888 + $0x70] sm:$0xff]
        %2905 = vrot.lane.b32.xlu0 %v2889, 64
        %v2906 = vpop.permute.xlu0 %2905
        %2907 = vrot.lane.b32.xlu0 %v2890, 64
        %v2908 = vpop.permute.xlu0 %2907
        %2909 = vrot.lane.b32.xlu0 %v2891, 64
        %v2910 = vpop.permute.xlu0 %2909
        %2911 = vrot.lane.b32.xlu0 %v2892, 64
        %v2912 = vpop.permute.xlu0 %2911
        %2913 = vrot.lane.b32.xlu0 %v2893, 64
        %v2914 = vpop.permute.xlu0 %2913
        %2915 = vrot.lane.b32.xlu0 %v2894, 64
        %v2916 = vpop.permute.xlu0 %2915
        %2917 = vrot.lane.b32.xlu0 %v2895, 64
        %v2918 = vpop.permute.xlu0 %2917
        %2919 = vrot.lane.b32.xlu0 %v2896, 64
        %v2920 = vpop.permute.xlu0 %2919
        %2929 = vst.msk [vmem:[#allocation2 + $0x8] sm:$0xff] %vm2766, %v2906
        %2930 = vst.msk [vmem:[#allocation2 + $0x30] sm:$0xff] %vm2766, %v2908
        %2931 = vst.msk [vmem:[#allocation2 + $0x58] sm:$0xff] %vm2766, %v2910
        %2932 = vst.msk [vmem:[#allocation2 + $0x80] sm:$0xff] %vm2766, %v2912
        %2933 = vst.msk [vmem:[#allocation2 + $0xa8] sm:$0xff] %vm2766, %v2914
        %2934 = vst.msk [vmem:[#allocation2 + $0xd0] sm:$0xff] %vm2766, %v2916
        %2935 = vst.msk [vmem:[#allocation2 + $0xf8] sm:$0xff] %vm2766, %v2918
        %2936 = vst.msk [vmem:[#allocation2 + $0x120] sm:$0xff] %vm2766, %v2920
        %v2937 = vld [vmem:[%s2888 + $0x1] sm:$0xff]
        %v2938 = vld [vmem:[%s2888 + $0x11] sm:$0xff]
        %v2939 = vld [vmem:[%s2888 + $0x21] sm:$0xff]
        %v2940 = vld [vmem:[%s2888 + $0x31] sm:$0xff]
        %v2941 = vld [vmem:[%s2888 + $0x41] sm:$0xff]
        %v2942 = vld [vmem:[%s2888 + $0x51] sm:$0xff]
        %v2943 = vld [vmem:[%s2888 + $0x61] sm:$0xff]
        %v2944 = vld [vmem:[%s2888 + $0x71] sm:$0xff]
        %2953 = vrot.lane.b32.xlu0 %v2937, 96
        %v2954 = vpop.permute.xlu0 %2953
        %2955 = vrot.lane.b32.xlu0 %v2938, 96
        %v2956 = vpop.permute.xlu0 %2955
        %2957 = vrot.lane.b32.xlu0 %v2939, 96
        %v2958 = vpop.permute.xlu0 %2957
        %2959 = vrot.lane.b32.xlu0 %v2940, 96
        %v2960 = vpop.permute.xlu0 %2959
        %2961 = vrot.lane.b32.xlu0 %v2941, 96
        %v2962 = vpop.permute.xlu0 %2961
        %2963 = vrot.lane.b32.xlu0 %v2942, 96
        %v2964 = vpop.permute.xlu0 %2963
        %2965 = vrot.lane.b32.xlu0 %v2943, 96
        %v2966 = vpop.permute.xlu0 %2965
        %2967 = vrot.lane.b32.xlu0 %v2944, 96
        %v2968 = vpop.permute.xlu0 %2967
        %2977 = vst.msk [vmem:[#allocation2 + $0x8] sm:$0xff] %vm2815, %v2954
        %2978 = vst.msk [vmem:[#allocation2 + $0x30] sm:$0xff] %vm2815, %v2956
        %2979 = vst.msk [vmem:[#allocation2 + $0x58] sm:$0xff] %vm2815, %v2958
        %2980 = vst.msk [vmem:[#allocation2 + $0x80] sm:$0xff] %vm2815, %v2960
        %2981 = vst.msk [vmem:[#allocation2 + $0xa8] sm:$0xff] %vm2815, %v2962
        %2982 = vst.msk [vmem:[#allocation2 + $0xd0] sm:$0xff] %vm2815, %v2964
        %2983 = vst.msk [vmem:[#allocation2 + $0xf8] sm:$0xff] %vm2815, %v2966
        %2984 = vst.msk [vmem:[#allocation2 + $0x120] sm:$0xff] %vm2815, %v2968
        %v2985 = vld [vmem:[%s2888 + $0x2] sm:$0xff]
        %v2986 = vld [vmem:[%s2888 + $0x12] sm:$0xff]
        %v2987 = vld [vmem:[%s2888 + $0x22] sm:$0xff]
        %v2988 = vld [vmem:[%s2888 + $0x32] sm:$0xff]
        %v2989 = vld [vmem:[%s2888 + $0x42] sm:$0xff]
        %v2990 = vld [vmem:[%s2888 + $0x52] sm:$0xff]
        %v2991 = vld [vmem:[%s2888 + $0x62] sm:$0xff]
        %v2992 = vld [vmem:[%s2888 + $0x72] sm:$0xff]
        %2993 = vst.msk [vmem:[#allocation2 + $0x10] sm:$0xff] %vm514, %v2985
        %2994 = vst.msk [vmem:[#allocation2 + $0x38] sm:$0xff] %vm514, %v2986
        %2995 = vst.msk [vmem:[#allocation2 + $0x60] sm:$0xff] %vm514, %v2987
        %2996 = vst.msk [vmem:[#allocation2 + $0x88] sm:$0xff] %vm514, %v2988
        %2997 = vst.msk [vmem:[#allocation2 + $0xb0] sm:$0xff] %vm514, %v2989
        %2998 = vst.msk [vmem:[#allocation2 + $0xd8] sm:$0xff] %vm514, %v2990
        %2999 = vst.msk [vmem:[#allocation2 + $0x100] sm:$0xff] %vm514, %v2991
        %3000 = vst.msk [vmem:[#allocation2 + $0x128] sm:$0xff] %vm514, %v2992
        %v3001 = vld [vmem:[#allocation2] sm:$0xff]
        %v3002 = vld [vmem:[#allocation2 + $0x8] sm:$0xff]
        %v3003 = vld [vmem:[#allocation2 + $0x10] sm:$0xff]
        %v3004 = vld [vmem:[#allocation2 + $0x28] sm:$0xff]
        %v3005 = vld [vmem:[#allocation2 + $0x30] sm:$0xff]
        %v3006 = vld [vmem:[#allocation2 + $0x38] sm:$0xff]
        %v3007 = vld [vmem:[#allocation2 + $0x50] sm:$0xff]
        %v3008 = vld [vmem:[#allocation2 + $0x58] sm:$0xff]
        %v3009 = vld [vmem:[#allocation2 + $0x60] sm:$0xff]
        %v3010 = vld [vmem:[#allocation2 + $0x78] sm:$0xff]
        %v3011 = vld [vmem:[#allocation2 + $0x80] sm:$0xff]
        %v3012 = vld [vmem:[#allocation2 + $0x88] sm:$0xff]
        %v3013 = vld [vmem:[#allocation2 + $0xa0] sm:$0xff]
        %v3014 = vld [vmem:[#allocation2 + $0xa8] sm:$0xff]
        %v3015 = vld [vmem:[#allocation2 + $0xb0] sm:$0xff]
        %v3016 = vld [vmem:[#allocation2 + $0xc8] sm:$0xff]
        %v3017 = vld [vmem:[#allocation2 + $0xd0] sm:$0xff]
        %v3018 = vld [vmem:[#allocation2 + $0xd8] sm:$0xff]
        %v3019 = vld [vmem:[#allocation2 + $0xf0] sm:$0xff]
        %v3020 = vld [vmem:[#allocation2 + $0xf8] sm:$0xff]
        %v3021 = vld [vmem:[#allocation2 + $0x100] sm:$0xff]
        %v3022 = vld [vmem:[#allocation2 + $0x118] sm:$0xff]
        %v3023 = vld [vmem:[#allocation2 + $0x120] sm:$0xff]
        %v3024 = vld [vmem:[#allocation2 + $0x128] sm:$0xff]
        %v3025 = vld [vmem:[%s3] sm:$0xff]
        %v3026 = vld [vmem:[%s3 + $0x8] sm:$0xff]
        %v3027 = vld [vmem:[%s3 + $0x10] sm:$0xff]
        %v3028 = vld [vmem:[%s3 + $0x18] sm:$0xff]
        %v3029 = vld [vmem:[%s3 + $0x20] sm:$0xff]
        %v3030 = vld [vmem:[%s3 + $0x28] sm:$0xff]
        %v3031 = vld [vmem:[%s3 + $0x30] sm:$0xff]
        %v3032 = vld [vmem:[%s3 + $0x38] sm:$0xff]
        %v3033 = vld [vmem:[%s3 + $0x40] sm:$0xff]
        %v3034 = vld [vmem:[%s3 + $0x48] sm:$0xff]
        %v3035 = vld [vmem:[%s3 + $0x50] sm:$0xff]
        %v3036 = vld [vmem:[%s3 + $0x58] sm:$0xff]
        %v3037 = vld [vmem:[%s3 + $0x60] sm:$0xff]
        %v3038 = vld [vmem:[%s3 + $0x68] sm:$0xff]
        %v3039 = vld [vmem:[%s3 + $0x70] sm:$0xff]
        %v3040 = vld [vmem:[%s3 + $0x78] sm:$0xff]
        %v3041 = vld [vmem:[%s3 + $0x80] sm:$0xff]
        %v3042 = vld [vmem:[%s3 + $0x88] sm:$0xff]
        %v3043 = vld [vmem:[%s3 + $0x90] sm:$0xff]
        %v3044 = vld [vmem:[%s3 + $0x98] sm:$0xff]
        %v3045 = vld [vmem:[%s3 + $0xa0] sm:$0xff]
        %v3046 = vld [vmem:[%s3 + $0xa8] sm:$0xff]
        %v3047 = vld [vmem:[%s3 + $0xb0] sm:$0xff]
        %v3048 = vld [vmem:[%s3 + $0xb8] sm:$0xff]
        %v3049 = vld [vmem:[%s3 + $0xc0] sm:$0xff]
        %v3050 = vld [vmem:[%s3 + $0xc8] sm:$0xff]
        %v3051 = vld [vmem:[%s3 + $0xd0] sm:$0xff]
        %v3052 = vld [vmem:[%s3 + $0xd8] sm:$0xff]
        %v3053 = vld [vmem:[%s3 + $0xe0] sm:$0xff]
        %v3054 = vld [vmem:[%s3 + $0xe8] sm:$0xff]
        %v3055 = vld [vmem:[%s3 + $0xf0] sm:$0xff]
        %v3056 = vld [vmem:[%s3 + $0xf8] sm:$0xff]
        %v3057 = vld [vmem:[%s3 + $0x100] sm:$0xff]
        %v3058 = vld [vmem:[%s3 + $0x108] sm:$0xff]
        %v3059 = vld [vmem:[%s3 + $0x110] sm:$0xff]
        %v3060 = vld [vmem:[%s3 + $0x118] sm:$0xff]
        %v3061 = vld [vmem:[%s4] sm:$0x1]
        %v3063 = vperm.slane %v3061, 0
        %v3066 = vsel %vm514, %v3003, 0
        %v3069 = vsel %vm514, %v3006, 0
        %v3072 = vsel %vm514, %v3009, 0
        %v3075 = vsel %vm514, %v3012, 0
        %v3078 = vsel %vm514, %v3015, 0
        %v3081 = vsel %vm514, %v3018, 0
        %v3084 = vsel %vm514, %v3021, 0
        %v3087 = vsel %vm514, %v3024, 0
        %3089 = vmatpush.msra.mxu0 %v3040
        %3090 = vmatpush.msra.mxu0 %v3039
        %3091 = vmatpush.msra.mxu0 %v3038
        %3092 = vmatpush.msra.mxu0 %v3037
        %3093 = vmatpush.msra.mxu0 %v3036
        %3094 = vmatpush.msra.mxu0 %v3035
        %3095 = vmatpush.msra.mxu0 %v3034
        %3096 = vmatpush.msra.mxu0 %v3033
        %3097 = vmatpush.msra.mxu0 %v3032
        %3098 = vmatpush.msra.mxu0 %v3031
        %3099 = vmatpush.msra.mxu0 %v3030
        %3100 = vmatpush.msra.mxu0 %v3029
        %3101 = vmatpush.msra.mxu0 %v3028
        %3102 = vmatpush.msra.mxu0 %v3027
        %3103 = vmatpush.msra.mxu0 %v3026
        %3104 = vmatpush.msra.mxu0 %v3025
        %3105 = vmatmul.f32.gmra.mxu0 %v3001
        %v3106 = vpop.f32.mrf.mxu0
        %v3107 = vadd.f32 %v3063, %v3106
        %3108 = vmatmul.f32.gmra.mxu0 %v3004
        %v3109 = vpop.f32.mrf.mxu0
        %v3110 = vadd.f32 %v3063, %v3109
        %3111 = vmatmul.f32.gmra.mxu0 %v3007
        %v3112 = vpop.f32.mrf.mxu0
        %v3113 = vadd.f32 %v3063, %v3112
        %3114 = vmatmul.f32.gmra.mxu0 %v3010
        %v3115 = vpop.f32.mrf.mxu0
        %v3116 = vadd.f32 %v3063, %v3115
        %3117 = vmatmul.f32.gmra.mxu0 %v3013
        %v3118 = vpop.f32.mrf.mxu0
        %v3119 = vadd.f32 %v3063, %v3118
        %3120 = vmatmul.f32.gmra.mxu0 %v3016
        %v3121 = vpop.f32.mrf.mxu0
        %v3122 = vadd.f32 %v3063, %v3121
        %3123 = vmatmul.f32.gmra.mxu0 %v3019
        %v3124 = vpop.f32.mrf.mxu0
        %v3125 = vadd.f32 %v3063, %v3124
        %3126 = vmatmul.f32.gmra.mxu0 %v3022
        %v3127 = vpop.f32.mrf.mxu0
        %v3128 = vadd.f32 %v3063, %v3127
        %3129 = vdwg.mxu0
        %3130 = vmatpush.msra.mxu0 %v3056
        %3131 = vmatpush.msra.mxu0 %v3055
        %3132 = vmatpush.msra.mxu0 %v3054
        %3133 = vmatpush.msra.mxu0 %v3053
        %3134 = vmatpush.msra.mxu0 %v3052
        %3135 = vmatpush.msra.mxu0 %v3051
        %3136 = vmatpush.msra.mxu0 %v3050
        %3137 = vmatpush.msra.mxu0 %v3049
        %3138 = vmatpush.msra.mxu0 %v3048
        %3139 = vmatpush.msra.mxu0 %v3047
        %3140 = vmatpush.msra.mxu0 %v3046
        %3141 = vmatpush.msra.mxu0 %v3045
        %3142 = vmatpush.msra.mxu0 %v3044
        %3143 = vmatpush.msra.mxu0 %v3043
        %3144 = vmatpush.msra.mxu0 %v3042
        %3145 = vmatpush.msra.mxu0 %v3041
        %3146 = vmatmul.f32.gmra.mxu0 %v3002
        %v3147 = vpop.f32.mrf.mxu0
        %v3148 = vadd.f32 %v3107, %v3147
        %3149 = vmatmul.f32.gmra.mxu0 %v3005
        %v3150 = vpop.f32.mrf.mxu0
        %v3151 = vadd.f32 %v3110, %v3150
        %3152 = vmatmul.f32.gmra.mxu0 %v3008
        %v3153 = vpop.f32.mrf.mxu0
        %v3154 = vadd.f32 %v3113, %v3153
        %3155 = vmatmul.f32.gmra.mxu0 %v3011
        %v3156 = vpop.f32.mrf.mxu0
        %v3157 = vadd.f32 %v3116, %v3156
        %3158 = vmatmul.f32.gmra.mxu0 %v3014
        %v3159 = vpop.f32.mrf.mxu0
        %v3160 = vadd.f32 %v3119, %v3159
        %3161 = vmatmul.f32.gmra.mxu0 %v3017
        %v3162 = vpop.f32.mrf.mxu0
        %v3163 = vadd.f32 %v3122, %v3162
        %3164 = vmatmul.f32.gmra.mxu0 %v3020
        %v3165 = vpop.f32.mrf.mxu0
        %v3166 = vadd.f32 %v3125, %v3165
        %3167 = vmatmul.f32.gmra.mxu0 %v3023
        %v3168 = vpop.f32.mrf.mxu0
        %v3169 = vadd.f32 %v3128, %v3168
        %3170 = vdwg.mxu0
        %3171 = vmatpush.msra.mxu0 0.0
        %3172 = vmatpush.msra.mxu0 0.0
        %3173 = vmatpush.msra.mxu0 0.0
        %3174 = vmatpush.msra.mxu0 0.0
        %3175 = vmatpush.msra.mxu0 0.0
        %3176 = vmatpush.msra.mxu0 0.0
        %3177 = vmatpush.msra.mxu0 0.0
        %3178 = vmatpush.msra.mxu0 0.0
        %3179 = vmatpush.msra.mxu0 0.0
        %3180 = vmatpush.msra.mxu0 0.0
        %3181 = vmatpush.msra.mxu0 0.0
        %3182 = vmatpush.msra.mxu0 0.0
        %3183 = vmatpush.msra.mxu0 %v3060
        %3184 = vmatpush.msra.mxu0 %v3059
        %3185 = vmatpush.msra.mxu0 %v3058
        %3186 = vmatpush.msra.mxu0 %v3057
        %3187 = vmatmul.f32.gmra.mxu0 %v3066
        %v3188 = vpop.f32.mrf.mxu0
        %v3189 = vadd.f32 %v3148, %v3188
        %3190 = vmatmul.f32.gmra.mxu0 %v3069
        %v3191 = vpop.f32.mrf.mxu0
        %v3192 = vadd.f32 %v3151, %v3191
        %3193 = vmatmul.f32.gmra.mxu0 %v3072
        %v3194 = vpop.f32.mrf.mxu0
        %v3195 = vadd.f32 %v3154, %v3194
        %3196 = vmatmul.f32.gmra.mxu0 %v3075
        %v3197 = vpop.f32.mrf.mxu0
        %v3198 = vadd.f32 %v3157, %v3197
        %3199 = vmatmul.f32.gmra.mxu0 %v3078
        %v3200 = vpop.f32.mrf.mxu0
        %v3201 = vadd.f32 %v3160, %v3200
        %3202 = vmatmul.f32.gmra.mxu0 %v3081
        %v3203 = vpop.f32.mrf.mxu0
        %v3204 = vadd.f32 %v3163, %v3203
        %3205 = vmatmul.f32.gmra.mxu0 %v3084
        %v3206 = vpop.f32.mrf.mxu0
        %v3207 = vadd.f32 %v3166, %v3206
        %3208 = vmatmul.f32.gmra.mxu0 %v3087
        %v3209 = vpop.f32.mrf.mxu0
        %v3210 = vadd.f32 %v3169, %v3209
        %3211 = vdwg.mxu0
        %v3212 = vmax.f32 %v3189, 0.0
        %v3213 = vmax.f32 %v3192, 0.0
        %v3214 = vmax.f32 %v3195, 0.0
        %v3215 = vmax.f32 %v3198, 0.0
        %v3216 = vmax.f32 %v3201, 0.0
        %v3217 = vmax.f32 %v3204, 0.0
        %v3218 = vmax.f32 %v3207, 0.0
        %v3219 = vmax.f32 %v3210, 0.0
        %vm3220 = vcmask 523264
        %3221 = vst.msk [vmem:[#allocation10] sm:$0xff] %vm3220, %v3212
        %3222 = vst.msk [vmem:[#allocation10 + $0x8] sm:$0xff] %vm3220, %v3213
        %3223 = vst.msk [vmem:[#allocation10 + $0x10] sm:$0xff] %vm3220, %v3214
        %3224 = vst.msk [vmem:[#allocation10 + $0x18] sm:$0xff] %vm3220, %v3215
        %3225 = vst.msk [vmem:[#allocation10 + $0x20] sm:$0xff] %vm3220, %v3216
        %3226 = vst.msk [vmem:[#allocation10 + $0x28] sm:$0xff] %vm3220, %v3217
        %3227 = vst.msk [vmem:[#allocation10 + $0x30] sm:$0xff] %vm3220, %v3218
        %3228 = vst.msk [vmem:[#allocation10 + $0x38] sm:$0xff] %vm3220, %v3219
        %v3229 = vld [vmem:[#allocation10] ss:$2 sm:$0xf]
        %s3230 = scalar_lea.vmem [#allocation10], 16
        %v3231 = vld [vmem:[%s3230] ss:$2 sm:$0xf]
        %s3232 = scalar_lea.vmem [#allocation10], 32
        %v3233 = vld [vmem:[%s3232] ss:$2 sm:$0xf]
        %s3234 = scalar_lea.vmem [#allocation10], 48
        %v3235 = vld [vmem:[%s3234] ss:$2 sm:$0xf]
        %s3236 = scalar_lea.vmem [#allocation10], 1
        %v3237 = vld [vmem:[%s3236] ss:$2 sm:$0xf]
        %s3238 = scalar_lea.vmem [#allocation10], 17
        %v3239 = vld [vmem:[%s3238] ss:$2 sm:$0xf]
        %s3240 = scalar_lea.vmem [#allocation10], 33
        %v3241 = vld [vmem:[%s3240] ss:$2 sm:$0xf]
        %s3242 = scalar_lea.vmem [#allocation10], 49
        %v3243 = vld [vmem:[%s3242] ss:$2 sm:$0xf]
        %s3244 = scalar_lea.vmem [#allocation10], 8
        %v3245 = vld [vmem:[%s3244] ss:$2 sm:$0xf]
        %s3246 = scalar_lea.vmem %s3244, 16 [#allocation10]
        %v3247 = vld [vmem:[%s3246] ss:$2 sm:$0xf]
        %s3248 = scalar_lea.vmem %s3244, 32 [#allocation10]
        %v3249 = vld [vmem:[%s3248] ss:$2 sm:$0xf]
        %s3250 = scalar_lea.vmem %s3244, 48 [#allocation10]
        %v3251 = vld [vmem:[%s3250] ss:$2 sm:$0xf]
        %s3252 = scalar_lea.vmem %s3244, 1 [#allocation10]
        %v3253 = vld [vmem:[%s3252] ss:$2 sm:$0xf]
        %s3254 = scalar_lea.vmem %s3244, 17 [#allocation10]
        %v3255 = vld [vmem:[%s3254] ss:$2 sm:$0xf]
        %s3256 = scalar_lea.vmem %s3244, 33 [#allocation10]
        %v3257 = vld [vmem:[%s3256] ss:$2 sm:$0xf]
        %s3258 = scalar_lea.vmem %s3244, 49 [#allocation10]
        %v3259 = vld [vmem:[%s3258] ss:$2 sm:$0xf]
        %v3260 = vmax.f32 %v3229, %v3237
        %v3261 = vmax.f32 %v3231, %v3239
        %v3262 = vmax.f32 %v3233, %v3241
        %v3263 = vmax.f32 %v3235, %v3243
        %v3264 = vmax.f32 %v3245, %v3253
        %v3265 = vmax.f32 %v3247, %v3255
        %v3266 = vmax.f32 %v3249, %v3257
        %v3267 = vmax.f32 %v3251, %v3259
        %v3268 = vmax.f32 %v3260, %v3264
        %v3269 = vmax.f32 %v3261, %v3265
        %v3270 = vmax.f32 %v3262, %v3266
        %v3271 = vmax.f32 %v3263, %v3267
        %s3272 = scalar_lea.vmem [#allocation5], 8
        %vm3273 = vcmask 519168
        %3274 = vst.msk [vmem:[%s3272 + $0x1] sm:$0xf] %vm3273, %v3268
        %3275 = vst.msk [vmem:[%s3272 + $0x9] sm:$0xf] %vm3273, %v3269
        %3276 = vst.msk [vmem:[%s3272 + $0x11] sm:$0xf] %vm3273, %v3270
        %3277 = vst.msk [vmem:[%s3272 + $0x19] sm:$0xf] %vm3273, %v3271
        %v3278 = vld [vmem:[#allocation5] sm:$0xf]
        %v3279 = vld [vmem:[#allocation5 + $0x8] sm:$0xf]
        %v3280 = vld [vmem:[#allocation5 + $0x10] sm:$0xf]
        %v3281 = vld [vmem:[#allocation5 + $0x18] sm:$0xf]
        %3286 = vst [vmem:[#allocation1] ss:$2 sm:$0xff] %v3278
        %s3287 = scalar_lea.vmem [#allocation1], 1
        %3288 = vst [vmem:[%s3287] ss:$2 sm:$0xff] %v3279
        %s3289 = scalar_lea.vmem [#allocation1], 16
        %3290 = vst [vmem:[%s3289] ss:$2 sm:$0xff] %v3280
        %s3291 = scalar_lea.vmem [#allocation1], 17
        %3292 = vst [vmem:[%s3291] ss:$2 sm:$0xff] %v3281
        %v3293 = vld.sshfl [vmem:[#allocation1] sm:$0xff pattern:$0x75316420]
        %v3294 = vld.sshfl [vmem:[#allocation1 + $0x10] sm:$0xff pattern:$0x75316420]
        %3297 = vst.msk [vmem:[#allocation2] sm:$0xff] %vm3220, %v3293
        %3298 = vst.msk [vmem:[#allocation2 + $0x28] sm:$0xff] %vm3220, %v3294
        %v3299 = vld [vmem:[#allocation5 + $0x1] sm:$0xf]
        %v3300 = vld [vmem:[#allocation5 + $0x9] sm:$0xf]
        %v3301 = vld [vmem:[#allocation5 + $0x11] sm:$0xf]
        %v3302 = vld [vmem:[#allocation5 + $0x19] sm:$0xf]
        %3307 = vst [vmem:[#allocation1] ss:$2 sm:$0xff] %v3299
        %s3308 = scalar_lea.vmem [#allocation1], 1
        %3309 = vst [vmem:[%s3308] ss:$2 sm:$0xff] %v3300
        %s3310 = scalar_lea.vmem [#allocation1], 16
        %3311 = vst [vmem:[%s3310] ss:$2 sm:$0xff] %v3301
        %s3312 = scalar_lea.vmem [#allocation1], 17
        %3313 = vst [vmem:[%s3312] ss:$2 sm:$0xff] %v3302
        %v3314 = vld.sshfl [vmem:[#allocation1] sm:$0xff pattern:$0x75316420]
        %v3315 = vld.sshfl [vmem:[#allocation1 + $0x10] sm:$0xff pattern:$0x75316420]
        %3316 = vrot.lane.b32.xlu0 %v3314, 64
        %v3317 = vpop.permute.xlu0 %3316
        %3318 = vrot.lane.b32.xlu0 %v3315, 64
        %v3319 = vpop.permute.xlu0 %3318
        %vm3322 = vcmask 1048064
        %3323 = vst.msk [vmem:[#allocation2] sm:$0xff] %vm3322, %v3317
        %3324 = vst.msk [vmem:[#allocation2 + $0x28] sm:$0xff] %vm3322, %v3319
        %v3325 = vld [vmem:[#allocation5 + $0x2] sm:$0xf]
        %v3326 = vld [vmem:[#allocation5 + $0xa] sm:$0xf]
        %v3327 = vld [vmem:[#allocation5 + $0x12] sm:$0xf]
        %v3328 = vld [vmem:[#allocation5 + $0x1a] sm:$0xf]
        %3333 = vst [vmem:[#allocation1] ss:$2 sm:$0xff] %v3325
        %s3334 = scalar_lea.vmem [#allocation1], 1
        %3335 = vst [vmem:[%s3334] ss:$2 sm:$0xff] %v3326
        %s3336 = scalar_lea.vmem [#allocation1], 16
        %3337 = vst [vmem:[%s3336] ss:$2 sm:$0xff] %v3327
        %s3338 = scalar_lea.vmem [#allocation1], 17
        %3339 = vst [vmem:[%s3338] ss:$2 sm:$0xff] %v3328
        %v3340 = vld.sshfl [vmem:[#allocation1] sm:$0xff pattern:$0x75316420]
        %v3341 = vld.sshfl [vmem:[#allocation1 + $0x10] sm:$0xff pattern:$0x75316420]
        %3344 = vst.msk [vmem:[#allocation2 + $0x8] sm:$0xff] %vm3220, %v3340
        %3345 = vst.msk [vmem:[#allocation2 + $0x30] sm:$0xff] %vm3220, %v3341
        %v3346 = vld [vmem:[%s3272] sm:$0xf]
        %v3347 = vld [vmem:[%s3272 + $0x8] sm:$0xf]
        %v3348 = vld [vmem:[%s3272 + $0x10] sm:$0xf]
        %v3349 = vld [vmem:[%s3272 + $0x18] sm:$0xf]
        %3354 = vst [vmem:[#allocation1] ss:$2 sm:$0xff] %v3346
        %s3355 = scalar_lea.vmem [#allocation1], 1
        %3356 = vst [vmem:[%s3355] ss:$2 sm:$0xff] %v3347
        %s3357 = scalar_lea.vmem [#allocation1], 16
        %3358 = vst [vmem:[%s3357] ss:$2 sm:$0xff] %v3348
        %s3359 = scalar_lea.vmem [#allocation1], 17
        %3360 = vst [vmem:[%s3359] ss:$2 sm:$0xff] %v3349
        %v3361 = vld.sshfl [vmem:[#allocation1] sm:$0xff pattern:$0x75316420]
        %v3362 = vld.sshfl [vmem:[#allocation1 + $0x10] sm:$0xff pattern:$0x75316420]
        %3363 = vrot.lane.b32.xlu0 %v3361, 64
        %v3364 = vpop.permute.xlu0 %3363
        %3365 = vrot.lane.b32.xlu0 %v3362, 64
        %v3366 = vpop.permute.xlu0 %3365
        %3369 = vst.msk [vmem:[#allocation2 + $0x8] sm:$0xff] %vm3322, %v3364
        %3370 = vst.msk [vmem:[#allocation2 + $0x30] sm:$0xff] %vm3322, %v3366
        %v3371 = vld [vmem:[%s3272 + $0x1] sm:$0xf]
        %v3372 = vld [vmem:[%s3272 + $0x9] sm:$0xf]
        %v3373 = vld [vmem:[%s3272 + $0x11] sm:$0xf]
        %v3374 = vld [vmem:[%s3272 + $0x19] sm:$0xf]
        %3379 = vst [vmem:[#allocation1] ss:$2 sm:$0xff] %v3371
        %s3380 = scalar_lea.vmem [#allocation1], 1
        %3381 = vst [vmem:[%s3380] ss:$2 sm:$0xff] %v3372
        %s3382 = scalar_lea.vmem [#allocation1], 16
        %3383 = vst [vmem:[%s3382] ss:$2 sm:$0xff] %v3373
        %s3384 = scalar_lea.vmem [#allocation1], 17
        %3385 = vst [vmem:[%s3384] ss:$2 sm:$0xff] %v3374
        %v3386 = vld.sshfl [vmem:[#allocation1] sm:$0xff pattern:$0x75316420]
        %v3387 = vld.sshfl [vmem:[#allocation1 + $0x10] sm:$0xff pattern:$0x75316420]
        %3390 = vst.msk [vmem:[#allocation2 + $0x10] sm:$0xff] %vm3220, %v3386
        %3391 = vst.msk [vmem:[#allocation2 + $0x38] sm:$0xff] %vm3220, %v3387
        %v3392 = vld [vmem:[%s3272 + $0x2] sm:$0xf]
        %v3393 = vld [vmem:[%s3272 + $0xa] sm:$0xf]
        %v3394 = vld [vmem:[%s3272 + $0x12] sm:$0xf]
        %v3395 = vld [vmem:[%s3272 + $0x1a] sm:$0xf]
        %3400 = vst [vmem:[#allocation1] ss:$2 sm:$0xff] %v3392
        %s3401 = scalar_lea.vmem [#allocation1], 1
        %3402 = vst [vmem:[%s3401] ss:$2 sm:$0xff] %v3393
        %s3403 = scalar_lea.vmem [#allocation1], 16
        %3404 = vst [vmem:[%s3403] ss:$2 sm:$0xff] %v3394
        %s3405 = scalar_lea.vmem [#allocation1], 17
        %3406 = vst [vmem:[%s3405] ss:$2 sm:$0xff] %v3395
        %v3407 = vld.sshfl [vmem:[#allocation1] sm:$0xff pattern:$0x75316420]
        %v3408 = vld.sshfl [vmem:[#allocation1 + $0x10] sm:$0xff pattern:$0x75316420]
        %3409 = vrot.lane.b32.xlu0 %v3407, 64
        %v3410 = vpop.permute.xlu0 %3409
        %3411 = vrot.lane.b32.xlu0 %v3408, 64
        %v3412 = vpop.permute.xlu0 %3411
        %3415 = vst.msk [vmem:[#allocation2 + $0x10] sm:$0xff] %vm3322, %v3410
        %3416 = vst.msk [vmem:[#allocation2 + $0x38] sm:$0xff] %vm3322, %v3412
        %s3417 = scalar_lea.vmem [#allocation5], 16
        %v3418 = vld [vmem:[%s3417] sm:$0xf]
        %v3419 = vld [vmem:[%s3417 + $0x8] sm:$0xf]
        %v3420 = vld [vmem:[%s3417 + $0x10] sm:$0xf]
        %v3421 = vld [vmem:[%s3417 + $0x18] sm:$0xf]
        %3426 = vst [vmem:[#allocation1] ss:$2 sm:$0xff] %v3418
        %s3427 = scalar_lea.vmem [#allocation1], 1
        %3428 = vst [vmem:[%s3427] ss:$2 sm:$0xff] %v3419
        %s3429 = scalar_lea.vmem [#allocation1], 16
        %3430 = vst [vmem:[%s3429] ss:$2 sm:$0xff] %v3420
        %s3431 = scalar_lea.vmem [#allocation1], 17
        %3432 = vst [vmem:[%s3431] ss:$2 sm:$0xff] %v3421
        %v3433 = vld.sshfl [vmem:[#allocation1] sm:$0xff pattern:$0x75316420]
        %v3434 = vld.sshfl [vmem:[#allocation1 + $0x10] sm:$0xff pattern:$0x75316420]
        %3437 = vst.msk [vmem:[#allocation2 + $0x18] sm:$0xff] %vm3220, %v3433
        %3438 = vst.msk [vmem:[#allocation2 + $0x40] sm:$0xff] %vm3220, %v3434
        %v3439 = vld [vmem:[%s3417 + $0x1] sm:$0xf]
        %v3440 = vld [vmem:[%s3417 + $0x9] sm:$0xf]
        %v3441 = vld [vmem:[%s3417 + $0x11] sm:$0xf]
        %v3442 = vld [vmem:[%s3417 + $0x19] sm:$0xf]
        %3447 = vst [vmem:[#allocation1] ss:$2 sm:$0xff] %v3439
        %s3448 = scalar_lea.vmem [#allocation1], 1
        %3449 = vst [vmem:[%s3448] ss:$2 sm:$0xff] %v3440
        %s3450 = scalar_lea.vmem [#allocation1], 16
        %3451 = vst [vmem:[%s3450] ss:$2 sm:$0xff] %v3441
        %s3452 = scalar_lea.vmem [#allocation1], 17
        %3453 = vst [vmem:[%s3452] ss:$2 sm:$0xff] %v3442
        %v3454 = vld.sshfl [vmem:[#allocation1] sm:$0xff pattern:$0x75316420]
        %v3455 = vld.sshfl [vmem:[#allocation1 + $0x10] sm:$0xff pattern:$0x75316420]
        %3456 = vrot.lane.b32.xlu0 %v3454, 64
        %v3457 = vpop.permute.xlu0 %3456
        %3458 = vrot.lane.b32.xlu0 %v3455, 64
        %v3459 = vpop.permute.xlu0 %3458
        %3462 = vst.msk [vmem:[#allocation2 + $0x18] sm:$0xff] %vm3322, %v3457
        %3463 = vst.msk [vmem:[#allocation2 + $0x40] sm:$0xff] %vm3322, %v3459
        %v3464 = vld [vmem:[%s3417 + $0x2] sm:$0xf]
        %v3465 = vld [vmem:[%s3417 + $0xa] sm:$0xf]
        %v3466 = vld [vmem:[%s3417 + $0x12] sm:$0xf]
        %v3467 = vld [vmem:[%s3417 + $0x1a] sm:$0xf]
        %3472 = vst [vmem:[#allocation1] ss:$2 sm:$0xff] %v3464
        %s3473 = scalar_lea.vmem [#allocation1], 1
        %3474 = vst [vmem:[%s3473] ss:$2 sm:$0xff] %v3465
        %s3475 = scalar_lea.vmem [#allocation1], 16
        %3476 = vst [vmem:[%s3475] ss:$2 sm:$0xff] %v3466
        %s3477 = scalar_lea.vmem [#allocation1], 17
        %3478 = vst [vmem:[%s3477] ss:$2 sm:$0xff] %v3467
        %v3479 = vld.sshfl [vmem:[#allocation1] sm:$0xff pattern:$0x75316420]
        %v3480 = vld.sshfl [vmem:[#allocation1 + $0x10] sm:$0xff pattern:$0x75316420]
        %3483 = vst.msk [vmem:[#allocation2 + $0x20] sm:$0xff] %vm3220, %v3479
        %3484 = vst.msk [vmem:[#allocation2 + $0x48] sm:$0xff] %vm3220, %v3480
        %v3485 = vld [vmem:[#allocation2] sm:$0xff]
        %v3486 = vld [vmem:[#allocation2 + $0x8] sm:$0xff]
        %v3487 = vld [vmem:[#allocation2 + $0x10] sm:$0xff]
        %v3488 = vld [vmem:[#allocation2 + $0x18] sm:$0xff]
        %v3489 = vld [vmem:[#allocation2 + $0x20] sm:$0xff]
        %v3490 = vld [vmem:[#allocation2 + $0x28] sm:$0xff]
        %v3491 = vld [vmem:[#allocation2 + $0x30] sm:$0xff]
        %v3492 = vld [vmem:[#allocation2 + $0x38] sm:$0xff]
        %v3493 = vld [vmem:[#allocation2 + $0x40] sm:$0xff]
        %v3494 = vld [vmem:[#allocation2 + $0x48] sm:$0xff]
        %v3495 = vld [vmem:[%s5] sm:$0xff]
        %v3496 = vld [vmem:[%s5 + $0x8] sm:$0xff]
        %v3497 = vld [vmem:[%s5 + $0x10] sm:$0xff]
        %v3498 = vld [vmem:[%s5 + $0x18] sm:$0xff]
        %v3499 = vld [vmem:[%s5 + $0x20] sm:$0xff]
        %v3500 = vld [vmem:[%s5 + $0x28] sm:$0xff]
        %v3501 = vld [vmem:[%s5 + $0x30] sm:$0xff]
        %v3502 = vld [vmem:[%s5 + $0x38] sm:$0xff]
        %v3503 = vld [vmem:[%s5 + $0x40] sm:$0xff]
        %v3504 = vld [vmem:[%s5 + $0x48] sm:$0xff]
        %v3505 = vld [vmem:[%s5 + $0x50] sm:$0xff]
        %v3506 = vld [vmem:[%s5 + $0x58] sm:$0xff]
        %v3507 = vld [vmem:[%s5 + $0x60] sm:$0xff]
        %v3508 = vld [vmem:[%s5 + $0x68] sm:$0xff]
        %v3509 = vld [vmem:[%s5 + $0x70] sm:$0xff]
        %v3510 = vld [vmem:[%s5 + $0x78] sm:$0xff]
        %v3511 = vld [vmem:[%s5 + $0x80] sm:$0xff]
        %v3512 = vld [vmem:[%s5 + $0x88] sm:$0xff]
        %v3513 = vld [vmem:[%s5 + $0x90] sm:$0xff]
        %v3514 = vld [vmem:[%s5 + $0x98] sm:$0xff]
        %v3515 = vld [vmem:[%s5 + $0xa0] sm:$0xff]
        %v3516 = vld [vmem:[%s5 + $0xa8] sm:$0xff]
        %v3517 = vld [vmem:[%s5 + $0xb0] sm:$0xff]
        %v3518 = vld [vmem:[%s5 + $0xb8] sm:$0xff]
        %v3519 = vld [vmem:[%s5 + $0xc0] sm:$0xff]
        %v3520 = vld [vmem:[%s5 + $0xc8] sm:$0xff]
        %v3521 = vld [vmem:[%s5 + $0xd0] sm:$0xff]
        %v3522 = vld [vmem:[%s5 + $0xd8] sm:$0xff]
        %v3523 = vld [vmem:[%s5 + $0xe0] sm:$0xff]
        %v3524 = vld [vmem:[%s5 + $0xe8] sm:$0xff]
        %v3525 = vld [vmem:[%s5 + $0xf0] sm:$0xff]
        %v3526 = vld [vmem:[%s5 + $0xf8] sm:$0xff]
        %v3527 = vld [vmem:[%s5 + $0x100] sm:$0xff]
        %v3528 = vld [vmem:[%s5 + $0x108] sm:$0xff]
        %v3529 = vld [vmem:[%s5 + $0x110] sm:$0xff]
        %v3530 = vld [vmem:[%s5 + $0x118] sm:$0xff]
        %v3531 = vld [vmem:[%s5 + $0x120] sm:$0xff]
        %v3532 = vld [vmem:[%s5 + $0x128] sm:$0xff]
        %v3533 = vld [vmem:[%s5 + $0x130] sm:$0xff]
        %v3534 = vld [vmem:[%s5 + $0x138] sm:$0xff]
        %v3535 = vld [vmem:[%s5 + $0x140] sm:$0xff]
        %v3536 = vld [vmem:[%s5 + $0x148] sm:$0xff]
        %v3537 = vld [vmem:[%s5 + $0x150] sm:$0xff]
        %v3538 = vld [vmem:[%s5 + $0x158] sm:$0xff]
        %v3539 = vld [vmem:[%s5 + $0x160] sm:$0xff]
        %v3540 = vld [vmem:[%s5 + $0x168] sm:$0xff]
        %v3541 = vld [vmem:[%s5 + $0x170] sm:$0xff]
        %v3542 = vld [vmem:[%s5 + $0x178] sm:$0xff]
        %v3543 = vld [vmem:[%s5 + $0x180] sm:$0xff]
        %v3544 = vld [vmem:[%s5 + $0x188] sm:$0xff]
        %v3545 = vld [vmem:[%s5 + $0x190] sm:$0xff]
        %v3546 = vld [vmem:[%s5 + $0x198] sm:$0xff]
        %v3547 = vld [vmem:[%s5 + $0x1a0] sm:$0xff]
        %v3548 = vld [vmem:[%s5 + $0x1a8] sm:$0xff]
        %v3549 = vld [vmem:[%s5 + $0x1b0] sm:$0xff]
        %v3550 = vld [vmem:[%s5 + $0x1b8] sm:$0xff]
        %v3551 = vld [vmem:[%s5 + $0x1c0] sm:$0xff]
        %v3552 = vld [vmem:[%s5 + $0x1c8] sm:$0xff]
        %v3553 = vld [vmem:[%s5 + $0x1d0] sm:$0xff]
        %v3554 = vld [vmem:[%s5 + $0x1d8] sm:$0xff]
        %v3555 = vld [vmem:[%s5 + $0x1e0] sm:$0xff]
        %v3556 = vld [vmem:[%s5 + $0x1e8] sm:$0xff]
        %v3557 = vld [vmem:[%s5 + $0x1f0] sm:$0xff]
        %v3558 = vld [vmem:[%s5 + $0x1f8] sm:$0xff]
        %v3559 = vld [vmem:[%s5 + $0x200] sm:$0xff]
        %v3560 = vld [vmem:[%s5 + $0x208] sm:$0xff]
        %v3561 = vld [vmem:[%s5 + $0x210] sm:$0xff]
        %v3562 = vld [vmem:[%s5 + $0x218] sm:$0xff]
        %v3563 = vld [vmem:[%s5 + $0x220] sm:$0xff]
        %v3564 = vld [vmem:[%s5 + $0x228] sm:$0xff]
        %v3565 = vld [vmem:[%s5 + $0x230] sm:$0xff]
        %v3566 = vld [vmem:[%s5 + $0x238] sm:$0xff]
        %v3567 = vld [vmem:[%s6] sm:$0x1]
        %v3569 = vperm.slane %v3567, 0
        %v3572 = vsel %vm3220, %v3489, 0
        %v3575 = vsel %vm3220, %v3494, 0
        %3577 = vmatpush.msra.mxu0 %v3510
        %3578 = vmatpush.msra.mxu0 %v3509
        %3579 = vmatpush.msra.mxu0 %v3508
        %3580 = vmatpush.msra.mxu0 %v3507
        %3581 = vmatpush.msra.mxu0 %v3506
        %3582 = vmatpush.msra.mxu0 %v3505
        %3583 = vmatpush.msra.mxu0 %v3504
        %3584 = vmatpush.msra.mxu0 %v3503
        %3585 = vmatpush.msra.mxu0 %v3502
        %3586 = vmatpush.msra.mxu0 %v3501
        %3587 = vmatpush.msra.mxu0 %v3500
        %3588 = vmatpush.msra.mxu0 %v3499
        %3589 = vmatpush.msra.mxu0 %v3498
        %3590 = vmatpush.msra.mxu0 %v3497
        %3591 = vmatpush.msra.mxu0 %v3496
        %3592 = vmatpush.msra.mxu0 %v3495
        %3593 = vmatmul.f32.gmra.mxu0 %v3485
        %v3594 = vpop.f32.mrf.mxu0
        %v3595 = vadd.f32 %v3569, %v3594
        %3596 = vmatmul.f32.gmra.mxu0 %v3490
        %v3597 = vpop.f32.mrf.mxu0
        %v3598 = vadd.f32 %v3569, %v3597
        %3599 = vdwg.mxu0
        %3600 = vmatpush.msra.mxu0 %v3526
        %3601 = vmatpush.msra.mxu0 %v3525
        %3602 = vmatpush.msra.mxu0 %v3524
        %3603 = vmatpush.msra.mxu0 %v3523
        %3604 = vmatpush.msra.mxu0 %v3522
        %3605 = vmatpush.msra.mxu0 %v3521
        %3606 = vmatpush.msra.mxu0 %v3520
        %3607 = vmatpush.msra.mxu0 %v3519
        %3608 = vmatpush.msra.mxu0 %v3518
        %3609 = vmatpush.msra.mxu0 %v3517
        %3610 = vmatpush.msra.mxu0 %v3516
        %3611 = vmatpush.msra.mxu0 %v3515
        %3612 = vmatpush.msra.mxu0 %v3514
        %3613 = vmatpush.msra.mxu0 %v3513
        %3614 = vmatpush.msra.mxu0 %v3512
        %3615 = vmatpush.msra.mxu0 %v3511
        %3616 = vmatmul.f32.gmra.mxu0 %v3486
        %v3617 = vpop.f32.mrf.mxu0
        %v3618 = vadd.f32 %v3595, %v3617
        %3619 = vmatmul.f32.gmra.mxu0 %v3491
        %v3620 = vpop.f32.mrf.mxu0
        %v3621 = vadd.f32 %v3598, %v3620
        %3622 = vdwg.mxu0
        %3623 = vmatpush.msra.mxu0 %v3542
        %3624 = vmatpush.msra.mxu0 %v3541
        %3625 = vmatpush.msra.mxu0 %v3540
        %3626 = vmatpush.msra.mxu0 %v3539
        %3627 = vmatpush.msra.mxu0 %v3538
        %3628 = vmatpush.msra.mxu0 %v3537
        %3629 = vmatpush.msra.mxu0 %v3536
        %3630 = vmatpush.msra.mxu0 %v3535
        %3631 = vmatpush.msra.mxu0 %v3534
        %3632 = vmatpush.msra.mxu0 %v3533
        %3633 = vmatpush.msra.mxu0 %v3532
        %3634 = vmatpush.msra.mxu0 %v3531
        %3635 = vmatpush.msra.mxu0 %v3530
        %3636 = vmatpush.msra.mxu0 %v3529
        %3637 = vmatpush.msra.mxu0 %v3528
        %3638 = vmatpush.msra.mxu0 %v3527
        %3639 = vmatmul.f32.gmra.mxu0 %v3487
        %v3640 = vpop.f32.mrf.mxu0
        %v3641 = vadd.f32 %v3618, %v3640
        %3642 = vmatmul.f32.gmra.mxu0 %v3492
        %v3643 = vpop.f32.mrf.mxu0
        %v3644 = vadd.f32 %v3621, %v3643
        %3645 = vdwg.mxu0
        %3646 = vmatpush.msra.mxu0 %v3558
        %3647 = vmatpush.msra.mxu0 %v3557
        %3648 = vmatpush.msra.mxu0 %v3556
        %3649 = vmatpush.msra.mxu0 %v3555
        %3650 = vmatpush.msra.mxu0 %v3554
        %3651 = vmatpush.msra.mxu0 %v3553
        %3652 = vmatpush.msra.mxu0 %v3552
        %3653 = vmatpush.msra.mxu0 %v3551
        %3654 = vmatpush.msra.mxu0 %v3550
        %3655 = vmatpush.msra.mxu0 %v3549
        %3656 = vmatpush.msra.mxu0 %v3548
        %3657 = vmatpush.msra.mxu0 %v3547
        %3658 = vmatpush.msra.mxu0 %v3546
        %3659 = vmatpush.msra.mxu0 %v3545
        %3660 = vmatpush.msra.mxu0 %v3544
        %3661 = vmatpush.msra.mxu0 %v3543
        %3662 = vmatmul.f32.gmra.mxu0 %v3488
        %v3663 = vpop.f32.mrf.mxu0
        %v3664 = vadd.f32 %v3641, %v3663
        %3665 = vmatmul.f32.gmra.mxu0 %v3493
        %v3666 = vpop.f32.mrf.mxu0
        %v3667 = vadd.f32 %v3644, %v3666
        %3668 = vdwg.mxu0
        %3669 = vmatpush.msra.mxu0 0.0
        %3670 = vmatpush.msra.mxu0 0.0
        %3671 = vmatpush.msra.mxu0 0.0
        %3672 = vmatpush.msra.mxu0 0.0
        %3673 = vmatpush.msra.mxu0 0.0
        %3674 = vmatpush.msra.mxu0 0.0
        %3675 = vmatpush.msra.mxu0 0.0
        %3676 = vmatpush.msra.mxu0 0.0
        %3677 = vmatpush.msra.mxu0 %v3566
        %3678 = vmatpush.msra.mxu0 %v3565
        %3679 = vmatpush.msra.mxu0 %v3564
        %3680 = vmatpush.msra.mxu0 %v3563
        %3681 = vmatpush.msra.mxu0 %v3562
        %3682 = vmatpush.msra.mxu0 %v3561
        %3683 = vmatpush.msra.mxu0 %v3560
        %3684 = vmatpush.msra.mxu0 %v3559
        %3685 = vmatmul.f32.gmra.mxu0 %v3572
        %v3686 = vpop.f32.mrf.mxu0
        %v3687 = vadd.f32 %v3664, %v3686
        %3688 = vmatmul.f32.gmra.mxu0 %v3575
        %v3689 = vpop.f32.mrf.mxu0
        %v3690 = vadd.f32 %v3667, %v3689
        %3691 = vdwg.mxu0
        %v3692 = vmax.f32 %v3687, 0.0
        %v3693 = vmax.f32 %v3690, 0.0
        %v3696 = vrot.slane %v3692, 4
        %v3697 = vrot.slane %v3693, 4
        %3700 = vst [vmem:[#allocation11] sm:$0xf] %v3692
        %3701 = vst [vmem:[#allocation11 + $0x4] sm:$0xf] %v3696
        %3702 = vst [vmem:[#allocation11 + $0x8] sm:$0xf] %v3693
        %3703 = vst [vmem:[#allocation11 + $0xc] sm:$0xf] %v3697
        %v3704 = vld [vmem:[#allocation11] ss:$2 sm:$0x3]
        %s3705 = scalar_lea.vmem [#allocation11], 8
        %v3706 = vld [vmem:[%s3705] ss:$2 sm:$0x3]
        %s3707 = scalar_lea.vmem [#allocation11], 1
        %v3708 = vld [vmem:[%s3707] ss:$2 sm:$0x3]
        %s3709 = scalar_lea.vmem [#allocation11], 9
        %v3710 = vld [vmem:[%s3709] ss:$2 sm:$0x3]
        %s3711 = scalar_lea.vmem [#allocation11], 4
        %v3712 = vld [vmem:[%s3711] ss:$2 sm:$0x3]
        %s3713 = scalar_lea.vmem %s3711, 8 [#allocation11]
        %v3714 = vld [vmem:[%s3713] ss:$2 sm:$0x3]
        %s3715 = scalar_lea.vmem %s3711, 1 [#allocation11]
        %v3716 = vld [vmem:[%s3715] ss:$2 sm:$0x3]
        %s3717 = scalar_lea.vmem %s3711, 9 [#allocation11]
        %v3718 = vld [vmem:[%s3717] ss:$2 sm:$0x3]
        %v3719 = vmax.f32 %v3704, %v3708
        %v3720 = vmax.f32 %v3706, %v3710
        %v3721 = vmax.f32 %v3712, %v3716
        %v3722 = vmax.f32 %v3714, %v3718
        %v3723 = vmax.f32 %v3719, %v3721
        %v3724 = vmax.f32 %v3720, %v3722
        %3725 = vst [vmem:[#allocation6] sm:$0x3] %v3723
        %3726 = vst [vmem:[#allocation6 + $0x4] sm:$0x3] %v3724
        %v3727 = vld [vmem:[#allocation6] sm:$0x3]
        %v3728 = vld [vmem:[#allocation6 + $0x4] sm:$0x3]
        %3731 = vst [vmem:[#allocation1] ss:$4 sm:$0xff] %v3727
        %s3732 = scalar_lea.vmem [#allocation1], 1
        %3733 = vst [vmem:[%s3732] ss:$4 sm:$0xff] %v3728
        %v3734 = vld.sshfl [vmem:[#allocation1] sm:$0xff pattern:$0x73625140]
        %3736 = vst [vmem:[#allocation2] sm:$0xf] %v3734
        %v3737 = vld [vmem:[#allocation6 + $0x1] sm:$0x3]
        %v3738 = vld [vmem:[#allocation6 + $0x5] sm:$0x3]
        %3741 = vst [vmem:[#allocation1] ss:$4 sm:$0xff] %v3737
        %s3742 = scalar_lea.vmem [#allocation1], 1
        %3743 = vst [vmem:[%s3742] ss:$4 sm:$0xff] %v3738
        %v3744 = vld.sshfl [vmem:[#allocation1] sm:$0xff pattern:$0x73625140]
        %3746 = vst [vmem:[#allocation2 + $0x8] sm:$0xf] %v3744
        %s3747 = scalar_lea.vmem [#allocation6], 4
        %v3748 = vld [vmem:[%s3747] sm:$0x3]
        %v3749 = vld [vmem:[%s3747 + $0x4] sm:$0x3]
        %3752 = vst [vmem:[#allocation1] ss:$4 sm:$0xff] %v3748
        %s3753 = scalar_lea.vmem [#allocation1], 1
        %3754 = vst [vmem:[%s3753] ss:$4 sm:$0xff] %v3749
        %v3755 = vld.sshfl [vmem:[#allocation1] sm:$0xff pattern:$0x73625140]
        %3757 = vst [vmem:[#allocation2 + $0x10] sm:$0xf] %v3755
        %v3758 = vld [vmem:[%s3747 + $0x1] sm:$0x3]
        %v3759 = vld [vmem:[%s3747 + $0x5] sm:$0x3]
        %3762 = vst [vmem:[#allocation1] ss:$4 sm:$0xff] %v3758
        %s3763 = scalar_lea.vmem [#allocation1], 1
        %3764 = vst [vmem:[%s3763] ss:$4 sm:$0xff] %v3759
        %v3765 = vld.sshfl [vmem:[#allocation1] sm:$0xff pattern:$0x73625140]
        %3767 = vst [vmem:[#allocation2 + $0x18] sm:$0xf] %v3765
        %v3768 = vld [vmem:[#allocation2] sm:$0xf]
        %v3769 = vld [vmem:[#allocation2 + $0x8] sm:$0xf]
        %v3770 = vld [vmem:[#allocation2 + $0x10] sm:$0xf]
        %v3771 = vld [vmem:[#allocation2 + $0x18] sm:$0xf]
        %v3772 = vld [vmem:[#allocation12] sm:$0xff]
        %v3773 = vld [vmem:[#allocation12 + $0x8] sm:$0xff]
        %v3774 = vld [vmem:[#allocation12 + $0x10] sm:$0xff]
        %v3775 = vld [vmem:[#allocation12 + $0x18] sm:$0xff]
        %v3776 = vld [vmem:[#allocation12 + $0x20] sm:$0xff]
        %v3777 = vld [vmem:[#allocation12 + $0x28] sm:$0xff]
        %v3778 = vld [vmem:[#allocation12 + $0x30] sm:$0xff]
        %v3779 = vld [vmem:[#allocation12 + $0x38] sm:$0xff]
        %v3780 = vld [vmem:[#allocation12 + $0x40] sm:$0xff]
        %v3781 = vld [vmem:[#allocation12 + $0x48] sm:$0xff]
        %v3782 = vld [vmem:[#allocation12 + $0x50] sm:$0xff]
        %v3783 = vld [vmem:[#allocation12 + $0x58] sm:$0xff]
        %v3784 = vld [vmem:[#allocation12 + $0x60] sm:$0xff]
        %v3785 = vld [vmem:[#allocation12 + $0x68] sm:$0xff]
        %v3786 = vld [vmem:[#allocation12 + $0x70] sm:$0xff]
        %v3787 = vld [vmem:[#allocation12 + $0x78] sm:$0xff]
        %v3788 = vld [vmem:[#allocation12 + $0x80] sm:$0xff]
        %v3789 = vld [vmem:[#allocation12 + $0x88] sm:$0xff]
        %v3790 = vld [vmem:[#allocation12 + $0x90] sm:$0xff]
        %v3791 = vld [vmem:[#allocation12 + $0x98] sm:$0xff]
        %v3792 = vld [vmem:[#allocation12 + $0xa0] sm:$0xff]
        %v3793 = vld [vmem:[#allocation12 + $0xa8] sm:$0xff]
        %v3794 = vld [vmem:[#allocation12 + $0xb0] sm:$0xff]
        %v3795 = vld [vmem:[#allocation12 + $0xb8] sm:$0xff]
        %v3796 = vld [vmem:[#allocation12 + $0xc0] sm:$0xff]
        %v3797 = vld [vmem:[#allocation12 + $0xc8] sm:$0xff]
        %v3798 = vld [vmem:[#allocation12 + $0xd0] sm:$0xff]
        %v3799 = vld [vmem:[#allocation12 + $0xd8] sm:$0xff]
        %v3800 = vld [vmem:[#allocation12 + $0xe0] sm:$0xff]
        %v3801 = vld [vmem:[#allocation12 + $0xe8] sm:$0xff]
        %v3802 = vld [vmem:[#allocation12 + $0xf0] sm:$0xff]
        %v3803 = vld [vmem:[#allocation12 + $0xf8] sm:$0xff]
        %v3804 = vld [vmem:[#allocation12 + $0x100] sm:$0xff]
        %v3805 = vld [vmem:[#allocation12 + $0x108] sm:$0xff]
        %v3806 = vld [vmem:[#allocation12 + $0x110] sm:$0xff]
        %v3807 = vld [vmem:[#allocation12 + $0x118] sm:$0xff]
        %v3808 = vld [vmem:[#allocation12 + $0x120] sm:$0xff]
        %v3809 = vld [vmem:[#allocation12 + $0x128] sm:$0xff]
        %v3810 = vld [vmem:[#allocation12 + $0x130] sm:$0xff]
        %v3811 = vld [vmem:[#allocation12 + $0x138] sm:$0xff]
        %v3812 = vld [vmem:[#allocation12 + $0x140] sm:$0xff]
        %v3813 = vld [vmem:[#allocation12 + $0x148] sm:$0xff]
        %v3814 = vld [vmem:[#allocation12 + $0x150] sm:$0xff]
        %v3815 = vld [vmem:[#allocation12 + $0x158] sm:$0xff]
        %v3816 = vld [vmem:[#allocation12 + $0x160] sm:$0xff]
        %v3817 = vld [vmem:[#allocation12 + $0x168] sm:$0xff]
        %v3818 = vld [vmem:[#allocation12 + $0x170] sm:$0xff]
        %v3819 = vld [vmem:[#allocation12 + $0x178] sm:$0xff]
        %v3820 = vld [vmem:[#allocation12 + $0x180] sm:$0xff]
        %v3821 = vld [vmem:[#allocation12 + $0x188] sm:$0xff]
        %v3822 = vld [vmem:[#allocation12 + $0x190] sm:$0xff]
        %v3823 = vld [vmem:[#allocation12 + $0x198] sm:$0xff]
        %v3824 = vld [vmem:[#allocation12 + $0x1a0] sm:$0xff]
        %v3825 = vld [vmem:[#allocation12 + $0x1a8] sm:$0xff]
        %v3826 = vld [vmem:[#allocation12 + $0x1b0] sm:$0xff]
        %v3827 = vld [vmem:[#allocation12 + $0x1b8] sm:$0xff]
        %v3828 = vld [vmem:[#allocation12 + $0x1c0] sm:$0xff]
        %v3829 = vld [vmem:[#allocation12 + $0x1c8] sm:$0xff]
        %v3830 = vld [vmem:[#allocation12 + $0x1d0] sm:$0xff]
        %v3831 = vld [vmem:[#allocation12 + $0x1d8] sm:$0xff]
        %v3832 = vld [vmem:[#allocation12 + $0x1e0] sm:$0xff]
        %v3833 = vld [vmem:[#allocation12 + $0x1e8] sm:$0xff]
        %v3834 = vld [vmem:[#allocation12 + $0x1f0] sm:$0xff]
        %v3835 = vld [vmem:[#allocation12 + $0x1f8] sm:$0xff]
        %v3836 = vld [vmem:[#allocation12 + $0x200] sm:$0xff]
        %v3837 = vld [vmem:[#allocation12 + $0x208] sm:$0xff]
        %v3838 = vld [vmem:[#allocation12 + $0x210] sm:$0xff]
        %v3839 = vld [vmem:[#allocation12 + $0x218] sm:$0xff]
        %v3840 = vld [vmem:[#allocation12 + $0x220] sm:$0xff]
        %v3841 = vld [vmem:[#allocation12 + $0x228] sm:$0xff]
        %v3842 = vld [vmem:[#allocation12 + $0x230] sm:$0xff]
        %v3843 = vld [vmem:[#allocation12 + $0x238] sm:$0xff]
        %v3844 = vld [vmem:[#allocation12 + $0x240] sm:$0xff]
        %v3845 = vld [vmem:[#allocation12 + $0x248] sm:$0xff]
        %v3846 = vld [vmem:[#allocation12 + $0x250] sm:$0xff]
        %v3847 = vld [vmem:[#allocation12 + $0x258] sm:$0xff]
        %v3848 = vld [vmem:[#allocation12 + $0x260] sm:$0xff]
        %v3849 = vld [vmem:[#allocation12 + $0x268] sm:$0xff]
        %v3850 = vld [vmem:[#allocation12 + $0x270] sm:$0xff]
        %v3851 = vld [vmem:[#allocation12 + $0x278] sm:$0xff]
        %v3852 = vld [vmem:[#allocation12 + $0x280] sm:$0xff]
        %v3853 = vld [vmem:[#allocation12 + $0x288] sm:$0xff]
        %v3854 = vld [vmem:[#allocation12 + $0x290] sm:$0xff]
        %v3855 = vld [vmem:[#allocation12 + $0x298] sm:$0xff]
        %v3856 = vld [vmem:[#allocation12 + $0x2a0] sm:$0xff]
        %v3857 = vld [vmem:[#allocation12 + $0x2a8] sm:$0xff]
        %v3858 = vld [vmem:[#allocation12 + $0x2b0] sm:$0xff]
        %v3859 = vld [vmem:[#allocation12 + $0x2b8] sm:$0xff]
        %v3860 = vld [vmem:[#allocation12 + $0x2c0] sm:$0xff]
        %v3861 = vld [vmem:[#allocation12 + $0x2c8] sm:$0xff]
        %v3862 = vld [vmem:[#allocation12 + $0x2d0] sm:$0xff]
        %v3863 = vld [vmem:[#allocation12 + $0x2d8] sm:$0xff]
        %v3864 = vld [vmem:[#allocation12 + $0x2e0] sm:$0xff]
        %v3865 = vld [vmem:[#allocation12 + $0x2e8] sm:$0xff]
        %v3866 = vld [vmem:[#allocation12 + $0x2f0] sm:$0xff]
        %v3867 = vld [vmem:[#allocation12 + $0x2f8] sm:$0xff]
        %v3868 = vld [vmem:[#allocation12 + $0x300] sm:$0xff]
        %v3869 = vld [vmem:[#allocation12 + $0x308] sm:$0xff]
        %v3870 = vld [vmem:[#allocation12 + $0x310] sm:$0xff]
        %v3871 = vld [vmem:[#allocation12 + $0x318] sm:$0xff]
        %v3872 = vld [vmem:[#allocation12 + $0x320] sm:$0xff]
        %v3873 = vld [vmem:[#allocation12 + $0x328] sm:$0xff]
        %v3874 = vld [vmem:[#allocation12 + $0x330] sm:$0xff]
        %v3875 = vld [vmem:[#allocation12 + $0x338] sm:$0xff]
        %v3876 = vld [vmem:[#allocation12 + $0x340] sm:$0xff]
        %v3877 = vld [vmem:[#allocation12 + $0x348] sm:$0xff]
        %v3878 = vld [vmem:[#allocation12 + $0x350] sm:$0xff]
        %v3879 = vld [vmem:[#allocation12 + $0x358] sm:$0xff]
        %v3880 = vld [vmem:[#allocation12 + $0x360] sm:$0xff]
        %v3881 = vld [vmem:[#allocation12 + $0x368] sm:$0xff]
        %v3882 = vld [vmem:[#allocation12 + $0x370] sm:$0xff]
        %v3883 = vld [vmem:[#allocation12 + $0x378] sm:$0xff]
        %v3884 = vld [vmem:[#allocation12 + $0x380] sm:$0xff]
        %v3885 = vld [vmem:[#allocation12 + $0x388] sm:$0xff]
        %v3886 = vld [vmem:[#allocation12 + $0x390] sm:$0xff]
        %v3887 = vld [vmem:[#allocation12 + $0x398] sm:$0xff]
        %v3888 = vld [vmem:[#allocation12 + $0x3a0] sm:$0xff]
        %v3889 = vld [vmem:[#allocation12 + $0x3a8] sm:$0xff]
        %v3890 = vld [vmem:[#allocation12 + $0x3b0] sm:$0xff]
        %v3891 = vld [vmem:[#allocation12 + $0x3b8] sm:$0xff]
        %v3892 = vld [vmem:[#allocation12 + $0x3c0] sm:$0xff]
        %v3893 = vld [vmem:[#allocation12 + $0x3c8] sm:$0xff]
        %v3894 = vld [vmem:[#allocation12 + $0x3d0] sm:$0xff]
        %v3895 = vld [vmem:[#allocation12 + $0x3d8] sm:$0xff]
        %v3896 = vld [vmem:[#allocation12 + $0x3e0] sm:$0xff]
        %v3897 = vld [vmem:[#allocation12 + $0x3e8] sm:$0xff]
        %v3898 = vld [vmem:[#allocation12 + $0x3f0] sm:$0xff]
        %v3899 = vld [vmem:[#allocation12 + $0x3f8] sm:$0xff]
        %v3900 = vld [vmem:[%s8] sm:$0x3]
        %v3902 = vperm.slane %v3900, 0
        %v3903 = vperm.slane %v3900, 1
        %3906 = vmatpush.msra.mxu0 %v3802
        %3907 = vmatpush.msra.mxu0 %v3800
        %3908 = vmatpush.msra.mxu0 %v3798
        %3909 = vmatpush.msra.mxu0 %v3796
        %3910 = vmatpush.msra.mxu0 %v3794
        %3911 = vmatpush.msra.mxu0 %v3792
        %3912 = vmatpush.msra.mxu0 %v3790
        %3913 = vmatpush.msra.mxu0 %v3788
        %3914 = vmatpush.msra.mxu0 %v3786
        %3915 = vmatpush.msra.mxu0 %v3784
        %3916 = vmatpush.msra.mxu0 %v3782
        %3917 = vmatpush.msra.mxu0 %v3780
        %3918 = vmatpush.msra.mxu0 %v3778
        %3919 = vmatpush.msra.mxu0 %v3776
        %3920 = vmatpush.msra.mxu0 %v3774
        %3921 = vmatpush.msra.mxu0 %v3772
        %3922 = vmatmul.f32.gmra.mxu0 %v3768
        %v3923 = vpop.f32.mrf.mxu0
        %v3924 = vadd.f32 %v3902, %v3923
        %3925 = vdwg.mxu0
        %3926 = vmatpush.msra.mxu0 %v3834
        %3927 = vmatpush.msra.mxu0 %v3832
        %3928 = vmatpush.msra.mxu0 %v3830
        %3929 = vmatpush.msra.mxu0 %v3828
        %3930 = vmatpush.msra.mxu0 %v3826
        %3931 = vmatpush.msra.mxu0 %v3824
        %3932 = vmatpush.msra.mxu0 %v3822
        %3933 = vmatpush.msra.mxu0 %v3820
        %3934 = vmatpush.msra.mxu0 %v3818
        %3935 = vmatpush.msra.mxu0 %v3816
        %3936 = vmatpush.msra.mxu0 %v3814
        %3937 = vmatpush.msra.mxu0 %v3812
        %3938 = vmatpush.msra.mxu0 %v3810
        %3939 = vmatpush.msra.mxu0 %v3808
        %3940 = vmatpush.msra.mxu0 %v3806
        %3941 = vmatpush.msra.mxu0 %v3804
        %3942 = vmatmul.f32.gmra.mxu0 %v3769
        %v3943 = vpop.f32.mrf.mxu0
        %v3944 = vadd.f32 %v3924, %v3943
        %3945 = vdwg.mxu0
        %3946 = vmatpush.msra.mxu0 %v3866
        %3947 = vmatpush.msra.mxu0 %v3864
        %3948 = vmatpush.msra.mxu0 %v3862
        %3949 = vmatpush.msra.mxu0 %v3860
        %3950 = vmatpush.msra.mxu0 %v3858
        %3951 = vmatpush.msra.mxu0 %v3856
        %3952 = vmatpush.msra.mxu0 %v3854
        %3953 = vmatpush.msra.mxu0 %v3852
        %3954 = vmatpush.msra.mxu0 %v3850
        %3955 = vmatpush.msra.mxu0 %v3848
        %3956 = vmatpush.msra.mxu0 %v3846
        %3957 = vmatpush.msra.mxu0 %v3844
        %3958 = vmatpush.msra.mxu0 %v3842
        %3959 = vmatpush.msra.mxu0 %v3840
        %3960 = vmatpush.msra.mxu0 %v3838
        %3961 = vmatpush.msra.mxu0 %v3836
        %3962 = vmatmul.f32.gmra.mxu0 %v3770
        %v3963 = vpop.f32.mrf.mxu0
        %v3964 = vadd.f32 %v3944, %v3963
        %3965 = vdwg.mxu0
        %3966 = vmatpush.msra.mxu0 %v3898
        %3967 = vmatpush.msra.mxu0 %v3896
        %3968 = vmatpush.msra.mxu0 %v3894
        %3969 = vmatpush.msra.mxu0 %v3892
        %3970 = vmatpush.msra.mxu0 %v3890
        %3971 = vmatpush.msra.mxu0 %v3888
        %3972 = vmatpush.msra.mxu0 %v3886
        %3973 = vmatpush.msra.mxu0 %v3884
        %3974 = vmatpush.msra.mxu0 %v3882
        %3975 = vmatpush.msra.mxu0 %v3880
        %3976 = vmatpush.msra.mxu0 %v3878
        %3977 = vmatpush.msra.mxu0 %v3876
        %3978 = vmatpush.msra.mxu0 %v3874
        %3979 = vmatpush.msra.mxu0 %v3872
        %3980 = vmatpush.msra.mxu0 %v3870
        %3981 = vmatpush.msra.mxu0 %v3868
        %3982 = vmatmul.f32.gmra.mxu0 %v3771
        %v3983 = vpop.f32.mrf.mxu0
        %v3984 = vadd.f32 %v3964, %v3983
        %3985 = vdwg.mxu0
        %3986 = vmatpush.msra.mxu0 %v3803
        %3987 = vmatpush.msra.mxu0 %v3801
        %3988 = vmatpush.msra.mxu0 %v3799
        %3989 = vmatpush.msra.mxu0 %v3797
        %3990 = vmatpush.msra.mxu0 %v3795
        %3991 = vmatpush.msra.mxu0 %v3793
        %3992 = vmatpush.msra.mxu0 %v3791
        %3993 = vmatpush.msra.mxu0 %v3789
        %3994 = vmatpush.msra.mxu0 %v3787
        %3995 = vmatpush.msra.mxu0 %v3785
        %3996 = vmatpush.msra.mxu0 %v3783
        %3997 = vmatpush.msra.mxu0 %v3781
        %3998 = vmatpush.msra.mxu0 %v3779
        %3999 = vmatpush.msra.mxu0 %v3777
        %4000 = vmatpush.msra.mxu0 %v3775
        %4001 = vmatpush.msra.mxu0 %v3773
        %4002 = vmatmul.f32.gmra.mxu0 %v3768
        %v4003 = vpop.f32.mrf.mxu0
        %v4004 = vadd.f32 %v3903, %v4003
        %4005 = vdwg.mxu0
        %4006 = vmatpush.msra.mxu0 %v3835
        %4007 = vmatpush.msra.mxu0 %v3833
        %4008 = vmatpush.msra.mxu0 %v3831
        %4009 = vmatpush.msra.mxu0 %v3829
        %4010 = vmatpush.msra.mxu0 %v3827
        %4011 = vmatpush.msra.mxu0 %v3825
        %4012 = vmatpush.msra.mxu0 %v3823
        %4013 = vmatpush.msra.mxu0 %v3821
        %4014 = vmatpush.msra.mxu0 %v3819
        %4015 = vmatpush.msra.mxu0 %v3817
        %4016 = vmatpush.msra.mxu0 %v3815
        %4017 = vmatpush.msra.mxu0 %v3813
        %4018 = vmatpush.msra.mxu0 %v3811
        %4019 = vmatpush.msra.mxu0 %v3809
        %4020 = vmatpush.msra.mxu0 %v3807
        %4021 = vmatpush.msra.mxu0 %v3805
        %4022 = vmatmul.f32.gmra.mxu0 %v3769
        %v4023 = vpop.f32.mrf.mxu0
        %v4024 = vadd.f32 %v4004, %v4023
        %4025 = vdwg.mxu0
        %4026 = vmatpush.msra.mxu0 %v3867
        %4027 = vmatpush.msra.mxu0 %v3865
        %4028 = vmatpush.msra.mxu0 %v3863
        %4029 = vmatpush.msra.mxu0 %v3861
        %4030 = vmatpush.msra.mxu0 %v3859
        %4031 = vmatpush.msra.mxu0 %v3857
        %4032 = vmatpush.msra.mxu0 %v3855
        %4033 = vmatpush.msra.mxu0 %v3853
        %4034 = vmatpush.msra.mxu0 %v3851
        %4035 = vmatpush.msra.mxu0 %v3849
        %4036 = vmatpush.msra.mxu0 %v3847
        %4037 = vmatpush.msra.mxu0 %v3845
        %4038 = vmatpush.msra.mxu0 %v3843
        %4039 = vmatpush.msra.mxu0 %v3841
        %4040 = vmatpush.msra.mxu0 %v3839
        %4041 = vmatpush.msra.mxu0 %v3837
        %4042 = vmatmul.f32.gmra.mxu0 %v3770
        %v4043 = vpop.f32.mrf.mxu0
        %v4044 = vadd.f32 %v4024, %v4043
        %4045 = vdwg.mxu0
        %4046 = vmatpush.msra.mxu0 %v3899
        %4047 = vmatpush.msra.mxu0 %v3897
        %4048 = vmatpush.msra.mxu0 %v3895
        %4049 = vmatpush.msra.mxu0 %v3893
        %4050 = vmatpush.msra.mxu0 %v3891
        %4051 = vmatpush.msra.mxu0 %v3889
        %4052 = vmatpush.msra.mxu0 %v3887
        %4053 = vmatpush.msra.mxu0 %v3885
        %4054 = vmatpush.msra.mxu0 %v3883
        %4055 = vmatpush.msra.mxu0 %v3881
        %4056 = vmatpush.msra.mxu0 %v3879
        %4057 = vmatpush.msra.mxu0 %v3877
        %4058 = vmatpush.msra.mxu0 %v3875
        %4059 = vmatpush.msra.mxu0 %v3873
        %4060 = vmatpush.msra.mxu0 %v3871
        %4061 = vmatpush.msra.mxu0 %v3869
        %4062 = vmatmul.f32.gmra.mxu0 %v3771
        %v4063 = vpop.f32.mrf.mxu0
        %v4064 = vadd.f32 %v4044, %v4063
        %4065 = vdwg.mxu0
        %v4066 = vmax.f32 %v3984, 0.0
        %v4067 = vmax.f32 %v4064, 0.0
        %v4069 = vrot.slane %v4066, 2
        %4071 = vst [vmem:[#allocation7] ss:$2 sm:$0x3] %v4066
        %s4072 = scalar_lea.vmem [#allocation7], 16
        %4073 = vst [vmem:[%s4072] ss:$2 sm:$0x3] %v4069
        %4074 = vst [vmem:[#allocation1] ss:$4 sm:$0xff] %v4066
        %v4075 = vld.sshfl [vmem:[#allocation1] sm:$0xff pattern:$0x73625140]
        %s4076 = scalar_lea.vmem [#allocation1], 32
        %4077 = vst [vmem:[%s4076] ss:$4 sm:$0xff] %v4069
        %v4078 = vld.sshfl [vmem:[#allocation1 + $0x20] sm:$0xff pattern:$0x73625140]
        %4079 = vrot.lane.b32.xlu0 %v4075, 64
        %v4080 = vpop.permute.xlu0 %4079
        %4081 = vrot.lane.b32.xlu0 %v4078, 64
        %v4082 = vpop.permute.xlu0 %4081
        %s4085 = scalar_lea.vmem [#allocation7], 1
        %4086 = vst [vmem:[%s4085] ss:$2 sm:$0x3] %v4080
        %s4087 = scalar_lea.vmem [#allocation7], 17
        %4088 = vst [vmem:[%s4087] ss:$2 sm:$0x3] %v4082
        %v4090 = vrot.slane %v4067, 2
        %s4092 = scalar_lea.vmem [#allocation7], 8
        %4093 = vst [vmem:[%s4092] ss:$2 sm:$0x3] %v4067
        %s4094 = scalar_lea.vmem %s4092, 16 [#allocation7]
        %4095 = vst [vmem:[%s4094] ss:$2 sm:$0x3] %v4090
        %4096 = vst [vmem:[#allocation1] ss:$4 sm:$0xff] %v4067
        %v4097 = vld.sshfl [vmem:[#allocation1] sm:$0xff pattern:$0x73625140]
        %s4098 = scalar_lea.vmem [#allocation1], 32
        %4099 = vst [vmem:[%s4098] ss:$4 sm:$0xff] %v4090
        %v4100 = vld.sshfl [vmem:[#allocation1 + $0x20] sm:$0xff pattern:$0x73625140]
        %4101 = vrot.lane.b32.xlu0 %v4097, 64
        %v4102 = vpop.permute.xlu0 %4101
        %4103 = vrot.lane.b32.xlu0 %v4100, 64
        %v4104 = vpop.permute.xlu0 %4103
        %s4107 = scalar_lea.vmem %s4092, 1 [#allocation7]
        %4108 = vst [vmem:[%s4107] ss:$2 sm:$0x3] %v4102
        %s4109 = scalar_lea.vmem %s4092, 17 [#allocation7]
        %4110 = vst [vmem:[%s4109] ss:$2 sm:$0x3] %v4104
        %v4111 = vld [vmem:[#allocation7] sm:$0xf]
        %v4112 = vld [vmem:[#allocation7 + $0x8] sm:$0xf]
        %v4113 = vld [vmem:[#allocation7 + $0x10] sm:$0xf]
        %v4114 = vld [vmem:[#allocation7 + $0x18] sm:$0xf]
        %4119 = vst [vmem:[#allocation1] ss:$2 sm:$0xff] %v4111
        %s4120 = scalar_lea.vmem [#allocation1], 1
        %4121 = vst [vmem:[%s4120] ss:$2 sm:$0xff] %v4112
        %s4122 = scalar_lea.vmem [#allocation1], 16
        %4123 = vst [vmem:[%s4122] ss:$2 sm:$0xff] %v4113
        %s4124 = scalar_lea.vmem [#allocation1], 17
        %4125 = vst [vmem:[%s4124] ss:$2 sm:$0xff] %v4114
        %v4126 = vld.sshfl [vmem:[#allocation1] sm:$0xff pattern:$0x75316420]
        %v4127 = vld.sshfl [vmem:[#allocation1 + $0x10] sm:$0xff pattern:$0x75316420]
        %4130 = vst.msk [vmem:[#allocation2] sm:$0xff] %vm3220, %v4126
        %4131 = vst.msk [vmem:[#allocation2 + $0x28] sm:$0xff] %vm3220, %v4127
        %v4132 = vld [vmem:[#allocation7 + $0x1] sm:$0xf]
        %v4133 = vld [vmem:[#allocation7 + $0x9] sm:$0xf]
        %v4134 = vld [vmem:[#allocation7 + $0x11] sm:$0xf]
        %v4135 = vld [vmem:[#allocation7 + $0x19] sm:$0xf]
        %4140 = vst [vmem:[#allocation1] ss:$2 sm:$0xff] %v4132
        %s4141 = scalar_lea.vmem [#allocation1], 1
        %4142 = vst [vmem:[%s4141] ss:$2 sm:$0xff] %v4133
        %s4143 = scalar_lea.vmem [#allocation1], 16
        %4144 = vst [vmem:[%s4143] ss:$2 sm:$0xff] %v4134
        %s4145 = scalar_lea.vmem [#allocation1], 17
        %4146 = vst [vmem:[%s4145] ss:$2 sm:$0xff] %v4135
        %v4147 = vld.sshfl [vmem:[#allocation1] sm:$0xff pattern:$0x75316420]
        %v4148 = vld.sshfl [vmem:[#allocation1 + $0x10] sm:$0xff pattern:$0x75316420]
        %4149 = vrot.lane.b32.xlu0 %v4147, 64
        %v4150 = vpop.permute.xlu0 %4149
        %4151 = vrot.lane.b32.xlu0 %v4148, 64
        %v4152 = vpop.permute.xlu0 %4151
        %4155 = vst.msk [vmem:[#allocation2] sm:$0xff] %vm3322, %v4150
        %4156 = vst.msk [vmem:[#allocation2 + $0x28] sm:$0xff] %vm3322, %v4152
        %v4157 = vld [vmem:[%s4092] sm:$0xf]
        %v4158 = vld [vmem:[%s4092 + $0x8] sm:$0xf]
        %v4159 = vld [vmem:[%s4092 + $0x10] sm:$0xf]
        %v4160 = vld [vmem:[%s4092 + $0x18] sm:$0xf]
        %4165 = vst [vmem:[#allocation1] ss:$2 sm:$0xff] %v4157
        %s4166 = scalar_lea.vmem [#allocation1], 1
        %4167 = vst [vmem:[%s4166] ss:$2 sm:$0xff] %v4158
        %s4168 = scalar_lea.vmem [#allocation1], 16
        %4169 = vst [vmem:[%s4168] ss:$2 sm:$0xff] %v4159
        %s4170 = scalar_lea.vmem [#allocation1], 17
        %4171 = vst [vmem:[%s4170] ss:$2 sm:$0xff] %v4160
        %v4172 = vld.sshfl [vmem:[#allocation1] sm:$0xff pattern:$0x75316420]
        %v4173 = vld.sshfl [vmem:[#allocation1 + $0x10] sm:$0xff pattern:$0x75316420]
        %4176 = vst.msk [vmem:[#allocation2 + $0x8] sm:$0xff] %vm3220, %v4172
        %4177 = vst.msk [vmem:[#allocation2 + $0x30] sm:$0xff] %vm3220, %v4173
        %v4178 = vld [vmem:[%s4092 + $0x1] sm:$0xf]
        %v4179 = vld [vmem:[%s4092 + $0x9] sm:$0xf]
        %v4180 = vld [vmem:[%s4092 + $0x11] sm:$0xf]
        %v4181 = vld [vmem:[%s4092 + $0x19] sm:$0xf]
        %4186 = vst [vmem:[#allocation1] ss:$2 sm:$0xff] %v4178
        %s4187 = scalar_lea.vmem [#allocation1], 1
        %4188 = vst [vmem:[%s4187] ss:$2 sm:$0xff] %v4179
        %s4189 = scalar_lea.vmem [#allocation1], 16
        %4190 = vst [vmem:[%s4189] ss:$2 sm:$0xff] %v4180
        %s4191 = scalar_lea.vmem [#allocation1], 17
        %4192 = vst [vmem:[%s4191] ss:$2 sm:$0xff] %v4181
        %v4193 = vld.sshfl [vmem:[#allocation1] sm:$0xff pattern:$0x75316420]
        %v4194 = vld.sshfl [vmem:[#allocation1 + $0x10] sm:$0xff pattern:$0x75316420]
        %4195 = vrot.lane.b32.xlu0 %v4193, 64
        %v4196 = vpop.permute.xlu0 %4195
        %4197 = vrot.lane.b32.xlu0 %v4194, 64
        %v4198 = vpop.permute.xlu0 %4197
        %4201 = vst.msk [vmem:[#allocation2 + $0x8] sm:$0xff] %vm3322, %v4196
        %4202 = vst.msk [vmem:[#allocation2 + $0x30] sm:$0xff] %vm3322, %v4198
        %v4203 = vld [vmem:[#allocation2] sm:$0xff]
        %v4204 = vld [vmem:[#allocation2 + $0x8] sm:$0xff]
        %v4205 = vld [vmem:[#allocation2 + $0x28] sm:$0xff]
        %v4206 = vld [vmem:[#allocation2 + $0x30] sm:$0xff]
        %v4207 = vld [vmem:[%s9] sm:$0xff]
        %v4208 = vld [vmem:[%s9 + $0x8] sm:$0xff]
        %v4209 = vld [vmem:[%s9 + $0x10] sm:$0xff]
        %v4210 = vld [vmem:[%s9 + $0x18] sm:$0xff]
        %v4211 = vld [vmem:[%s9 + $0x20] sm:$0xff]
        %v4212 = vld [vmem:[%s9 + $0x28] sm:$0xff]
        %v4213 = vld [vmem:[%s9 + $0x30] sm:$0xff]
        %v4214 = vld [vmem:[%s9 + $0x38] sm:$0xff]
        %v4215 = vld [vmem:[%s9 + $0x40] sm:$0xff]
        %v4216 = vld [vmem:[%s9 + $0x48] sm:$0xff]
        %v4217 = vld [vmem:[%s9 + $0x50] sm:$0xff]
        %v4218 = vld [vmem:[%s9 + $0x58] sm:$0xff]
        %v4219 = vld [vmem:[%s9 + $0x60] sm:$0xff]
        %v4220 = vld [vmem:[%s9 + $0x68] sm:$0xff]
        %v4221 = vld [vmem:[%s9 + $0x70] sm:$0xff]
        %v4222 = vld [vmem:[%s9 + $0x78] sm:$0xff]
        %v4223 = vld [vmem:[%s9 + $0x80] sm:$0xff]
        %v4224 = vld [vmem:[%s9 + $0x88] sm:$0xff]
        %v4225 = vld [vmem:[%s9 + $0x90] sm:$0xff]
        %v4226 = vld [vmem:[%s9 + $0x98] sm:$0xff]
        %v4227 = vld [vmem:[%s9 + $0xa0] sm:$0xff]
        %v4228 = vld [vmem:[%s9 + $0xa8] sm:$0xff]
        %v4229 = vld [vmem:[%s9 + $0xb0] sm:$0xff]
        %v4230 = vld [vmem:[%s9 + $0xb8] sm:$0xff]
        %v4231 = vld [vmem:[%s9 + $0xc0] sm:$0xff]
        %v4232 = vld [vmem:[%s9 + $0xc8] sm:$0xff]
        %v4233 = vld [vmem:[%s9 + $0xd0] sm:$0xff]
        %v4234 = vld [vmem:[%s9 + $0xd8] sm:$0xff]
        %v4235 = vld [vmem:[%s9 + $0xe0] sm:$0xff]
        %v4236 = vld [vmem:[%s9 + $0xe8] sm:$0xff]
        %v4237 = vld [vmem:[%s9 + $0xf0] sm:$0xff]
        %v4238 = vld [vmem:[%s9 + $0xf8] sm:$0xff]
        %v4239 = vld [vmem:[%s10] sm:$0x1]
        %v4241 = vperm.slane %v4239, 0
        %4243 = vmatpush.msra.mxu0 %v4222
        %4244 = vmatpush.msra.mxu0 %v4221
        %4245 = vmatpush.msra.mxu0 %v4220
        %4246 = vmatpush.msra.mxu0 %v4219
        %4247 = vmatpush.msra.mxu0 %v4218
        %4248 = vmatpush.msra.mxu0 %v4217
        %4249 = vmatpush.msra.mxu0 %v4216
        %4250 = vmatpush.msra.mxu0 %v4215
        %4251 = vmatpush.msra.mxu0 %v4214
        %4252 = vmatpush.msra.mxu0 %v4213
        %4253 = vmatpush.msra.mxu0 %v4212
        %4254 = vmatpush.msra.mxu0 %v4211
        %4255 = vmatpush.msra.mxu0 %v4210
        %4256 = vmatpush.msra.mxu0 %v4209
        %4257 = vmatpush.msra.mxu0 %v4208
        %4258 = vmatpush.msra.mxu0 %v4207
        %4259 = vmatmul.f32.gmra.mxu0 %v4203
        %v4260 = vpop.f32.mrf.mxu0
        %v4261 = vadd.f32 %v4241, %v4260
        %4262 = vmatmul.f32.gmra.mxu0 %v4205
        %v4263 = vpop.f32.mrf.mxu0
        %v4264 = vadd.f32 %v4241, %v4263
        %4265 = vdwg.mxu0
        %4266 = vmatpush.msra.mxu0 %v4238
        %4267 = vmatpush.msra.mxu0 %v4237
        %4268 = vmatpush.msra.mxu0 %v4236
        %4269 = vmatpush.msra.mxu0 %v4235
        %4270 = vmatpush.msra.mxu0 %v4234
        %4271 = vmatpush.msra.mxu0 %v4233
        %4272 = vmatpush.msra.mxu0 %v4232
        %4273 = vmatpush.msra.mxu0 %v4231
        %4274 = vmatpush.msra.mxu0 %v4230
        %4275 = vmatpush.msra.mxu0 %v4229
        %4276 = vmatpush.msra.mxu0 %v4228
        %4277 = vmatpush.msra.mxu0 %v4227
        %4278 = vmatpush.msra.mxu0 %v4226
        %4279 = vmatpush.msra.mxu0 %v4225
        %4280 = vmatpush.msra.mxu0 %v4224
        %4281 = vmatpush.msra.mxu0 %v4223
        %4282 = vmatmul.f32.gmra.mxu0 %v4204
        %v4283 = vpop.f32.mrf.mxu0
        %v4284 = vadd.f32 %v4261, %v4283
        %4285 = vmatmul.f32.gmra.mxu0 %v4206
        %v4286 = vpop.f32.mrf.mxu0
        %v4287 = vadd.f32 %v4264, %v4286
        %4288 = vdwg.mxu0
        %v4289 = vmax.f32 %v4284, 0.0
        %v4290 = vmax.f32 %v4287, 0.0
        %v4293 = vrot.slane %v4289, 4
        %v4294 = vrot.slane %v4290, 4
        %4297 = vst [vmem:[#allocation8] ss:$2 sm:$0xf] %v4289
        %s4298 = scalar_lea.vmem [#allocation8], 32
        %4299 = vst [vmem:[%s4298] ss:$2 sm:$0xf] %v4293
        %s4300 = scalar_lea.vmem [#allocation8], 64
        %4301 = vst [vmem:[%s4300] ss:$2 sm:$0xf] %v4290
        %s4302 = scalar_lea.vmem [#allocation8], 96
        %4303 = vst [vmem:[%s4302] ss:$2 sm:$0xf] %v4294
        %4304 = vst [vmem:[#allocation1] ss:$2 sm:$0xff] %v4289
        %v4305 = vld.sshfl [vmem:[#allocation1] sm:$0xff pattern:$0x75316420]
        %s4306 = scalar_lea.vmem [#allocation1], 16
        %4307 = vst [vmem:[%s4306] ss:$2 sm:$0xff] %v4293
        %v4308 = vld.sshfl [vmem:[#allocation1 + $0x10] sm:$0xff pattern:$0x75316420]
        %s4309 = scalar_lea.vmem [#allocation1], 32
        %4310 = vst [vmem:[%s4309] ss:$2 sm:$0xff] %v4290
        %v4311 = vld.sshfl [vmem:[#allocation1 + $0x20] sm:$0xff pattern:$0x75316420]
        %s4312 = scalar_lea.vmem [#allocation1], 48
        %4313 = vst [vmem:[%s4312] ss:$2 sm:$0xff] %v4294
        %v4314 = vld.sshfl [vmem:[#allocation1 + $0x30] sm:$0xff pattern:$0x75316420]
        %4315 = vrot.lane.b32.xlu0 %v4305, 96
        %v4316 = vpop.permute.xlu0 %4315
        %4317 = vrot.lane.b32.xlu0 %v4308, 96
        %v4318 = vpop.permute.xlu0 %4317
        %4319 = vrot.lane.b32.xlu0 %v4311, 96
        %v4320 = vpop.permute.xlu0 %4319
        %4321 = vrot.lane.b32.xlu0 %v4314, 96
        %v4322 = vpop.permute.xlu0 %4321
        %s4327 = scalar_lea.vmem [#allocation8], 1
        %4328 = vst [vmem:[%s4327] ss:$2 sm:$0xf] %v4316
        %s4329 = scalar_lea.vmem [#allocation8], 33
        %4330 = vst [vmem:[%s4329] ss:$2 sm:$0xf] %v4318
        %s4331 = scalar_lea.vmem [#allocation8], 65
        %4332 = vst [vmem:[%s4331] ss:$2 sm:$0xf] %v4320
        %s4333 = scalar_lea.vmem [#allocation8], 97
        %4334 = vst [vmem:[%s4333] ss:$2 sm:$0xf] %v4322
        %4335 = vst [vmem:[#allocation1] ss:$2 sm:$0xff] %v4289
        %v4336 = vld.sshfl [vmem:[#allocation1] sm:$0xff pattern:$0x75316420]
        %s4337 = scalar_lea.vmem [#allocation1], 16
        %4338 = vst [vmem:[%s4337] ss:$2 sm:$0xff] %v4293
        %v4339 = vld.sshfl [vmem:[#allocation1 + $0x10] sm:$0xff pattern:$0x75316420]
        %s4340 = scalar_lea.vmem [#allocation1], 32
        %4341 = vst [vmem:[%s4340] ss:$2 sm:$0xff] %v4290
        %v4342 = vld.sshfl [vmem:[#allocation1 + $0x20] sm:$0xff pattern:$0x75316420]
        %s4343 = scalar_lea.vmem [#allocation1], 48
        %4344 = vst [vmem:[%s4343] ss:$2 sm:$0xff] %v4294
        %v4345 = vld.sshfl [vmem:[#allocation1 + $0x30] sm:$0xff pattern:$0x75316420]
        %4346 = vrot.lane.b32.xlu0 %v4336, 64
        %v4347 = vpop.permute.xlu0 %4346
        %4348 = vrot.lane.b32.xlu0 %v4339, 64
        %v4349 = vpop.permute.xlu0 %4348
        %4350 = vrot.lane.b32.xlu0 %v4342, 64
        %v4351 = vpop.permute.xlu0 %4350
        %4352 = vrot.lane.b32.xlu0 %v4345, 64
        %v4353 = vpop.permute.xlu0 %4352
        %s4358 = scalar_lea.vmem [#allocation8], 16
        %4359 = vst [vmem:[%s4358] ss:$2 sm:$0xf] %v4347
        %s4360 = scalar_lea.vmem %s4358, 32 [#allocation8]
        %4361 = vst [vmem:[%s4360] ss:$2 sm:$0xf] %v4349
        %s4362 = scalar_lea.vmem %s4358, 64 [#allocation8]
        %4363 = vst [vmem:[%s4362] ss:$2 sm:$0xf] %v4351
        %s4364 = scalar_lea.vmem %s4358, 96 [#allocation8]
        %4365 = vst [vmem:[%s4364] ss:$2 sm:$0xf] %v4353
        %4366 = vst [vmem:[#allocation1] ss:$2 sm:$0xff] %v4289
        %v4367 = vld.sshfl [vmem:[#allocation1] sm:$0xff pattern:$0x75316420]
        %s4368 = scalar_lea.vmem [#allocation1], 16
        %4369 = vst [vmem:[%s4368] ss:$2 sm:$0xff] %v4293
        %v4370 = vld.sshfl [vmem:[#allocation1 + $0x10] sm:$0xff pattern:$0x75316420]
        %s4371 = scalar_lea.vmem [#allocation1], 32
        %4372 = vst [vmem:[%s4371] ss:$2 sm:$0xff] %v4290
        %v4373 = vld.sshfl [vmem:[#allocation1 + $0x20] sm:$0xff pattern:$0x75316420]
        %s4374 = scalar_lea.vmem [#allocation1], 48
        %4375 = vst [vmem:[%s4374] ss:$2 sm:$0xff] %v4294
        %v4376 = vld.sshfl [vmem:[#allocation1 + $0x30] sm:$0xff pattern:$0x75316420]
        %4377 = vrot.lane.b32.xlu0 %v4367, 32
        %v4378 = vpop.permute.xlu0 %4377
        %4379 = vrot.lane.b32.xlu0 %v4370, 32
        %v4380 = vpop.permute.xlu0 %4379
        %4381 = vrot.lane.b32.xlu0 %v4373, 32
        %v4382 = vpop.permute.xlu0 %4381
        %4383 = vrot.lane.b32.xlu0 %v4376, 32
        %v4384 = vpop.permute.xlu0 %4383
        %s4389 = scalar_lea.vmem %s4358, 1 [#allocation8]
        %4390 = vst [vmem:[%s4389] ss:$2 sm:$0xf] %v4378
        %s4391 = scalar_lea.vmem %s4358, 33 [#allocation8]
        %4392 = vst [vmem:[%s4391] ss:$2 sm:$0xf] %v4380
        %s4393 = scalar_lea.vmem %s4358, 65 [#allocation8]
        %4394 = vst [vmem:[%s4393] ss:$2 sm:$0xf] %v4382
        %s4395 = scalar_lea.vmem %s4358, 97 [#allocation8]
        %4396 = vst [vmem:[%s4395] ss:$2 sm:$0xf] %v4384
        %v4397 = vld [vmem:[#allocation8] sm:$0xff]
        %v4398 = vld [vmem:[#allocation8 + $0x10] sm:$0xff]
        %v4399 = vld [vmem:[#allocation8 + $0x20] sm:$0xff]
        %v4400 = vld [vmem:[#allocation8 + $0x30] sm:$0xff]
        %v4401 = vld [vmem:[#allocation8 + $0x40] sm:$0xff]
        %v4402 = vld [vmem:[#allocation8 + $0x50] sm:$0xff]
        %v4403 = vld [vmem:[#allocation8 + $0x60] sm:$0xff]
        %v4404 = vld [vmem:[#allocation8 + $0x70] sm:$0xff]
        %4405 = vst.msk [vmem:[#allocation2] sm:$0xff] %vm514, %v4397
        %4406 = vst.msk [vmem:[#allocation2 + $0x28] sm:$0xff] %vm514, %v4398
        %4407 = vst.msk [vmem:[#allocation2 + $0x50] sm:$0xff] %vm514, %v4399
        %4408 = vst.msk [vmem:[#allocation2 + $0x78] sm:$0xff] %vm514, %v4400
        %4409 = vst.msk [vmem:[#allocation2 + $0xa0] sm:$0xff] %vm514, %v4401
        %4410 = vst.msk [vmem:[#allocation2 + $0xc8] sm:$0xff] %vm514, %v4402
        %4411 = vst.msk [vmem:[#allocation2 + $0xf0] sm:$0xff] %vm514, %v4403
        %4412 = vst.msk [vmem:[#allocation2 + $0x118] sm:$0xff] %vm514, %v4404
        %v4413 = vld [vmem:[#allocation8 + $0x1] sm:$0xff]
        %v4414 = vld [vmem:[#allocation8 + $0x11] sm:$0xff]
        %v4415 = vld [vmem:[#allocation8 + $0x21] sm:$0xff]
        %v4416 = vld [vmem:[#allocation8 + $0x31] sm:$0xff]
        %v4417 = vld [vmem:[#allocation8 + $0x41] sm:$0xff]
        %v4418 = vld [vmem:[#allocation8 + $0x51] sm:$0xff]
        %v4419 = vld [vmem:[#allocation8 + $0x61] sm:$0xff]
        %v4420 = vld [vmem:[#allocation8 + $0x71] sm:$0xff]
        %4429 = vrot.lane.b32.xlu0 %v4413, 32
        %v4430 = vpop.permute.xlu0 %4429
        %4431 = vrot.lane.b32.xlu0 %v4414, 32
        %v4432 = vpop.permute.xlu0 %4431
        %4433 = vrot.lane.b32.xlu0 %v4415, 32
        %v4434 = vpop.permute.xlu0 %4433
        %4435 = vrot.lane.b32.xlu0 %v4416, 32
        %v4436 = vpop.permute.xlu0 %4435
        %4437 = vrot.lane.b32.xlu0 %v4417, 32
        %v4438 = vpop.permute.xlu0 %4437
        %4439 = vrot.lane.b32.xlu0 %v4418, 32
        %v4440 = vpop.permute.xlu0 %4439
        %4441 = vrot.lane.b32.xlu0 %v4419, 32
        %v4442 = vpop.permute.xlu0 %4441
        %4443 = vrot.lane.b32.xlu0 %v4420, 32
        %v4444 = vpop.permute.xlu0 %4443
        %4453 = vst.msk [vmem:[#allocation2] sm:$0xff] %vm2717, %v4430
        %4454 = vst.msk [vmem:[#allocation2 + $0x28] sm:$0xff] %vm2717, %v4432
        %4455 = vst.msk [vmem:[#allocation2 + $0x50] sm:$0xff] %vm2717, %v4434
        %4456 = vst.msk [vmem:[#allocation2 + $0x78] sm:$0xff] %vm2717, %v4436
        %4457 = vst.msk [vmem:[#allocation2 + $0xa0] sm:$0xff] %vm2717, %v4438
        %4458 = vst.msk [vmem:[#allocation2 + $0xc8] sm:$0xff] %vm2717, %v4440
        %4459 = vst.msk [vmem:[#allocation2 + $0xf0] sm:$0xff] %vm2717, %v4442
        %4460 = vst.msk [vmem:[#allocation2 + $0x118] sm:$0xff] %vm2717, %v4444
        %v4461 = vld [vmem:[%s4358] sm:$0xff]
        %v4462 = vld [vmem:[%s4358 + $0x10] sm:$0xff]
        %v4463 = vld [vmem:[%s4358 + $0x20] sm:$0xff]
        %v4464 = vld [vmem:[%s4358 + $0x30] sm:$0xff]
        %v4465 = vld [vmem:[%s4358 + $0x40] sm:$0xff]
        %v4466 = vld [vmem:[%s4358 + $0x50] sm:$0xff]
        %v4467 = vld [vmem:[%s4358 + $0x60] sm:$0xff]
        %v4468 = vld [vmem:[%s4358 + $0x70] sm:$0xff]
        %4477 = vrot.lane.b32.xlu0 %v4461, 64
        %v4478 = vpop.permute.xlu0 %4477
        %4479 = vrot.lane.b32.xlu0 %v4462, 64
        %v4480 = vpop.permute.xlu0 %4479
        %4481 = vrot.lane.b32.xlu0 %v4463, 64
        %v4482 = vpop.permute.xlu0 %4481
        %4483 = vrot.lane.b32.xlu0 %v4464, 64
        %v4484 = vpop.permute.xlu0 %4483
        %4485 = vrot.lane.b32.xlu0 %v4465, 64
        %v4486 = vpop.permute.xlu0 %4485
        %4487 = vrot.lane.b32.xlu0 %v4466, 64
        %v4488 = vpop.permute.xlu0 %4487
        %4489 = vrot.lane.b32.xlu0 %v4467, 64
        %v4490 = vpop.permute.xlu0 %4489
        %4491 = vrot.lane.b32.xlu0 %v4468, 64
        %v4492 = vpop.permute.xlu0 %4491
        %4501 = vst.msk [vmem:[#allocation2] sm:$0xff] %vm2766, %v4478
        %4502 = vst.msk [vmem:[#allocation2 + $0x28] sm:$0xff] %vm2766, %v4480
        %4503 = vst.msk [vmem:[#allocation2 + $0x50] sm:$0xff] %vm2766, %v4482
        %4504 = vst.msk [vmem:[#allocation2 + $0x78] sm:$0xff] %vm2766, %v4484
        %4505 = vst.msk [vmem:[#allocation2 + $0xa0] sm:$0xff] %vm2766, %v4486
        %4506 = vst.msk [vmem:[#allocation2 + $0xc8] sm:$0xff] %vm2766, %v4488
        %4507 = vst.msk [vmem:[#allocation2 + $0xf0] sm:$0xff] %vm2766, %v4490
        %4508 = vst.msk [vmem:[#allocation2 + $0x118] sm:$0xff] %vm2766, %v4492
        %v4509 = vld [vmem:[%s4358 + $0x1] sm:$0xff]
        %v4510 = vld [vmem:[%s4358 + $0x11] sm:$0xff]
        %v4511 = vld [vmem:[%s4358 + $0x21] sm:$0xff]
        %v4512 = vld [vmem:[%s4358 + $0x31] sm:$0xff]
        %v4513 = vld [vmem:[%s4358 + $0x41] sm:$0xff]
        %v4514 = vld [vmem:[%s4358 + $0x51] sm:$0xff]
        %v4515 = vld [vmem:[%s4358 + $0x61] sm:$0xff]
        %v4516 = vld [vmem:[%s4358 + $0x71] sm:$0xff]
        %4525 = vrot.lane.b32.xlu0 %v4509, 96
        %v4526 = vpop.permute.xlu0 %4525
        %4527 = vrot.lane.b32.xlu0 %v4510, 96
        %v4528 = vpop.permute.xlu0 %4527
        %4529 = vrot.lane.b32.xlu0 %v4511, 96
        %v4530 = vpop.permute.xlu0 %4529
        %4531 = vrot.lane.b32.xlu0 %v4512, 96
        %v4532 = vpop.permute.xlu0 %4531
        %4533 = vrot.lane.b32.xlu0 %v4513, 96
        %v4534 = vpop.permute.xlu0 %4533
        %4535 = vrot.lane.b32.xlu0 %v4514, 96
        %v4536 = vpop.permute.xlu0 %4535
        %4537 = vrot.lane.b32.xlu0 %v4515, 96
        %v4538 = vpop.permute.xlu0 %4537
        %4539 = vrot.lane.b32.xlu0 %v4516, 96
        %v4540 = vpop.permute.xlu0 %4539
        %4549 = vst.msk [vmem:[#allocation2] sm:$0xff] %vm2815, %v4526
        %4550 = vst.msk [vmem:[#allocation2 + $0x28] sm:$0xff] %vm2815, %v4528
        %4551 = vst.msk [vmem:[#allocation2 + $0x50] sm:$0xff] %vm2815, %v4530
        %4552 = vst.msk [vmem:[#allocation2 + $0x78] sm:$0xff] %vm2815, %v4532
        %4553 = vst.msk [vmem:[#allocation2 + $0xa0] sm:$0xff] %vm2815, %v4534
        %4554 = vst.msk [vmem:[#allocation2 + $0xc8] sm:$0xff] %vm2815, %v4536
        %4555 = vst.msk [vmem:[#allocation2 + $0xf0] sm:$0xff] %vm2815, %v4538
        %4556 = vst.msk [vmem:[#allocation2 + $0x118] sm:$0xff] %vm2815, %v4540
        %v4557 = vld [vmem:[#allocation2] sm:$0xff]
        %v4558 = vld [vmem:[#allocation2 + $0x28] sm:$0xff]
        %v4559 = vld [vmem:[#allocation2 + $0x50] sm:$0xff]
        %v4560 = vld [vmem:[#allocation2 + $0x78] sm:$0xff]
        %v4561 = vld [vmem:[#allocation2 + $0xa0] sm:$0xff]
        %v4562 = vld [vmem:[#allocation2 + $0xc8] sm:$0xff]
        %v4563 = vld [vmem:[#allocation2 + $0xf0] sm:$0xff]
        %v4564 = vld [vmem:[#allocation2 + $0x118] sm:$0xff]
        %v4565 = vld [vmem:[%s11] sm:$0xff]
        %v4566 = vld [vmem:[%s11 + $0x8] sm:$0xff]
        %v4567 = vld [vmem:[%s11 + $0x10] sm:$0xff]
        %v4568 = vld [vmem:[%s11 + $0x18] sm:$0xff]
        %v4569 = vld [vmem:[%s11 + $0x20] sm:$0xff]
        %v4570 = vld [vmem:[%s11 + $0x28] sm:$0xff]
        %v4571 = vld [vmem:[%s11 + $0x30] sm:$0xff]
        %v4572 = vld [vmem:[%s11 + $0x38] sm:$0xff]
        %v4573 = vld [vmem:[%s11 + $0x40] sm:$0xff]
        %v4574 = vld [vmem:[%s11 + $0x48] sm:$0xff]
        %v4575 = vld [vmem:[%s11 + $0x50] sm:$0xff]
        %v4576 = vld [vmem:[%s11 + $0x58] sm:$0xff]
        %v4577 = vld [vmem:[%s11 + $0x60] sm:$0xff]
        %v4578 = vld [vmem:[%s11 + $0x68] sm:$0xff]
        %v4579 = vld [vmem:[%s11 + $0x70] sm:$0xff]
        %v4580 = vld [vmem:[%s11 + $0x78] sm:$0xff]
        %v4581 = vld [vmem:[%s12] sm:$0x1]
        %v4583 = vperm.slane %v4581, 0
        %4585 = vmatpush.msra.mxu0 %v4580
        %4586 = vmatpush.msra.mxu0 %v4579
        %4587 = vmatpush.msra.mxu0 %v4578
        %4588 = vmatpush.msra.mxu0 %v4577
        %4589 = vmatpush.msra.mxu0 %v4576
        %4590 = vmatpush.msra.mxu0 %v4575
        %4591 = vmatpush.msra.mxu0 %v4574
        %4592 = vmatpush.msra.mxu0 %v4573
        %4593 = vmatpush.msra.mxu0 %v4572
        %4594 = vmatpush.msra.mxu0 %v4571
        %4595 = vmatpush.msra.mxu0 %v4570
        %4596 = vmatpush.msra.mxu0 %v4569
        %4597 = vmatpush.msra.mxu0 %v4568
        %4598 = vmatpush.msra.mxu0 %v4567
        %4599 = vmatpush.msra.mxu0 %v4566
        %4600 = vmatpush.msra.mxu0 %v4565
        %4601 = vmatmul.f32.gmra.mxu0 %v4557
        %v4602 = vpop.f32.mrf.mxu0
        %v4603 = vadd.f32 %v4583, %v4602
        %4604 = vmatmul.f32.gmra.mxu0 %v4558
        %v4605 = vpop.f32.mrf.mxu0
        %v4606 = vadd.f32 %v4583, %v4605
        %4607 = vmatmul.f32.gmra.mxu0 %v4559
        %v4608 = vpop.f32.mrf.mxu0
        %v4609 = vadd.f32 %v4583, %v4608
        %4610 = vmatmul.f32.gmra.mxu0 %v4560
        %v4611 = vpop.f32.mrf.mxu0
        %v4612 = vadd.f32 %v4583, %v4611
        %4613 = vmatmul.f32.gmra.mxu0 %v4561
        %v4614 = vpop.f32.mrf.mxu0
        %v4615 = vadd.f32 %v4583, %v4614
        %4616 = vmatmul.f32.gmra.mxu0 %v4562
        %v4617 = vpop.f32.mrf.mxu0
        %v4618 = vadd.f32 %v4583, %v4617
        %4619 = vmatmul.f32.gmra.mxu0 %v4563
        %v4620 = vpop.f32.mrf.mxu0
        %v4621 = vadd.f32 %v4583, %v4620
        %4622 = vmatmul.f32.gmra.mxu0 %v4564
        %v4623 = vpop.f32.mrf.mxu0
        %v4624 = vadd.f32 %v4583, %v4623
        %4625 = vdwg.mxu0
        %4626 = vst [vmem:[%s457] sm:$0xff] %v4603
        %4627 = vst [vmem:[%s457 + $0x8] sm:$0xff] %v4606
        %4628 = vst [vmem:[%s457 + $0x10] sm:$0xff] %v4609
        %4629 = vst [vmem:[%s457 + $0x18] sm:$0xff] %v4612
        %4630 = vst [vmem:[%s457 + $0x20] sm:$0xff] %v4615
        %4631 = vst [vmem:[%s457 + $0x28] sm:$0xff] %v4618
        %4632 = vst [vmem:[%s457 + $0x30] sm:$0xff] %v4621
        %4633 = vst [vmem:[%s457 + $0x38] sm:$0xff] %v4624
        %p4634 = scmp.lt.s32.totalorder %s25, 1
        %s4635 = scalar_select %p4634, %s25, 1
        %s4636 = smul.addr %s4635, 8
        %s4637 = smul.addr %s4636, 8
        %s4638 = scalar_lea.vmem %s13, %s4637
        // Predicated region
        $region77: #{dae_forward.1} parent=71 // pred_check
          %p4639 = pneg %p321
        $region78: #{dae_forward.1} parent=71 // pred_check_branch
          %4641 = sbr.rel (%p4639) target = $region80
        $region79: #{dae_forward.1} parent=71 // pred_region
          _
        $region80: #{dae_forward.1} parent=71 // pred_fallthru
          _
      $region72: #{dae_forward.1} parent=5 // pred_fallthru
        _
      %p4642 = scmp.le.s32.totalorder 2, %s20
      // Predicated region
      $region81: #{dae_forward.1} parent=5 // pred_check
        %p4643 = pneg %p4642
      $region82: #{dae_forward.1} parent=5 // pred_check_branch
        %4645 = sbr.rel (%p4643) target = $region84
      $region83: #{dae_forward.1} parent=5 // pred_region
        %s4646 = ssub.s32 %s20, 2
        // Predicated region
        $region85: #{dae_forward.1} parent=83 // pred_check
          %p4647 = pneg %p327
        $region86: #{dae_forward.1} parent=83 // pred_check_branch
          %4649 = sbr.rel (%p4647) target = $region88
        $region87: #{dae_forward.1} parent=83 // pred_region
          %p4650 = scmp.lt.s32.totalorder %s26, 1
          %s4651 = scalar_select %p4650, %s26, 1
          %s4652 = smul.addr %s4651, 8
          %s4653 = smul.addr %s4652, 8
          %s4654 = scalar_lea.vmem %s13, %s4653
        $region88: #{dae_forward.1} parent=83 // pred_fallthru
          _
      $region84: #{dae_forward.1} parent=5 // pred_fallthru
        _
    $region6: #{dae_forward.1} parent=1 // loop_footer
      %s24 = sadd.s32 1, %s20
    $region7: #{dae_forward.1} parent=1 // loop_footer_branch
      %19 = sbr.rel target = $region3
    $region8: #{dae_forward.1} parent=1 // loop_exit
      _
    %4655 = vsyncpa [#allocation13], 1
    %s4656 = scalar_lea.sflag [#allocation13], 1
    %4657 = vsyncpa %s4656, 1

</llo_original>
